<compile_context>
chip_gen: v5e
topology: v5e:2x2
jax: 0.10.0
libtpu: 0.0.40
codegen_flags: <defaults>
</compile_context>

<pallas_src>
import jax
import jax.numpy as jnp
from jax import lax
from jax.experimental import pallas as pl
from jax.experimental.pallas import tpu as pltpu

VTH = 1.0      # LIF firing threshold
TAU = 0.5      # membrane decay
ALPHA = 1.0    # tdBatchNorm alpha
EPS = 1e-5     # BN eps

LANE = 128
MAX_ACC_LANES = 512   # lane-chunk of the f32 conv accumulator


def _round_up(x, m):
    return (x + m - 1) // m * m


# -----------------------------------------------------------------------------
# Pallas kernel 1: direct 3x3 conv on the lane-padded ext-flat layout.
#   - 9 taps stacked on the contraction axis -> 1 bf16 GEMM per image
#   - per-channel BN partial sums fused (one tiny write per image block)
# -----------------------------------------------------------------------------
def _make_conv_kernel(Pl, Wp, Cin, Cout, bB):
    M = Wp + 1                                                 # covers all 9 tap offsets
    taps = [(ky - 1) * Wp + (kx - 1) for ky in range(3) for kx in range(3)]
    chunks = []
    c0 = 0
    while c0 < Pl:                                             # lane-chunk the accumulator
        chunks.append((c0, min(MAX_ACC_LANES, Pl - c0)))
        c0 += MAX_ACC_LANES

    def kernel(x_ref, w_ref, mask_ref, y_ref, s_ref):
        # x_ref: (bB, Cin, Pl) f32/bf16   w_ref: (Cout, 9*Cin) bf16
        # mask_ref: (1, Pl) f32           y_ref: (bB, Cout, Pl) f32
        # s_ref: (1, Cout, 2) f32         (per-block BN partial sums)
        w = w_ref[...]
        m = mask_ref[...]
        zpad = jnp.zeros((Cin, M), jnp.bfloat16)
        s1 = jnp.zeros((Cout, 1), jnp.float32)
        s2 = jnp.zeros((Cout, 1), jnp.float32)
        for i in range(bB):
            xb = x_ref[i].astype(jnp.bfloat16)                 # (Cin, Pl)  bf16 MXU operand
            xw = jnp.concatenate([zpad, xb, zpad], axis=1)     # (Cin, Pl + 2M)
            for (c0, pc) in chunks:
                # 9 shifted tap windows stacked along the contraction axis.
                rhs = jnp.concatenate(
                    [xw[:, M + d + c0: M + d + c0 + pc] for d in taps], axis=0)
                acc = jnp.dot(w, rhs, preferred_element_type=jnp.float32)   # (Cout, pc)
                y_ref[i, :, c0:c0 + pc] = acc
                am = acc * m[:, c0:c0 + pc]                    # zero pad-ring + lane-pad
                s1 = s1 + jnp.sum(am, axis=1, keepdims=True)
                s2 = s2 + jnp.sum(am * acc, axis=1, keepdims=True)
        s_ref[0] = jnp.concatenate([s1, s2], axis=1)           # (Cout, 2)

    return kernel


def conv3x3_ext_pallas(x_flat, w2d, mask, Wp):
    """x_flat: [B, Cin, Pl] (zero pad-ring + lane-pad inside Pl); w2d: [Cout, 9*Cin]
    bf16; mask: [1, Pl] (1.0 on interior).  Returns (y [B,Cout,Pl] f32,
    s [nblk,Cout,2] f32 with s[...,0]=sum, s[...,1]=sum of squares over interior)."""
    B, Cin, Pl = x_flat.shape
    Cout = w2d.shape[0]

    bB = 1                                 # images per grid step (keep >=2 steps for megacore)
    for cand in (8, 4, 2):
        if B % cand == 0 and B // cand >= 2:
            bB = cand
            break
    nblk = B // bB
    kernel = _make_conv_kernel(Pl, Wp, Cin, Cout, bB)

    flops = 2 * 9 * Cin * Cout * Pl * B
    bytes_accessed = (int(x_flat.dtype.itemsize) * B * Cin * Pl
                      + 4 * B * Cout * Pl + 2 * 9 * Cout * Cin
                      + 4 * Pl + 4 * nblk * Cout * 2)

    return pl.pallas_call(
        kernel,
        out_shape=(jax.ShapeDtypeStruct((B, Cout, Pl), jnp.float32),
                   jax.ShapeDtypeStruct((nblk, Cout, 2), jnp.float32)),
        grid=(nblk,),
        in_specs=[pl.BlockSpec((bB, Cin, Pl), lambda b: (b, 0, 0)),
                  pl.BlockSpec((Cout, 9 * Cin), lambda b: (0, 0)),
                  pl.BlockSpec((1, Pl), lambda b: (0, 0))],
        out_specs=(pl.BlockSpec((bB, Cout, Pl), lambda b: (b, 0, 0)),
                   pl.BlockSpec((1, Cout, 2), lambda b: (b, 0, 0))),
        compiler_params=pltpu.CompilerParams(
            dimension_semantics=("parallel",),
            vmem_limit_bytes=32 * 1024 * 1024),
        cost_estimate=pl.CostEstimate(flops=flops, transcendentals=0,
                                      bytes_accessed=bytes_accessed),
    )(x_flat, w2d, mask)


# -----------------------------------------------------------------------------
# Pallas kernel 2: fused tdBatchNorm-apply (+ optional residual) + QLIFSpike
# -----------------------------------------------------------------------------
def _bn_lif_kernel(y_ref, scale_ref, bias_ref, mask_ref, o_ref):
    # y_ref: (T, 1, ct, Pl) f32; scale/bias: (ct, 1) f32; mask: (1, Pl); o: bf16
    T = y_ref.shape[0]
    scale = scale_ref[...]
    bias = bias_ref[...]
    m = mask_ref[...]

    def body(t, mem):
        u = y_ref[t] * scale + bias                 # BN affine apply
        mem = mem * TAU + u                         # leaky integration
        spike = (mem >= VTH).astype(jnp.float32)    # hard threshold (forward)
        o_ref[t] = (spike * m).astype(o_ref.dtype)  # zero pad-ring + lane-pad
        return mem * (1.0 - spike)                  # reset on spike

    lax.fori_loop(0, T, body, jnp.zeros(y_ref.shape[1:], jnp.float32), unroll=True)


def _bn_lif_res_kernel(y_ref, r_ref, scale_ref, bias_ref, mask_ref, o_ref):
    T = y_ref.shape[0]
    scale = scale_ref[...]
    bias = bias_ref[...]
    m = mask_ref[...]

    def body(t, mem):
        u = y_ref[t] * scale + bias + r_ref[t]      # BN apply + residual (identity)
        mem = mem * TAU + u
        spike = (mem >= VTH).astype(jnp.float32)
        o_ref[t] = (spike * m).astype(o_ref.dtype)
        return mem * (1.0 - spike)

    lax.fori_loop(0, T, body, jnp.zeros(y_ref.shape[1:], jnp.float32), unroll=True)


def bn_lif_pallas(y, scale, bias, mask, res=None):
    """y: [T,N,C,Pl] f32; res: [T,N,C,Pl] f32 or None; scale/bias: [C,1]; mask: [1,Pl].
    Returns spikes [T,N,C,Pl] bf16 (0/1, zero on pad-ring and lane-pad)."""
    T, N, C, Pl = y.shape
    ct = C                                 # channels are independent -> tileable
    for cand in (32, 16, 8):
        if C % cand == 0:
            ct = cand
            break
    grid = (N, C // ct)

    yspec = pl.BlockSpec((T, 1, ct, Pl), lambda n, c: (0, n, c, 0))
    sspec = pl.BlockSpec((ct, 1), lambda n, c: (c, 0))
    mspec = pl.BlockSpec((1, Pl), lambda n, c: (0, 0))

    n_el = T * N * C * Pl
    in_bytes = 4 * n_el + (4 * n_el if res is not None else 0)
    ce = pl.CostEstimate(flops=10 * n_el, transcendentals=0,
                         bytes_accessed=in_bytes + 2 * n_el + 8 * C + 4 * Pl)
    cp = pltpu.CompilerParams(dimension_semantics=("parallel", "parallel"),
                              vmem_limit_bytes=32 * 1024 * 1024)
    out_shape = jax.ShapeDtypeStruct(y.shape, jnp.bfloat16)

    if res is None:
        return pl.pallas_call(
            _bn_lif_kernel, out_shape=out_shape, grid=grid,
            in_specs=[yspec, sspec, sspec, mspec], out_specs=yspec,
            compiler_params=cp, cost_estimate=ce,
        )(y, scale, bias, mask)

    return pl.pallas_call(
        _bn_lif_res_kernel, out_shape=out_shape, grid=grid,
        in_specs=[yspec, yspec, sspec, sspec, mspec], out_specs=yspec,
        compiler_params=cp, cost_estimate=ce,
    )(y, res, scale, bias, mask)


# -----------------------------------------------------------------------------
# BasicBlock forward
# -----------------------------------------------------------------------------
def basic_block_forward(x_nchwt, params):
    """x: [N, C, H, W, T] (PyTorch SNN convention); stride=1, downsample=None."""
    w1, g1, b1, w2, g2, b2 = params        # w*: [Cout, 9*Cin] bf16
    N, C, H, W, T = x_nchwt.shape
    Hp, Wp = H + 2, W + 2
    P = Hp * Wp
    Pl = _round_up(P, LANE)                # lane-dense internal spatial width
    B = T * N

    # interior mask over the flattened padded grid (covers the lane padding too)
    mask2d = jnp.zeros((Hp, Wp), jnp.float32).at[1:H + 1, 1:W + 1].set(1.0)
    mask = jnp.pad(mask2d.reshape(1, P), ((0, 0), (0, Pl - P)))

    # [N,C,H,W,T] -> [T,N,C,H,W] -> zero pad ring -> flatten spatial -> lane-pad
    x = jnp.transpose(x_nchwt, (4, 0, 1, 2, 3))
    x_ext = jnp.pad(x, ((0, 0), (0, 0), (0, 0), (1, 1), (1, 1))).reshape(T, N, C, P)
    x_ext = jnp.pad(x_ext, ((0, 0), (0, 0), (0, 0), (0, Pl - P)))   # f32 (exact residual)

    count = float(T * N * H * W)

    def conv_bn(inp_ext, w2d, gamma, beta):
        Cin = inp_ext.shape[2]
        Cout = w2d.shape[0]
        y, s = conv3x3_ext_pallas(inp_ext.reshape(B, Cin, Pl), w2d, mask, Wp)
        y = y.reshape(T, N, Cout, Pl)
        # tdBatchNorm training-mode batch stats from fused per-block partials
        tot1 = jnp.sum(s[:, :, 0], axis=0)            # (Cout,)
        tot2 = jnp.sum(s[:, :, 1], axis=0)
        mean = tot1 / count
        var = jnp.maximum(tot2 / count - mean * mean, 0.0)   # clamp cancellation
        scale = ALPHA * VTH * gamma / jnp.sqrt(var + EPS)
        bias = beta - mean * scale
        return y, scale.reshape(Cout, 1), bias.reshape(Cout, 1)

    # out = conv1_s(x); out = spike1(out)             (no residual)
    y1, sc1, bi1 = conv_bn(x_ext, w1, g1, b1)
    sp1 = bn_lif_pallas(y1, sc1, bi1, mask, res=None)        # bf16 spikes, ring zeroed

    # out = conv2_s(out); out += identity; out = spike2(out)   (downsample is None)
    y2, sc2, bi2 = conv_bn(sp1, w2, g2, b2)
    out_ext = bn_lif_pallas(y2, sc2, bi2, mask, res=x_ext)

    # crop lane pad + pad ring, back to [N, C, H, W, T]
    out = out_ext[..., :P].reshape(T, N, C, Hp, Wp)[:, :, :, 1:H + 1, 1:W + 1]
    return jnp.transpose(out.astype(jnp.float32), (1, 2, 3, 4, 0))


def prep_conv_weight(w_pt):
    # PyTorch conv weight [Cout, Cin, 3, 3] -> bf16 [Cout, 9*Cin],
    # row index k*Cin + cin with k = ky*3 + kx (matches the stacked RHS order).
    Cout, Cin, kh, kw = w_pt.shape
    return jnp.transpose(w_pt, (0, 2, 3, 1)).reshape(Cout, kh * kw * Cin).astype(jnp.bfloat16)


if __name__ == "__main__":
    N, C, H, W, T = 2, 4, 16, 16, 4        # inplanes = planes = 4, stride = 1
    planes = C

    key = jax.random.PRNGKey(0)
    k_in, k_w1, k_w2 = jax.random.split(key, 3)

    x = jax.random.normal(k_in, (N, C, H, W, T), dtype=jnp.float32)

    # conv weights (PyTorch layout [out, in, 3, 3]), deterministic init
    w1_pt = jax.random.normal(k_w1, (planes, C, 3, 3), dtype=jnp.float32) * 0.2
    w2_pt = jax.random.normal(k_w2, (planes, planes, 3, 3), dtype=jnp.float32) * 0.2
    # tdBatchNorm affine params (default init)
    gamma1 = jnp.ones((planes,), jnp.float32)
    beta1 = jnp.zeros((planes,), jnp.float32)
    gamma2 = jnp.ones((planes,), jnp.float32)
    beta2 = jnp.zeros((planes,), jnp.float32)

    params = (prep_conv_weight(w1_pt), gamma1, beta1,
              prep_conv_weight(w2_pt), gamma2, beta2)

    out = jax.jit(basic_block_forward)(x, params)
    out = jax.block_until_ready(out)

    assert out.shape == (N, C, H, W, T), out.shape
    assert bool(jnp.all((out == 0.0) | (out == 1.0))), "spike output must be binary"
    print("KERNEL_OK")
</pallas_src>

<mosaic_0001>
module attributes {stable_mosaic.version = 11 : i64} {
  func.func @kernel(%arg0: i32, %arg1: memref<4x4x384xf32, #tpu.memory_space<vmem>>, %arg2: memref<4x36xbf16, #tpu.memory_space<vmem>>, %arg3: memref<1x384xf32, #tpu.memory_space<vmem>>, %arg4: memref<4x4x384xf32, #tpu.memory_space<vmem>>, %arg5: memref<1x4x2xf32, #tpu.memory_space<vmem>>) attributes {dimension_semantics = [#tpu.dimension_semantics<parallel>], iteration_bounds = array<i64: 2>, scalar_prefetch = 0 : i64, scratch_operands = 0 : i64, tpu.core_type = #tpu.core_type<tc>, window_params = [{transform_indices = @transform_0, window_bounds = array<i64: 4, 4, 384>}, {pipeline_mode = #tpu.pipeline_mode<synchronous>, transform_indices = @transform_1, window_bounds = array<i64: 4, 36>}, {pipeline_mode = #tpu.pipeline_mode<synchronous>, transform_indices = @transform_2, window_bounds = array<i64: 1, 384>}, {transform_indices = @transform_3, window_bounds = array<i64: 4, 4, 384>}, {transform_indices = @transform_4, window_bounds = array<i64: 1, 4, 2>}]} {
    %c0 = arith.constant 0 : index
    %c0_0 = arith.constant 0 : index
    %0 = vector.load %arg2[%c0, %c0_0] : memref<4x36xbf16, #tpu.memory_space<vmem>>, vector<4x36xbf16>
    %c0_1 = arith.constant 0 : index
    %c0_2 = arith.constant 0 : index
    %1 = vector.load %arg3[%c0_1, %c0_2] : memref<1x384xf32, #tpu.memory_space<vmem>>, vector<1x384xf32>
    %cst = arith.constant 0.000000e+00 : bf16
    %2 = vector.broadcast %cst : bf16 to vector<4x19xbf16>
    %cst_3 = arith.constant 0.000000e+00 : f32
    %3 = vector.broadcast %cst_3 : f32 to vector<4x1xf32>
    %cst_4 = arith.constant 0.000000e+00 : f32
    %4 = vector.broadcast %cst_4 : f32 to vector<4x1xf32>
    %c0_5 = arith.constant 0 : index
    %c0_6 = arith.constant 0 : index
    %c0_7 = arith.constant 0 : index
    %5 = vector.load %arg1[%c0_5, %c0_6, %c0_7] : memref<4x4x384xf32, #tpu.memory_space<vmem>>, vector<1x4x384xf32>
    %6 = vector.shape_cast %5 : vector<1x4x384xf32> to vector<4x384xf32>
    %7 = arith.truncf %6 : vector<4x384xf32> to vector<4x384xbf16>
    %8 = tpu.concatenate %2, %7, %2 in 1 : vector<4x19xbf16>, vector<4x384xbf16>, vector<4x19xbf16> -> vector<4x422xbf16>
    %9 = vector.extract_strided_slice %8 {offsets = [0, 0], sizes = [4, 384], strides = [1, 1]} : vector<4x422xbf16> to vector<4x384xbf16>
    %10 = vector.extract_strided_slice %8 {offsets = [0, 1], sizes = [4, 384], strides = [1, 1]} : vector<4x422xbf16> to vector<4x384xbf16>
    %11 = vector.extract_strided_slice %8 {offsets = [0, 2], sizes = [4, 384], strides = [1, 1]} : vector<4x422xbf16> to vector<4x384xbf16>
    %12 = vector.extract_strided_slice %8 {offsets = [0, 18], sizes = [4, 384], strides = [1, 1]} : vector<4x422xbf16> to vector<4x384xbf16>
    %13 = vector.extract_strided_slice %8 {offsets = [0, 19], sizes = [4, 384], strides = [1, 1]} : vector<4x422xbf16> to vector<4x384xbf16>
    %14 = vector.extract_strided_slice %8 {offsets = [0, 20], sizes = [4, 384], strides = [1, 1]} : vector<4x422xbf16> to vector<4x384xbf16>
    %15 = vector.extract_strided_slice %8 {offsets = [0, 36], sizes = [4, 384], strides = [1, 1]} : vector<4x422xbf16> to vector<4x384xbf16>
    %16 = vector.extract_strided_slice %8 {offsets = [0, 37], sizes = [4, 384], strides = [1, 1]} : vector<4x422xbf16> to vector<4x384xbf16>
    %17 = vector.extract_strided_slice %8 {offsets = [0, 38], sizes = [4, 384], strides = [1, 1]} : vector<4x422xbf16> to vector<4x384xbf16>
    %18 = tpu.concatenate %9, %10, %11, %12, %13, %14, %15, %16, %17 in 0 : vector<4x384xbf16>, vector<4x384xbf16>, vector<4x384xbf16>, vector<4x384xbf16>, vector<4x384xbf16>, vector<4x384xbf16>, vector<4x384xbf16>, vector<4x384xbf16>, vector<4x384xbf16> -> vector<36x384xbf16>
    %cst_8 = arith.constant dense<0.000000e+00> : vector<4x384xf32>
    %19 = tpu.matmul %0, %18, %cst_8 {dimension_numbers = #tpu.dot_dimension_numbers<[1], [0], [0], [1], [0, 0, 1, 1], [], []>} : vector<4x36xbf16>, vector<36x384xbf16>, vector<4x384xf32> -> vector<4x384xf32>
    %c0_9 = arith.constant 0 : index
    %c0_10 = arith.constant 0 : index
    %c0_11 = arith.constant 0 : index
    %20 = vector.load %arg4[%c0_9, %c0_10, %c0_11] : memref<4x4x384xf32, #tpu.memory_space<vmem>>, vector<1x4x384xf32>
    %21 = vector.shape_cast %20 : vector<1x4x384xf32> to vector<4x384xf32>
    %22 = vector.shape_cast %19 : vector<4x384xf32> to vector<1x4x384xf32>
    tpu.vector_store %arg4[%c0_9, %c0_10, %c0_11], %22 {strides = array<i32>} : memref<4x4x384xf32, #tpu.memory_space<vmem>>, vector<1x4x384xf32>,
    %23 = vector.broadcast %1 : vector<1x384xf32> to vector<4x384xf32>
    %24 = arith.mulf %19, %23 : vector<4x384xf32>
    %cst_12 = arith.constant dense<0.000000e+00> : vector<4xf32>
    %25 = vector.multi_reduction <add>, %24, %cst_12 [1] : vector<4x384xf32> to vector<4xf32>
    %26 = vector.shape_cast %25 : vector<4xf32> to vector<4x1xf32>
    %27 = arith.addf %3, %26 : vector<4x1xf32>
    %28 = arith.mulf %24, %19 : vector<4x384xf32>
    %cst_13 = arith.constant dense<0.000000e+00> : vector<4xf32>
    %29 = vector.multi_reduction <add>, %28, %cst_13 [1] : vector<4x384xf32> to vector<4xf32>
    %30 = vector.shape_cast %29 : vector<4xf32> to vector<4x1xf32>
    %31 = arith.addf %4, %30 : vector<4x1xf32>
    %c1 = arith.constant 1 : index
    %c0_14 = arith.constant 0 : index
    %c0_15 = arith.constant 0 : index
    %32 = vector.load %arg1[%c1, %c0_14, %c0_15] : memref<4x4x384xf32, #tpu.memory_space<vmem>>, vector<1x4x384xf32>
    %33 = vector.shape_cast %32 : vector<1x4x384xf32> to vector<4x384xf32>
    %34 = arith.truncf %33 : vector<4x384xf32> to vector<4x384xbf16>
    %35 = tpu.concatenate %2, %34, %2 in 1 : vector<4x19xbf16>, vector<4x384xbf16>, vector<4x19xbf16> -> vector<4x422xbf16>
    %36 = vector.extract_strided_slice %35 {offsets = [0, 0], sizes = [4, 384], strides = [1, 1]} : vector<4x422xbf16> to vector<4x384xbf16>
    %37 = vector.extract_strided_slice %35 {offsets = [0, 1], sizes = [4, 384], strides = [1, 1]} : vector<4x422xbf16> to vector<4x384xbf16>
    %38 = vector.extract_strided_slice %35 {offsets = [0, 2], sizes = [4, 384], strides = [1, 1]} : vector<4x422xbf16> to vector<4x384xbf16>
    %39 = vector.extract_strided_slice %35 {offsets = [0, 18], sizes = [4, 384], strides = [1, 1]} : vector<4x422xbf16> to vector<4x384xbf16>
    %40 = vector.extract_strided_slice %35 {offsets = [0, 19], sizes = [4, 384], strides = [1, 1]} : vector<4x422xbf16> to vector<4x384xbf16>
    %41 = vector.extract_strided_slice %35 {offsets = [0, 20], sizes = [4, 384], strides = [1, 1]} : vector<4x422xbf16> to vector<4x384xbf16>
    %42 = vector.extract_strided_slice %35 {offsets = [0, 36], sizes = [4, 384], strides = [1, 1]} : vector<4x422xbf16> to vector<4x384xbf16>
    %43 = vector.extract_strided_slice %35 {offsets = [0, 37], sizes = [4, 384], strides = [1, 1]} : vector<4x422xbf16> to vector<4x384xbf16>
    %44 = vector.extract_strided_slice %35 {offsets = [0, 38], sizes = [4, 384], strides = [1, 1]} : vector<4x422xbf16> to vector<4x384xbf16>
    %45 = tpu.concatenate %36, %37, %38, %39, %40, %41, %42, %43, %44 in 0 : vector<4x384xbf16>, vector<4x384xbf16>, vector<4x384xbf16>, vector<4x384xbf16>, vector<4x384xbf16>, vector<4x384xbf16>, vector<4x384xbf16>, vector<4x384xbf16>, vector<4x384xbf16> -> vector<36x384xbf16>
    %cst_16 = arith.constant dense<0.000000e+00> : vector<4x384xf32>
    %46 = tpu.matmul %0, %45, %cst_16 {dimension_numbers = #tpu.dot_dimension_numbers<[1], [0], [0], [1], [0, 0, 1, 1], [], []>} : vector<4x36xbf16>, vector<36x384xbf16>, vector<4x384xf32> -> vector<4x384xf32>
    %c1_17 = arith.constant 1 : index
    %c0_18 = arith.constant 0 : index
    %c0_19 = arith.constant 0 : index
    %47 = vector.load %arg4[%c1_17, %c0_18, %c0_19] : memref<4x4x384xf32, #tpu.memory_space<vmem>>, vector<1x4x384xf32>
    %48 = vector.shape_cast %47 : vector<1x4x384xf32> to vector<4x384xf32>
    %49 = vector.shape_cast %46 : vector<4x384xf32> to vector<1x4x384xf32>
    tpu.vector_store %arg4[%c1_17, %c0_18, %c0_19], %49 {strides = array<i32>} : memref<4x4x384xf32, #tpu.memory_space<vmem>>, vector<1x4x384xf32>,
    %50 = vector.broadcast %1 : vector<1x384xf32> to vector<4x384xf32>
    %51 = arith.mulf %46, %50 : vector<4x384xf32>
    %cst_20 = arith.constant dense<0.000000e+00> : vector<4xf32>
    %52 = vector.multi_reduction <add>, %51, %cst_20 [1] : vector<4x384xf32> to vector<4xf32>
    %53 = vector.shape_cast %52 : vector<4xf32> to vector<4x1xf32>
    %54 = arith.addf %27, %53 : vector<4x1xf32>
    %55 = arith.mulf %51, %46 : vector<4x384xf32>
    %cst_21 = arith.constant dense<0.000000e+00> : vector<4xf32>
    %56 = vector.multi_reduction <add>, %55, %cst_21 [1] : vector<4x384xf32> to vector<4xf32>
    %57 = vector.shape_cast %56 : vector<4xf32> to vector<4x1xf32>
    %58 = arith.addf %31, %57 : vector<4x1xf32>
    %c2 = arith.constant 2 : index
    %c0_22 = arith.constant 0 : index
    %c0_23 = arith.constant 0 : index
    %59 = vector.load %arg1[%c2, %c0_22, %c0_23] : memref<4x4x384xf32, #tpu.memory_space<vmem>>, vector<1x4x384xf32>
    %60 = vector.shape_cast %59 : vector<1x4x384xf32> to vector<4x384xf32>
    %61 = arith.truncf %60 : vector<4x384xf32> to vector<4x384xbf16>
    %62 = tpu.concatenate %2, %61, %2 in 1 : vector<4x19xbf16>, vector<4x384xbf16>, vector<4x19xbf16> -> vector<4x422xbf16>
    %63 = vector.extract_strided_slice %62 {offsets = [0, 0], sizes = [4, 384], strides = [1, 1]} : vector<4x422xbf16> to vector<4x384xbf16>
    %64 = vector.extract_strided_slice %62 {offsets = [0, 1], sizes = [4, 384], strides = [1, 1]} : vector<4x422xbf16> to vector<4x384xbf16>
    %65 = vector.extract_strided_slice %62 {offsets = [0, 2], sizes = [4, 384], strides = [1, 1]} : vector<4x422xbf16> to vector<4x384xbf16>
    %66 = vector.extract_strided_slice %62 {offsets = [0, 18], sizes = [4, 384], strides = [1, 1]} : vector<4x422xbf16> to vector<4x384xbf16>
    %67 = vector.extract_strided_slice %62 {offsets = [0, 19], sizes = [4, 384], strides = [1, 1]} : vector<4x422xbf16> to vector<4x384xbf16>
    %68 = vector.extract_strided_slice %62 {offsets = [0, 20], sizes = [4, 384], strides = [1, 1]} : vector<4x422xbf16> to vector<4x384xbf16>
    %69 = vector.extract_strided_slice %62 {offsets = [0, 36], sizes = [4, 384], strides = [1, 1]} : vector<4x422xbf16> to vector<4x384xbf16>
    %70 = vector.extract_strided_slice %62 {offsets = [0, 37], sizes = [4, 384], strides = [1, 1]} : vector<4x422xbf16> to vector<4x384xbf16>
    %71 = vector.extract_strided_slice %62 {offsets = [0, 38], sizes = [4, 384], strides = [1, 1]} : vector<4x422xbf16> to vector<4x384xbf16>
    %72 = tpu.concatenate %63, %64, %65, %66, %67, %68, %69, %70, %71 in 0 : vector<4x384xbf16>, vector<4x384xbf16>, vector<4x384xbf16>, vector<4x384xbf16>, vector<4x384xbf16>, vector<4x384xbf16>, vector<4x384xbf16>, vector<4x384xbf16>, vector<4x384xbf16> -> vector<36x384xbf16>
    %cst_24 = arith.constant dense<0.000000e+00> : vector<4x384xf32>
    %73 = tpu.matmul %0, %72, %cst_24 {dimension_numbers = #tpu.dot_dimension_numbers<[1], [0], [0], [1], [0, 0, 1, 1], [], []>} : vector<4x36xbf16>, vector<36x384xbf16>, vector<4x384xf32> -> vector<4x384xf32>
    %c2_25 = arith.constant 2 : index
    %c0_26 = arith.constant 0 : index
    %c0_27 = arith.constant 0 : index
    %74 = vector.load %arg4[%c2_25, %c0_26, %c0_27] : memref<4x4x384xf32, #tpu.memory_space<vmem>>, vector<1x4x384xf32>
    %75 = vector.shape_cast %74 : vector<1x4x384xf32> to vector<4x384xf32>
    %76 = vector.shape_cast %73 : vector<4x384xf32> to vector<1x4x384xf32>
    tpu.vector_store %arg4[%c2_25, %c0_26, %c0_27], %76 {strides = array<i32>} : memref<4x4x384xf32, #tpu.memory_space<vmem>>, vector<1x4x384xf32>,
    %77 = vector.broadcast %1 : vector<1x384xf32> to vector<4x384xf32>
    %78 = arith.mulf %73, %77 : vector<4x384xf32>
    %cst_28 = arith.constant dense<0.000000e+00> : vector<4xf32>
    %79 = vector.multi_reduction <add>, %78, %cst_28 [1] : vector<4x384xf32> to vector<4xf32>
    %80 = vector.shape_cast %79 : vector<4xf32> to vector<4x1xf32>
    %81 = arith.addf %54, %80 : vector<4x1xf32>
    %82 = arith.mulf %78, %73 : vector<4x384xf32>
    %cst_29 = arith.constant dense<0.000000e+00> : vector<4xf32>
    %83 = vector.multi_reduction <add>, %82, %cst_29 [1] : vector<4x384xf32> to vector<4xf32>
    %84 = vector.shape_cast %83 : vector<4xf32> to vector<4x1xf32>
    %85 = arith.addf %58, %84 : vector<4x1xf32>
    %c3 = arith.constant 3 : index
    %c0_30 = arith.constant 0 : index
    %c0_31 = arith.constant 0 : index
    %86 = vector.load %arg1[%c3, %c0_30, %c0_31] : memref<4x4x384xf32, #tpu.memory_space<vmem>>, vector<1x4x384xf32>
    %87 = vector.shape_cast %86 : vector<1x4x384xf32> to vector<4x384xf32>
    %88 = arith.truncf %87 : vector<4x384xf32> to vector<4x384xbf16>
    %89 = tpu.concatenate %2, %88, %2 in 1 : vector<4x19xbf16>, vector<4x384xbf16>, vector<4x19xbf16> -> vector<4x422xbf16>
    %90 = vector.extract_strided_slice %89 {offsets = [0, 0], sizes = [4, 384], strides = [1, 1]} : vector<4x422xbf16> to vector<4x384xbf16>
    %91 = vector.extract_strided_slice %89 {offsets = [0, 1], sizes = [4, 384], strides = [1, 1]} : vector<4x422xbf16> to vector<4x384xbf16>
    %92 = vector.extract_strided_slice %89 {offsets = [0, 2], sizes = [4, 384], strides = [1, 1]} : vector<4x422xbf16> to vector<4x384xbf16>
    %93 = vector.extract_strided_slice %89 {offsets = [0, 18], sizes = [4, 384], strides = [1, 1]} : vector<4x422xbf16> to vector<4x384xbf16>
    %94 = vector.extract_strided_slice %89 {offsets = [0, 19], sizes = [4, 384], strides = [1, 1]} : vector<4x422xbf16> to vector<4x384xbf16>
    %95 = vector.extract_strided_slice %89 {offsets = [0, 20], sizes = [4, 384], strides = [1, 1]} : vector<4x422xbf16> to vector<4x384xbf16>
    %96 = vector.extract_strided_slice %89 {offsets = [0, 36], sizes = [4, 384], strides = [1, 1]} : vector<4x422xbf16> to vector<4x384xbf16>
    %97 = vector.extract_strided_slice %89 {offsets = [0, 37], sizes = [4, 384], strides = [1, 1]} : vector<4x422xbf16> to vector<4x384xbf16>
    %98 = vector.extract_strided_slice %89 {offsets = [0, 38], sizes = [4, 384], strides = [1, 1]} : vector<4x422xbf16> to vector<4x384xbf16>
    %99 = tpu.concatenate %90, %91, %92, %93, %94, %95, %96, %97, %98 in 0 : vector<4x384xbf16>, vector<4x384xbf16>, vector<4x384xbf16>, vector<4x384xbf16>, vector<4x384xbf16>, vector<4x384xbf16>, vector<4x384xbf16>, vector<4x384xbf16>, vector<4x384xbf16> -> vector<36x384xbf16>
    %cst_32 = arith.constant dense<0.000000e+00> : vector<4x384xf32>
    %100 = tpu.matmul %0, %99, %cst_32 {dimension_numbers = #tpu.dot_dimension_numbers<[1], [0], [0], [1], [0, 0, 1, 1], [], []>} : vector<4x36xbf16>, vector<36x384xbf16>, vector<4x384xf32> -> vector<4x384xf32>
    %c3_33 = arith.constant 3 : index
    %c0_34 = arith.constant 0 : index
    %c0_35 = arith.constant 0 : index
    %101 = vector.load %arg4[%c3_33, %c0_34, %c0_35] : memref<4x4x384xf32, #tpu.memory_space<vmem>>, vector<1x4x384xf32>
    %102 = vector.shape_cast %101 : vector<1x4x384xf32> to vector<4x384xf32>
    %103 = vector.shape_cast %100 : vector<4x384xf32> to vector<1x4x384xf32>
    tpu.vector_store %arg4[%c3_33, %c0_34, %c0_35], %103 {strides = array<i32>} : memref<4x4x384xf32, #tpu.memory_space<vmem>>, vector<1x4x384xf32>,
    %104 = vector.broadcast %1 : vector<1x384xf32> to vector<4x384xf32>
    %105 = arith.mulf %100, %104 : vector<4x384xf32>
    %cst_36 = arith.constant dense<0.000000e+00> : vector<4xf32>
    %106 = vector.multi_reduction <add>, %105, %cst_36 [1] : vector<4x384xf32> to vector<4xf32>
    %107 = vector.shape_cast %106 : vector<4xf32> to vector<4x1xf32>
    %108 = arith.addf %81, %107 : vector<4x1xf32>
    %109 = arith.mulf %105, %100 : vector<4x384xf32>
    %cst_37 = arith.constant dense<0.000000e+00> : vector<4xf32>
    %110 = vector.multi_reduction <add>, %109, %cst_37 [1] : vector<4x384xf32> to vector<4xf32>
    %111 = vector.shape_cast %110 : vector<4xf32> to vector<4x1xf32>
    %112 = arith.addf %85, %111 : vector<4x1xf32>
    %113 = tpu.concatenate %108, %112 in 1 : vector<4x1xf32>, vector<4x1xf32> -> vector<4x2xf32>
    %c0_38 = arith.constant 0 : index
    %c0_39 = arith.constant 0 : index
    %c0_40 = arith.constant 0 : index
    %114 = vector.load %arg5[%c0_38, %c0_39, %c0_40] : memref<1x4x2xf32, #tpu.memory_space<vmem>>, vector<1x4x2xf32>
    %115 = vector.shape_cast %114 : vector<1x4x2xf32> to vector<4x2xf32>
    %116 = vector.shape_cast %113 : vector<4x2xf32> to vector<1x4x2xf32>
    tpu.vector_store %arg5[%c0_38, %c0_39, %c0_40], %116 {strides = array<i32>} : memref<1x4x2xf32, #tpu.memory_space<vmem>>, vector<1x4x2xf32>,
    return
  }
  func.func @transform_0(%arg0: i32) -> (i32, i32, i32) {
    %c0_i32 = arith.constant 0 : i32
    %c0_i32_0 = arith.constant 0 : i32
    %c0_i32_1 = arith.constant 0 : i32
    return %arg0, %c0_i32, %c0_i32_0 : i32, i32, i32
  }
  func.func @transform_1(%arg0: i32) -> (i32, i32) {
    %c0_i32 = arith.constant 0 : i32
    %c0_i32_0 = arith.constant 0 : i32
    %c0_i32_1 = arith.constant 0 : i32
    return %c0_i32, %c0_i32_0 : i32, i32
  }
  func.func @transform_2(%arg0: i32) -> (i32, i32) {
    %c0_i32 = arith.constant 0 : i32
    %c0_i32_0 = arith.constant 0 : i32
    %c0_i32_1 = arith.constant 0 : i32
    return %c0_i32, %c0_i32_0 : i32, i32
  }
  func.func @transform_3(%arg0: i32) -> (i32, i32, i32) {
    %c0_i32 = arith.constant 0 : i32
    %c0_i32_0 = arith.constant 0 : i32
    %c0_i32_1 = arith.constant 0 : i32
    return %arg0, %c0_i32, %c0_i32_0 : i32, i32, i32
  }
  func.func @transform_4(%arg0: i32) -> (i32, i32, i32) {
    %c0_i32 = arith.constant 0 : i32
    %c0_i32_0 = arith.constant 0 : i32
    %c0_i32_1 = arith.constant 0 : i32
    return %arg0, %c0_i32, %c0_i32_0 : i32, i32, i32
  }
}

module attributes {stable_mosaic.version = 11 : i64} {
  func.func @_bn_lif_kernel(%arg0: i32, %arg1: i32, %arg2: memref<4x1x4x384xf32, #tpu.memory_space<vmem>>, %arg3: memref<4x1xf32, #tpu.memory_space<vmem>>, %arg4: memref<4x1xf32, #tpu.memory_space<vmem>>, %arg5: memref<1x384xf32, #tpu.memory_space<vmem>>, %arg6: memref<4x1x4x384xbf16, #tpu.memory_space<vmem>>) attributes {dimension_semantics = [#tpu.dimension_semantics<parallel>, #tpu.dimension_semantics<parallel>], iteration_bounds = array<i64: 2, 1>, scalar_prefetch = 0 : i64, scratch_operands = 0 : i64, tpu.core_type = #tpu.core_type<tc>, window_params = [{transform_indices = @transform_0, window_bounds = array<i64: 4, 1, 4, 384>}, {transform_indices = @transform_1, window_bounds = array<i64: 4, 1>}, {transform_indices = @transform_2, window_bounds = array<i64: 4, 1>}, {pipeline_mode = #tpu.pipeline_mode<synchronous>, transform_indices = @transform_3, window_bounds = array<i64: 1, 384>}, {transform_indices = @transform_4, window_bounds = array<i64: 4, 1, 4, 384>}]} {
    %c0 = arith.constant 0 : index
    %c0_0 = arith.constant 0 : index
    %0 = vector.load %arg3[%c0, %c0_0] : memref<4x1xf32, #tpu.memory_space<vmem>>, vector<4x1xf32>
    %c0_1 = arith.constant 0 : index
    %c0_2 = arith.constant 0 : index
    %1 = vector.load %arg4[%c0_1, %c0_2] : memref<4x1xf32, #tpu.memory_space<vmem>>, vector<4x1xf32>
    %c0_3 = arith.constant 0 : index
    %c0_4 = arith.constant 0 : index
    %2 = vector.load %arg5[%c0_3, %c0_4] : memref<1x384xf32, #tpu.memory_space<vmem>>, vector<1x384xf32>
    %cst = arith.constant 0.000000e+00 : f32
    %3 = vector.broadcast %cst : f32 to vector<1x4x384xf32>
    %c0_i32 = arith.constant 0 : i32
    %4 = arith.index_cast %c0_i32 : i32 to index
    %c0_5 = arith.constant 0 : index
    %c0_6 = arith.constant 0 : index
    %c0_7 = arith.constant 0 : index
    %5 = vector.load %arg2[%4, %c0_5, %c0_6, %c0_7] : memref<4x1x4x384xf32, #tpu.memory_space<vmem>>, vector<1x1x4x384xf32>
    %6 = vector.shape_cast %5 : vector<1x1x4x384xf32> to vector<1x4x384xf32>
    %7 = vector.shape_cast %0 : vector<4x1xf32> to vector<1x4x1xf32>
    %8 = vector.broadcast %7 : vector<1x4x1xf32> to vector<1x4x384xf32>
    %9 = arith.mulf %6, %8 : vector<1x4x384xf32>
    %10 = vector.shape_cast %1 : vector<4x1xf32> to vector<1x4x1xf32>
    %11 = vector.broadcast %10 : vector<1x4x1xf32> to vector<1x4x384xf32>
    %12 = arith.addf %9, %11 : vector<1x4x384xf32>
    %cst_8 = arith.constant 5.000000e-01 : f32
    %13 = vector.broadcast %cst_8 : f32 to vector<1x4x384xf32>
    %14 = arith.mulf %3, %13 : vector<1x4x384xf32>
    %15 = arith.addf %14, %12 : vector<1x4x384xf32>
    %cst_9 = arith.constant 1.000000e+00 : f32
    %16 = vector.broadcast %cst_9 : f32 to vector<1x4x384xf32>
    %17 = arith.cmpf oge, %15, %16 : vector<1x4x384xf32>
    %18 = arith.extui %17 : vector<1x4x384xi1> to vector<1x4x384xi32>
    %19 = arith.sitofp %18 : vector<1x4x384xi32> to vector<1x4x384xf32>
    %20 = vector.shape_cast %2 : vector<1x384xf32> to vector<1x1x384xf32>
    %21 = vector.broadcast %20 : vector<1x1x384xf32> to vector<1x4x384xf32>
    %22 = arith.mulf %19, %21 : vector<1x4x384xf32>
    %23 = arith.truncf %22 : vector<1x4x384xf32> to vector<1x4x384xbf16>
    %24 = arith.index_cast %c0_i32 : i32 to index
    %c0_10 = arith.constant 0 : index
    %c0_11 = arith.constant 0 : index
    %c0_12 = arith.constant 0 : index
    %25 = vector.load %arg6[%24, %c0_10, %c0_11, %c0_12] : memref<4x1x4x384xbf16, #tpu.memory_space<vmem>>, vector<1x1x4x384xbf16>
    %26 = vector.shape_cast %25 : vector<1x1x4x384xbf16> to vector<1x4x384xbf16>
    %27 = vector.shape_cast %23 : vector<1x4x384xbf16> to vector<1x1x4x384xbf16>
    tpu.vector_store %arg6[%24, %c0_10, %c0_11, %c0_12], %27 {strides = array<i32>} : memref<4x1x4x384xbf16, #tpu.memory_space<vmem>>, vector<1x1x4x384xbf16>,
    %cst_13 = arith.constant 1.000000e+00 : f32
    %28 = vector.broadcast %cst_13 : f32 to vector<1x4x384xf32>
    %29 = arith.subf %28, %19 : vector<1x4x384xf32>
    %30 = arith.mulf %15, %29 : vector<1x4x384xf32>
    %c1_i32 = arith.constant 1 : i32
    %31 = arith.index_cast %c1_i32 : i32 to index
    %c0_14 = arith.constant 0 : index
    %c0_15 = arith.constant 0 : index
    %c0_16 = arith.constant 0 : index
    %32 = vector.load %arg2[%31, %c0_14, %c0_15, %c0_16] : memref<4x1x4x384xf32, #tpu.memory_space<vmem>>, vector<1x1x4x384xf32>
    %33 = vector.shape_cast %32 : vector<1x1x4x384xf32> to vector<1x4x384xf32>
    %34 = vector.shape_cast %0 : vector<4x1xf32> to vector<1x4x1xf32>
    %35 = vector.broadcast %34 : vector<1x4x1xf32> to vector<1x4x384xf32>
    %36 = arith.mulf %33, %35 : vector<1x4x384xf32>
    %37 = vector.shape_cast %1 : vector<4x1xf32> to vector<1x4x1xf32>
    %38 = vector.broadcast %37 : vector<1x4x1xf32> to vector<1x4x384xf32>
    %39 = arith.addf %36, %38 : vector<1x4x384xf32>
    %cst_17 = arith.constant 5.000000e-01 : f32
    %40 = vector.broadcast %cst_17 : f32 to vector<1x4x384xf32>
    %41 = arith.mulf %30, %40 : vector<1x4x384xf32>
    %42 = arith.addf %41, %39 : vector<1x4x384xf32>
    %cst_18 = arith.constant 1.000000e+00 : f32
    %43 = vector.broadcast %cst_18 : f32 to vector<1x4x384xf32>
    %44 = arith.cmpf oge, %42, %43 : vector<1x4x384xf32>
    %45 = arith.extui %44 : vector<1x4x384xi1> to vector<1x4x384xi32>
    %46 = arith.sitofp %45 : vector<1x4x384xi32> to vector<1x4x384xf32>
    %47 = vector.shape_cast %2 : vector<1x384xf32> to vector<1x1x384xf32>
    %48 = vector.broadcast %47 : vector<1x1x384xf32> to vector<1x4x384xf32>
    %49 = arith.mulf %46, %48 : vector<1x4x384xf32>
    %50 = arith.truncf %49 : vector<1x4x384xf32> to vector<1x4x384xbf16>
    %51 = arith.index_cast %c1_i32 : i32 to index
    %c0_19 = arith.constant 0 : index
    %c0_20 = arith.constant 0 : index
    %c0_21 = arith.constant 0 : index
    %52 = vector.load %arg6[%51, %c0_19, %c0_20, %c0_21] : memref<4x1x4x384xbf16, #tpu.memory_space<vmem>>, vector<1x1x4x384xbf16>
    %53 = vector.shape_cast %52 : vector<1x1x4x384xbf16> to vector<1x4x384xbf16>
    %54 = vector.shape_cast %50 : vector<1x4x384xbf16> to vector<1x1x4x384xbf16>
    tpu.vector_store %arg6[%51, %c0_19, %c0_20, %c0_21], %54 {strides = array<i32>} : memref<4x1x4x384xbf16, #tpu.memory_space<vmem>>, vector<1x1x4x384xbf16>,
    %cst_22 = arith.constant 1.000000e+00 : f32
    %55 = vector.broadcast %cst_22 : f32 to vector<1x4x384xf32>
    %56 = arith.subf %55, %46 : vector<1x4x384xf32>
    %57 = arith.mulf %42, %56 : vector<1x4x384xf32>
    %c2_i32 = arith.constant 2 : i32
    %58 = arith.index_cast %c2_i32 : i32 to index
    %c0_23 = arith.constant 0 : index
    %c0_24 = arith.constant 0 : index
    %c0_25 = arith.constant 0 : index
    %59 = vector.load %arg2[%58, %c0_23, %c0_24, %c0_25] : memref<4x1x4x384xf32, #tpu.memory_space<vmem>>, vector<1x1x4x384xf32>
    %60 = vector.shape_cast %59 : vector<1x1x4x384xf32> to vector<1x4x384xf32>
    %61 = vector.shape_cast %0 : vector<4x1xf32> to vector<1x4x1xf32>
    %62 = vector.broadcast %61 : vector<1x4x1xf32> to vector<1x4x384xf32>
    %63 = arith.mulf %60, %62 : vector<1x4x384xf32>
    %64 = vector.shape_cast %1 : vector<4x1xf32> to vector<1x4x1xf32>
    %65 = vector.broadcast %64 : vector<1x4x1xf32> to vector<1x4x384xf32>
    %66 = arith.addf %63, %65 : vector<1x4x384xf32>
    %cst_26 = arith.constant 5.000000e-01 : f32
    %67 = vector.broadcast %cst_26 : f32 to vector<1x4x384xf32>
    %68 = arith.mulf %57, %67 : vector<1x4x384xf32>
    %69 = arith.addf %68, %66 : vector<1x4x384xf32>
    %cst_27 = arith.constant 1.000000e+00 : f32
    %70 = vector.broadcast %cst_27 : f32 to vector<1x4x384xf32>
    %71 = arith.cmpf oge, %69, %70 : vector<1x4x384xf32>
    %72 = arith.extui %71 : vector<1x4x384xi1> to vector<1x4x384xi32>
    %73 = arith.sitofp %72 : vector<1x4x384xi32> to vector<1x4x384xf32>
    %74 = vector.shape_cast %2 : vector<1x384xf32> to vector<1x1x384xf32>
    %75 = vector.broadcast %74 : vector<1x1x384xf32> to vector<1x4x384xf32>
    %76 = arith.mulf %73, %75 : vector<1x4x384xf32>
    %77 = arith.truncf %76 : vector<1x4x384xf32> to vector<1x4x384xbf16>
    %78 = arith.index_cast %c2_i32 : i32 to index
    %c0_28 = arith.constant 0 : index
    %c0_29 = arith.constant 0 : index
    %c0_30 = arith.constant 0 : index
    %79 = vector.load %arg6[%78, %c0_28, %c0_29, %c0_30] : memref<4x1x4x384xbf16, #tpu.memory_space<vmem>>, vector<1x1x4x384xbf16>
    %80 = vector.shape_cast %79 : vector<1x1x4x384xbf16> to vector<1x4x384xbf16>
    %81 = vector.shape_cast %77 : vector<1x4x384xbf16> to vector<1x1x4x384xbf16>
    tpu.vector_store %arg6[%78, %c0_28, %c0_29, %c0_30], %81 {strides = array<i32>} : memref<4x1x4x384xbf16, #tpu.memory_space<vmem>>, vector<1x1x4x384xbf16>,
    %cst_31 = arith.constant 1.000000e+00 : f32
    %82 = vector.broadcast %cst_31 : f32 to vector<1x4x384xf32>
    %83 = arith.subf %82, %73 : vector<1x4x384xf32>
    %84 = arith.mulf %69, %83 : vector<1x4x384xf32>
    %c3_i32 = arith.constant 3 : i32
    %85 = arith.index_cast %c3_i32 : i32 to index
    %c0_32 = arith.constant 0 : index
    %c0_33 = arith.constant 0 : index
    %c0_34 = arith.constant 0 : index
    %86 = vector.load %arg2[%85, %c0_32, %c0_33, %c0_34] : memref<4x1x4x384xf32, #tpu.memory_space<vmem>>, vector<1x1x4x384xf32>
    %87 = vector.shape_cast %86 : vector<1x1x4x384xf32> to vector<1x4x384xf32>
    %88 = vector.shape_cast %0 : vector<4x1xf32> to vector<1x4x1xf32>
    %89 = vector.broadcast %88 : vector<1x4x1xf32> to vector<1x4x384xf32>
    %90 = arith.mulf %87, %89 : vector<1x4x384xf32>
    %91 = vector.shape_cast %1 : vector<4x1xf32> to vector<1x4x1xf32>
    %92 = vector.broadcast %91 : vector<1x4x1xf32> to vector<1x4x384xf32>
    %93 = arith.addf %90, %92 : vector<1x4x384xf32>
    %cst_35 = arith.constant 5.000000e-01 : f32
    %94 = vector.broadcast %cst_35 : f32 to vector<1x4x384xf32>
    %95 = arith.mulf %84, %94 : vector<1x4x384xf32>
    %96 = arith.addf %95, %93 : vector<1x4x384xf32>
    %cst_36 = arith.constant 1.000000e+00 : f32
    %97 = vector.broadcast %cst_36 : f32 to vector<1x4x384xf32>
    %98 = arith.cmpf oge, %96, %97 : vector<1x4x384xf32>
    %99 = arith.extui %98 : vector<1x4x384xi1> to vector<1x4x384xi32>
    %100 = arith.sitofp %99 : vector<1x4x384xi32> to vector<1x4x384xf32>
    %101 = vector.shape_cast %2 : vector<1x384xf32> to vector<1x1x384xf32>
    %102 = vector.broadcast %101 : vector<1x1x384xf32> to vector<1x4x384xf32>
    %103 = arith.mulf %100, %102 : vector<1x4x384xf32>
    %104 = arith.truncf %103 : vector<1x4x384xf32> to vector<1x4x384xbf16>
    %105 = arith.index_cast %c3_i32 : i32 to index
    %c0_37 = arith.constant 0 : index
    %c0_38 = arith.constant 0 : index
    %c0_39 = arith.constant 0 : index
    %106 = vector.load %arg6[%105, %c0_37, %c0_38, %c0_39] : memref<4x1x4x384xbf16, #tpu.memory_space<vmem>>, vector<1x1x4x384xbf16>
    %107 = vector.shape_cast %106 : vector<1x1x4x384xbf16> to vector<1x4x384xbf16>
    %108 = vector.shape_cast %104 : vector<1x4x384xbf16> to vector<1x1x4x384xbf16>
    tpu.vector_store %arg6[%105, %c0_37, %c0_38, %c0_39], %108 {strides = array<i32>} : memref<4x1x4x384xbf16, #tpu.memory_space<vmem>>, vector<1x1x4x384xbf16>,
    %cst_40 = arith.constant 1.000000e+00 : f32
    %109 = vector.broadcast %cst_40 : f32 to vector<1x4x384xf32>
    %110 = arith.subf %109, %100 : vector<1x4x384xf32>
    %111 = arith.mulf %96, %110 : vector<1x4x384xf32>
    %c4_i32 = arith.constant 4 : i32
    return
  }
  func.func @transform_0(%arg0: i32, %arg1: i32) -> (i32, i32, i32, i32) {
    %c0_i32 = arith.constant 0 : i32
    %c0_i32_0 = arith.constant 0 : i32
    %c0_i32_1 = arith.constant 0 : i32
    return %c0_i32, %arg0, %arg1, %c0_i32_0 : i32, i32, i32, i32
  }
  func.func @transform_1(%arg0: i32, %arg1: i32) -> (i32, i32) {
    %c0_i32 = arith.constant 0 : i32
    %c0_i32_0 = arith.constant 0 : i32
    return %arg1, %c0_i32 : i32, i32
  }
  func.func @transform_2(%arg0: i32, %arg1: i32) -> (i32, i32) {
    %c0_i32 = arith.constant 0 : i32
    %c0_i32_0 = arith.constant 0 : i32
    return %arg1, %c0_i32 : i32, i32
  }
  func.func @transform_3(%arg0: i32, %arg1: i32) -> (i32, i32) {
    %c0_i32 = arith.constant 0 : i32
    %c0_i32_0 = arith.constant 0 : i32
    %c0_i32_1 = arith.constant 0 : i32
    return %c0_i32, %c0_i32_0 : i32, i32
  }
  func.func @transform_4(%arg0: i32, %arg1: i32) -> (i32, i32, i32, i32) {
    %c0_i32 = arith.constant 0 : i32
    %c0_i32_0 = arith.constant 0 : i32
    %c0_i32_1 = arith.constant 0 : i32
    return %c0_i32, %arg0, %arg1, %c0_i32_0 : i32, i32, i32, i32
  }
}

module attributes {stable_mosaic.version = 11 : i64} {
  func.func @kernel(%arg0: i32, %arg1: memref<4x4x384xbf16, #tpu.memory_space<vmem>>, %arg2: memref<4x36xbf16, #tpu.memory_space<vmem>>, %arg3: memref<1x384xf32, #tpu.memory_space<vmem>>, %arg4: memref<4x4x384xf32, #tpu.memory_space<vmem>>, %arg5: memref<1x4x2xf32, #tpu.memory_space<vmem>>) attributes {dimension_semantics = [#tpu.dimension_semantics<parallel>], iteration_bounds = array<i64: 2>, scalar_prefetch = 0 : i64, scratch_operands = 0 : i64, tpu.core_type = #tpu.core_type<tc>, window_params = [{transform_indices = @transform_0, window_bounds = array<i64: 4, 4, 384>}, {pipeline_mode = #tpu.pipeline_mode<synchronous>, transform_indices = @transform_1, window_bounds = array<i64: 4, 36>}, {pipeline_mode = #tpu.pipeline_mode<synchronous>, transform_indices = @transform_2, window_bounds = array<i64: 1, 384>}, {transform_indices = @transform_3, window_bounds = array<i64: 4, 4, 384>}, {transform_indices = @transform_4, window_bounds = array<i64: 1, 4, 2>}]} {
    %c0 = arith.constant 0 : index
    %c0_0 = arith.constant 0 : index
    %0 = vector.load %arg2[%c0, %c0_0] : memref<4x36xbf16, #tpu.memory_space<vmem>>, vector<4x36xbf16>
    %c0_1 = arith.constant 0 : index
    %c0_2 = arith.constant 0 : index
    %1 = vector.load %arg3[%c0_1, %c0_2] : memref<1x384xf32, #tpu.memory_space<vmem>>, vector<1x384xf32>
    %cst = arith.constant 0.000000e+00 : bf16
    %2 = vector.broadcast %cst : bf16 to vector<4x19xbf16>
    %cst_3 = arith.constant 0.000000e+00 : f32
    %3 = vector.broadcast %cst_3 : f32 to vector<4x1xf32>
    %cst_4 = arith.constant 0.000000e+00 : f32
    %4 = vector.broadcast %cst_4 : f32 to vector<4x1xf32>
    %c0_5 = arith.constant 0 : index
    %c0_6 = arith.constant 0 : index
    %c0_7 = arith.constant 0 : index
    %5 = vector.load %arg1[%c0_5, %c0_6, %c0_7] : memref<4x4x384xbf16, #tpu.memory_space<vmem>>, vector<1x4x384xbf16>
    %6 = vector.shape_cast %5 : vector<1x4x384xbf16> to vector<4x384xbf16>
    %7 = tpu.concatenate %2, %6, %2 in 1 : vector<4x19xbf16>, vector<4x384xbf16>, vector<4x19xbf16> -> vector<4x422xbf16>
    %8 = vector.extract_strided_slice %7 {offsets = [0, 0], sizes = [4, 384], strides = [1, 1]} : vector<4x422xbf16> to vector<4x384xbf16>
    %9 = vector.extract_strided_slice %7 {offsets = [0, 1], sizes = [4, 384], strides = [1, 1]} : vector<4x422xbf16> to vector<4x384xbf16>
    %10 = vector.extract_strided_slice %7 {offsets = [0, 2], sizes = [4, 384], strides = [1, 1]} : vector<4x422xbf16> to vector<4x384xbf16>
    %11 = vector.extract_strided_slice %7 {offsets = [0, 18], sizes = [4, 384], strides = [1, 1]} : vector<4x422xbf16> to vector<4x384xbf16>
    %12 = vector.extract_strided_slice %7 {offsets = [0, 19], sizes = [4, 384], strides = [1, 1]} : vector<4x422xbf16> to vector<4x384xbf16>
    %13 = vector.extract_strided_slice %7 {offsets = [0, 20], sizes = [4, 384], strides = [1, 1]} : vector<4x422xbf16> to vector<4x384xbf16>
    %14 = vector.extract_strided_slice %7 {offsets = [0, 36], sizes = [4, 384], strides = [1, 1]} : vector<4x422xbf16> to vector<4x384xbf16>
    %15 = vector.extract_strided_slice %7 {offsets = [0, 37], sizes = [4, 384], strides = [1, 1]} : vector<4x422xbf16> to vector<4x384xbf16>
    %16 = vector.extract_strided_slice %7 {offsets = [0, 38], sizes = [4, 384], strides = [1, 1]} : vector<4x422xbf16> to vector<4x384xbf16>
    %17 = tpu.concatenate %8, %9, %10, %11, %12, %13, %14, %15, %16 in 0 : vector<4x384xbf16>, vector<4x384xbf16>, vector<4x384xbf16>, vector<4x384xbf16>, vector<4x384xbf16>, vector<4x384xbf16>, vector<4x384xbf16>, vector<4x384xbf16>, vector<4x384xbf16> -> vector<36x384xbf16>
    %cst_8 = arith.constant dense<0.000000e+00> : vector<4x384xf32>
    %18 = tpu.matmul %0, %17, %cst_8 {dimension_numbers = #tpu.dot_dimension_numbers<[1], [0], [0], [1], [0, 0, 1, 1], [], []>} : vector<4x36xbf16>, vector<36x384xbf16>, vector<4x384xf32> -> vector<4x384xf32>
    %c0_9 = arith.constant 0 : index
    %c0_10 = arith.constant 0 : index
    %c0_11 = arith.constant 0 : index
    %19 = vector.load %arg4[%c0_9, %c0_10, %c0_11] : memref<4x4x384xf32, #tpu.memory_space<vmem>>, vector<1x4x384xf32>
    %20 = vector.shape_cast %19 : vector<1x4x384xf32> to vector<4x384xf32>
    %21 = vector.shape_cast %18 : vector<4x384xf32> to vector<1x4x384xf32>
    tpu.vector_store %arg4[%c0_9, %c0_10, %c0_11], %21 {strides = array<i32>} : memref<4x4x384xf32, #tpu.memory_space<vmem>>, vector<1x4x384xf32>,
    %22 = vector.broadcast %1 : vector<1x384xf32> to vector<4x384xf32>
    %23 = arith.mulf %18, %22 : vector<4x384xf32>
    %cst_12 = arith.constant dense<0.000000e+00> : vector<4xf32>
    %24 = vector.multi_reduction <add>, %23, %cst_12 [1] : vector<4x384xf32> to vector<4xf32>
    %25 = vector.shape_cast %24 : vector<4xf32> to vector<4x1xf32>
    %26 = arith.addf %3, %25 : vector<4x1xf32>
    %27 = arith.mulf %23, %18 : vector<4x384xf32>
    %cst_13 = arith.constant dense<0.000000e+00> : vector<4xf32>
    %28 = vector.multi_reduction <add>, %27, %cst_13 [1] : vector<4x384xf32> to vector<4xf32>
    %29 = vector.shape_cast %28 : vector<4xf32> to vector<4x1xf32>
    %30 = arith.addf %4, %29 : vector<4x1xf32>
    %c1 = arith.constant 1 : index
    %c0_14 = arith.constant 0 : index
    %c0_15 = arith.constant 0 : index
    %31 = vector.load %arg1[%c1, %c0_14, %c0_15] : memref<4x4x384xbf16, #tpu.memory_space<vmem>>, vector<1x4x384xbf16>
    %32 = vector.shape_cast %31 : vector<1x4x384xbf16> to vector<4x384xbf16>
    %33 = tpu.concatenate %2, %32, %2 in 1 : vector<4x19xbf16>, vector<4x384xbf16>, vector<4x19xbf16> -> vector<4x422xbf16>
    %34 = vector.extract_strided_slice %33 {offsets = [0, 0], sizes = [4, 384], strides = [1, 1]} : vector<4x422xbf16> to vector<4x384xbf16>
    %35 = vector.extract_strided_slice %33 {offsets = [0, 1], sizes = [4, 384], strides = [1, 1]} : vector<4x422xbf16> to vector<4x384xbf16>
    %36 = vector.extract_strided_slice %33 {offsets = [0, 2], sizes = [4, 384], strides = [1, 1]} : vector<4x422xbf16> to vector<4x384xbf16>
    %37 = vector.extract_strided_slice %33 {offsets = [0, 18], sizes = [4, 384], strides = [1, 1]} : vector<4x422xbf16> to vector<4x384xbf16>
    %38 = vector.extract_strided_slice %33 {offsets = [0, 19], sizes = [4, 384], strides = [1, 1]} : vector<4x422xbf16> to vector<4x384xbf16>
    %39 = vector.extract_strided_slice %33 {offsets = [0, 20], sizes = [4, 384], strides = [1, 1]} : vector<4x422xbf16> to vector<4x384xbf16>
    %40 = vector.extract_strided_slice %33 {offsets = [0, 36], sizes = [4, 384], strides = [1, 1]} : vector<4x422xbf16> to vector<4x384xbf16>
    %41 = vector.extract_strided_slice %33 {offsets = [0, 37], sizes = [4, 384], strides = [1, 1]} : vector<4x422xbf16> to vector<4x384xbf16>
    %42 = vector.extract_strided_slice %33 {offsets = [0, 38], sizes = [4, 384], strides = [1, 1]} : vector<4x422xbf16> to vector<4x384xbf16>
    %43 = tpu.concatenate %34, %35, %36, %37, %38, %39, %40, %41, %42 in 0 : vector<4x384xbf16>, vector<4x384xbf16>, vector<4x384xbf16>, vector<4x384xbf16>, vector<4x384xbf16>, vector<4x384xbf16>, vector<4x384xbf16>, vector<4x384xbf16>, vector<4x384xbf16> -> vector<36x384xbf16>
    %cst_16 = arith.constant dense<0.000000e+00> : vector<4x384xf32>
    %44 = tpu.matmul %0, %43, %cst_16 {dimension_numbers = #tpu.dot_dimension_numbers<[1], [0], [0], [1], [0, 0, 1, 1], [], []>} : vector<4x36xbf16>, vector<36x384xbf16>, vector<4x384xf32> -> vector<4x384xf32>
    %c1_17 = arith.constant 1 : index
    %c0_18 = arith.constant 0 : index
    %c0_19 = arith.constant 0 : index
    %45 = vector.load %arg4[%c1_17, %c0_18, %c0_19] : memref<4x4x384xf32, #tpu.memory_space<vmem>>, vector<1x4x384xf32>
    %46 = vector.shape_cast %45 : vector<1x4x384xf32> to vector<4x384xf32>
    %47 = vector.shape_cast %44 : vector<4x384xf32> to vector<1x4x384xf32>
    tpu.vector_store %arg4[%c1_17, %c0_18, %c0_19], %47 {strides = array<i32>} : memref<4x4x384xf32, #tpu.memory_space<vmem>>, vector<1x4x384xf32>,
    %48 = vector.broadcast %1 : vector<1x384xf32> to vector<4x384xf32>
    %49 = arith.mulf %44, %48 : vector<4x384xf32>
    %cst_20 = arith.constant dense<0.000000e+00> : vector<4xf32>
    %50 = vector.multi_reduction <add>, %49, %cst_20 [1] : vector<4x384xf32> to vector<4xf32>
    %51 = vector.shape_cast %50 : vector<4xf32> to vector<4x1xf32>
    %52 = arith.addf %26, %51 : vector<4x1xf32>
    %53 = arith.mulf %49, %44 : vector<4x384xf32>
    %cst_21 = arith.constant dense<0.000000e+00> : vector<4xf32>
    %54 = vector.multi_reduction <add>, %53, %cst_21 [1] : vector<4x384xf32> to vector<4xf32>
    %55 = vector.shape_cast %54 : vector<4xf32> to vector<4x1xf32>
    %56 = arith.addf %30, %55 : vector<4x1xf32>
    %c2 = arith.constant 2 : index
    %c0_22 = arith.constant 0 : index
    %c0_23 = arith.constant 0 : index
    %57 = vector.load %arg1[%c2, %c0_22, %c0_23] : memref<4x4x384xbf16, #tpu.memory_space<vmem>>, vector<1x4x384xbf16>
    %58 = vector.shape_cast %57 : vector<1x4x384xbf16> to vector<4x384xbf16>
    %59 = tpu.concatenate %2, %58, %2 in 1 : vector<4x19xbf16>, vector<4x384xbf16>, vector<4x19xbf16> -> vector<4x422xbf16>
    %60 = vector.extract_strided_slice %59 {offsets = [0, 0], sizes = [4, 384], strides = [1, 1]} : vector<4x422xbf16> to vector<4x384xbf16>
    %61 = vector.extract_strided_slice %59 {offsets = [0, 1], sizes = [4, 384], strides = [1, 1]} : vector<4x422xbf16> to vector<4x384xbf16>
    %62 = vector.extract_strided_slice %59 {offsets = [0, 2], sizes = [4, 384], strides = [1, 1]} : vector<4x422xbf16> to vector<4x384xbf16>
    %63 = vector.extract_strided_slice %59 {offsets = [0, 18], sizes = [4, 384], strides = [1, 1]} : vector<4x422xbf16> to vector<4x384xbf16>
    %64 = vector.extract_strided_slice %59 {offsets = [0, 19], sizes = [4, 384], strides = [1, 1]} : vector<4x422xbf16> to vector<4x384xbf16>
    %65 = vector.extract_strided_slice %59 {offsets = [0, 20], sizes = [4, 384], strides = [1, 1]} : vector<4x422xbf16> to vector<4x384xbf16>
    %66 = vector.extract_strided_slice %59 {offsets = [0, 36], sizes = [4, 384], strides = [1, 1]} : vector<4x422xbf16> to vector<4x384xbf16>
    %67 = vector.extract_strided_slice %59 {offsets = [0, 37], sizes = [4, 384], strides = [1, 1]} : vector<4x422xbf16> to vector<4x384xbf16>
    %68 = vector.extract_strided_slice %59 {offsets = [0, 38], sizes = [4, 384], strides = [1, 1]} : vector<4x422xbf16> to vector<4x384xbf16>
    %69 = tpu.concatenate %60, %61, %62, %63, %64, %65, %66, %67, %68 in 0 : vector<4x384xbf16>, vector<4x384xbf16>, vector<4x384xbf16>, vector<4x384xbf16>, vector<4x384xbf16>, vector<4x384xbf16>, vector<4x384xbf16>, vector<4x384xbf16>, vector<4x384xbf16> -> vector<36x384xbf16>
    %cst_24 = arith.constant dense<0.000000e+00> : vector<4x384xf32>
    %70 = tpu.matmul %0, %69, %cst_24 {dimension_numbers = #tpu.dot_dimension_numbers<[1], [0], [0], [1], [0, 0, 1, 1], [], []>} : vector<4x36xbf16>, vector<36x384xbf16>, vector<4x384xf32> -> vector<4x384xf32>
    %c2_25 = arith.constant 2 : index
    %c0_26 = arith.constant 0 : index
    %c0_27 = arith.constant 0 : index
    %71 = vector.load %arg4[%c2_25, %c0_26, %c0_27] : memref<4x4x384xf32, #tpu.memory_space<vmem>>, vector<1x4x384xf32>
    %72 = vector.shape_cast %71 : vector<1x4x384xf32> to vector<4x384xf32>
    %73 = vector.shape_cast %70 : vector<4x384xf32> to vector<1x4x384xf32>
    tpu.vector_store %arg4[%c2_25, %c0_26, %c0_27], %73 {strides = array<i32>} : memref<4x4x384xf32, #tpu.memory_space<vmem>>, vector<1x4x384xf32>,
    %74 = vector.broadcast %1 : vector<1x384xf32> to vector<4x384xf32>
    %75 = arith.mulf %70, %74 : vector<4x384xf32>
    %cst_28 = arith.constant dense<0.000000e+00> : vector<4xf32>
    %76 = vector.multi_reduction <add>, %75, %cst_28 [1] : vector<4x384xf32> to vector<4xf32>
    %77 = vector.shape_cast %76 : vector<4xf32> to vector<4x1xf32>
    %78 = arith.addf %52, %77 : vector<4x1xf32>
    %79 = arith.mulf %75, %70 : vector<4x384xf32>
    %cst_29 = arith.constant dense<0.000000e+00> : vector<4xf32>
    %80 = vector.multi_reduction <add>, %79, %cst_29 [1] : vector<4x384xf32> to vector<4xf32>
    %81 = vector.shape_cast %80 : vector<4xf32> to vector<4x1xf32>
    %82 = arith.addf %56, %81 : vector<4x1xf32>
    %c3 = arith.constant 3 : index
    %c0_30 = arith.constant 0 : index
    %c0_31 = arith.constant 0 : index
    %83 = vector.load %arg1[%c3, %c0_30, %c0_31] : memref<4x4x384xbf16, #tpu.memory_space<vmem>>, vector<1x4x384xbf16>
    %84 = vector.shape_cast %83 : vector<1x4x384xbf16> to vector<4x384xbf16>
    %85 = tpu.concatenate %2, %84, %2 in 1 : vector<4x19xbf16>, vector<4x384xbf16>, vector<4x19xbf16> -> vector<4x422xbf16>
    %86 = vector.extract_strided_slice %85 {offsets = [0, 0], sizes = [4, 384], strides = [1, 1]} : vector<4x422xbf16> to vector<4x384xbf16>
    %87 = vector.extract_strided_slice %85 {offsets = [0, 1], sizes = [4, 384], strides = [1, 1]} : vector<4x422xbf16> to vector<4x384xbf16>
    %88 = vector.extract_strided_slice %85 {offsets = [0, 2], sizes = [4, 384], strides = [1, 1]} : vector<4x422xbf16> to vector<4x384xbf16>
    %89 = vector.extract_strided_slice %85 {offsets = [0, 18], sizes = [4, 384], strides = [1, 1]} : vector<4x422xbf16> to vector<4x384xbf16>
    %90 = vector.extract_strided_slice %85 {offsets = [0, 19], sizes = [4, 384], strides = [1, 1]} : vector<4x422xbf16> to vector<4x384xbf16>
    %91 = vector.extract_strided_slice %85 {offsets = [0, 20], sizes = [4, 384], strides = [1, 1]} : vector<4x422xbf16> to vector<4x384xbf16>
    %92 = vector.extract_strided_slice %85 {offsets = [0, 36], sizes = [4, 384], strides = [1, 1]} : vector<4x422xbf16> to vector<4x384xbf16>
    %93 = vector.extract_strided_slice %85 {offsets = [0, 37], sizes = [4, 384], strides = [1, 1]} : vector<4x422xbf16> to vector<4x384xbf16>
    %94 = vector.extract_strided_slice %85 {offsets = [0, 38], sizes = [4, 384], strides = [1, 1]} : vector<4x422xbf16> to vector<4x384xbf16>
    %95 = tpu.concatenate %86, %87, %88, %89, %90, %91, %92, %93, %94 in 0 : vector<4x384xbf16>, vector<4x384xbf16>, vector<4x384xbf16>, vector<4x384xbf16>, vector<4x384xbf16>, vector<4x384xbf16>, vector<4x384xbf16>, vector<4x384xbf16>, vector<4x384xbf16> -> vector<36x384xbf16>
    %cst_32 = arith.constant dense<0.000000e+00> : vector<4x384xf32>
    %96 = tpu.matmul %0, %95, %cst_32 {dimension_numbers = #tpu.dot_dimension_numbers<[1], [0], [0], [1], [0, 0, 1, 1], [], []>} : vector<4x36xbf16>, vector<36x384xbf16>, vector<4x384xf32> -> vector<4x384xf32>
    %c3_33 = arith.constant 3 : index
    %c0_34 = arith.constant 0 : index
    %c0_35 = arith.constant 0 : index
    %97 = vector.load %arg4[%c3_33, %c0_34, %c0_35] : memref<4x4x384xf32, #tpu.memory_space<vmem>>, vector<1x4x384xf32>
    %98 = vector.shape_cast %97 : vector<1x4x384xf32> to vector<4x384xf32>
    %99 = vector.shape_cast %96 : vector<4x384xf32> to vector<1x4x384xf32>
    tpu.vector_store %arg4[%c3_33, %c0_34, %c0_35], %99 {strides = array<i32>} : memref<4x4x384xf32, #tpu.memory_space<vmem>>, vector<1x4x384xf32>,
    %100 = vector.broadcast %1 : vector<1x384xf32> to vector<4x384xf32>
    %101 = arith.mulf %96, %100 : vector<4x384xf32>
    %cst_36 = arith.constant dense<0.000000e+00> : vector<4xf32>
    %102 = vector.multi_reduction <add>, %101, %cst_36 [1] : vector<4x384xf32> to vector<4xf32>
    %103 = vector.shape_cast %102 : vector<4xf32> to vector<4x1xf32>
    %104 = arith.addf %78, %103 : vector<4x1xf32>
    %105 = arith.mulf %101, %96 : vector<4x384xf32>
    %cst_37 = arith.constant dense<0.000000e+00> : vector<4xf32>
    %106 = vector.multi_reduction <add>, %105, %cst_37 [1] : vector<4x384xf32> to vector<4xf32>
    %107 = vector.shape_cast %106 : vector<4xf32> to vector<4x1xf32>
    %108 = arith.addf %82, %107 : vector<4x1xf32>
    %109 = tpu.concatenate %104, %108 in 1 : vector<4x1xf32>, vector<4x1xf32> -> vector<4x2xf32>
    %c0_38 = arith.constant 0 : index
    %c0_39 = arith.constant 0 : index
    %c0_40 = arith.constant 0 : index
    %110 = vector.load %arg5[%c0_38, %c0_39, %c0_40] : memref<1x4x2xf32, #tpu.memory_space<vmem>>, vector<1x4x2xf32>
    %111 = vector.shape_cast %110 : vector<1x4x2xf32> to vector<4x2xf32>
    %112 = vector.shape_cast %109 : vector<4x2xf32> to vector<1x4x2xf32>
    tpu.vector_store %arg5[%c0_38, %c0_39, %c0_40], %112 {strides = array<i32>} : memref<1x4x2xf32, #tpu.memory_space<vmem>>, vector<1x4x2xf32>,
    return
  }
  func.func @transform_0(%arg0: i32) -> (i32, i32, i32) {
    %c0_i32 = arith.constant 0 : i32
    %c0_i32_0 = arith.constant 0 : i32
    %c0_i32_1 = arith.constant 0 : i32
    return %arg0, %c0_i32, %c0_i32_0 : i32, i32, i32
  }
  func.func @transform_1(%arg0: i32) -> (i32, i32) {
    %c0_i32 = arith.constant 0 : i32
    %c0_i32_0 = arith.constant 0 : i32
    %c0_i32_1 = arith.constant 0 : i32
    return %c0_i32, %c0_i32_0 : i32, i32
  }
  func.func @transform_2(%arg0: i32) -> (i32, i32) {
    %c0_i32 = arith.constant 0 : i32
    %c0_i32_0 = arith.constant 0 : i32
    %c0_i32_1 = arith.constant 0 : i32
    return %c0_i32, %c0_i32_0 : i32, i32
  }
  func.func @transform_3(%arg0: i32) -> (i32, i32, i32) {
    %c0_i32 = arith.constant 0 : i32
    %c0_i32_0 = arith.constant 0 : i32
    %c0_i32_1 = arith.constant 0 : i32
    return %arg0, %c0_i32, %c0_i32_0 : i32, i32, i32
  }
  func.func @transform_4(%arg0: i32) -> (i32, i32, i32) {
    %c0_i32 = arith.constant 0 : i32
    %c0_i32_0 = arith.constant 0 : i32
    %c0_i32_1 = arith.constant 0 : i32
    return %arg0, %c0_i32, %c0_i32_0 : i32, i32, i32
  }
}

module attributes {stable_mosaic.version = 11 : i64} {
  func.func @_bn_lif_res_kernel(%arg0: i32, %arg1: i32, %arg2: memref<4x1x4x384xf32, #tpu.memory_space<vmem>>, %arg3: memref<4x1x4x384xf32, #tpu.memory_space<vmem>>, %arg4: memref<4x1xf32, #tpu.memory_space<vmem>>, %arg5: memref<4x1xf32, #tpu.memory_space<vmem>>, %arg6: memref<1x384xf32, #tpu.memory_space<vmem>>, %arg7: memref<4x1x4x384xbf16, #tpu.memory_space<vmem>>) attributes {dimension_semantics = [#tpu.dimension_semantics<parallel>, #tpu.dimension_semantics<parallel>], iteration_bounds = array<i64: 2, 1>, scalar_prefetch = 0 : i64, scratch_operands = 0 : i64, tpu.core_type = #tpu.core_type<tc>, window_params = [{transform_indices = @transform_0, window_bounds = array<i64: 4, 1, 4, 384>}, {transform_indices = @transform_1, window_bounds = array<i64: 4, 1, 4, 384>}, {transform_indices = @transform_2, window_bounds = array<i64: 4, 1>}, {transform_indices = @transform_3, window_bounds = array<i64: 4, 1>}, {pipeline_mode = #tpu.pipeline_mode<synchronous>, transform_indices = @transform_4, window_bounds = array<i64: 1, 384>}, {transform_indices = @transform_5, window_bounds = array<i64: 4, 1, 4, 384>}]} {
    %c0 = arith.constant 0 : index
    %c0_0 = arith.constant 0 : index
    %0 = vector.load %arg4[%c0, %c0_0] : memref<4x1xf32, #tpu.memory_space<vmem>>, vector<4x1xf32>
    %c0_1 = arith.constant 0 : index
    %c0_2 = arith.constant 0 : index
    %1 = vector.load %arg5[%c0_1, %c0_2] : memref<4x1xf32, #tpu.memory_space<vmem>>, vector<4x1xf32>
    %c0_3 = arith.constant 0 : index
    %c0_4 = arith.constant 0 : index
    %2 = vector.load %arg6[%c0_3, %c0_4] : memref<1x384xf32, #tpu.memory_space<vmem>>, vector<1x384xf32>
    %cst = arith.constant 0.000000e+00 : f32
    %3 = vector.broadcast %cst : f32 to vector<1x4x384xf32>
    %c0_i32 = arith.constant 0 : i32
    %4 = arith.index_cast %c0_i32 : i32 to index
    %c0_5 = arith.constant 0 : index
    %c0_6 = arith.constant 0 : index
    %c0_7 = arith.constant 0 : index
    %5 = vector.load %arg2[%4, %c0_5, %c0_6, %c0_7] : memref<4x1x4x384xf32, #tpu.memory_space<vmem>>, vector<1x1x4x384xf32>
    %6 = vector.shape_cast %5 : vector<1x1x4x384xf32> to vector<1x4x384xf32>
    %7 = vector.shape_cast %0 : vector<4x1xf32> to vector<1x4x1xf32>
    %8 = vector.broadcast %7 : vector<1x4x1xf32> to vector<1x4x384xf32>
    %9 = arith.mulf %6, %8 : vector<1x4x384xf32>
    %10 = vector.shape_cast %1 : vector<4x1xf32> to vector<1x4x1xf32>
    %11 = vector.broadcast %10 : vector<1x4x1xf32> to vector<1x4x384xf32>
    %12 = arith.addf %9, %11 : vector<1x4x384xf32>
    %13 = arith.index_cast %c0_i32 : i32 to index
    %c0_8 = arith.constant 0 : index
    %c0_9 = arith.constant 0 : index
    %c0_10 = arith.constant 0 : index
    %14 = vector.load %arg3[%13, %c0_8, %c0_9, %c0_10] : memref<4x1x4x384xf32, #tpu.memory_space<vmem>>, vector<1x1x4x384xf32>
    %15 = vector.shape_cast %14 : vector<1x1x4x384xf32> to vector<1x4x384xf32>
    %16 = arith.addf %12, %15 : vector<1x4x384xf32>
    %cst_11 = arith.constant 5.000000e-01 : f32
    %17 = vector.broadcast %cst_11 : f32 to vector<1x4x384xf32>
    %18 = arith.mulf %3, %17 : vector<1x4x384xf32>
    %19 = arith.addf %18, %16 : vector<1x4x384xf32>
    %cst_12 = arith.constant 1.000000e+00 : f32
    %20 = vector.broadcast %cst_12 : f32 to vector<1x4x384xf32>
    %21 = arith.cmpf oge, %19, %20 : vector<1x4x384xf32>
    %22 = arith.extui %21 : vector<1x4x384xi1> to vector<1x4x384xi32>
    %23 = arith.sitofp %22 : vector<1x4x384xi32> to vector<1x4x384xf32>
    %24 = vector.shape_cast %2 : vector<1x384xf32> to vector<1x1x384xf32>
    %25 = vector.broadcast %24 : vector<1x1x384xf32> to vector<1x4x384xf32>
    %26 = arith.mulf %23, %25 : vector<1x4x384xf32>
    %27 = arith.truncf %26 : vector<1x4x384xf32> to vector<1x4x384xbf16>
    %28 = arith.index_cast %c0_i32 : i32 to index
    %c0_13 = arith.constant 0 : index
    %c0_14 = arith.constant 0 : index
    %c0_15 = arith.constant 0 : index
    %29 = vector.load %arg7[%28, %c0_13, %c0_14, %c0_15] : memref<4x1x4x384xbf16, #tpu.memory_space<vmem>>, vector<1x1x4x384xbf16>
    %30 = vector.shape_cast %29 : vector<1x1x4x384xbf16> to vector<1x4x384xbf16>
    %31 = vector.shape_cast %27 : vector<1x4x384xbf16> to vector<1x1x4x384xbf16>
    tpu.vector_store %arg7[%28, %c0_13, %c0_14, %c0_15], %31 {strides = array<i32>} : memref<4x1x4x384xbf16, #tpu.memory_space<vmem>>, vector<1x1x4x384xbf16>,
    %cst_16 = arith.constant 1.000000e+00 : f32
    %32 = vector.broadcast %cst_16 : f32 to vector<1x4x384xf32>
    %33 = arith.subf %32, %23 : vector<1x4x384xf32>
    %34 = arith.mulf %19, %33 : vector<1x4x384xf32>
    %c1_i32 = arith.constant 1 : i32
    %35 = arith.index_cast %c1_i32 : i32 to index
    %c0_17 = arith.constant 0 : index
    %c0_18 = arith.constant 0 : index
    %c0_19 = arith.constant 0 : index
    %36 = vector.load %arg2[%35, %c0_17, %c0_18, %c0_19] : memref<4x1x4x384xf32, #tpu.memory_space<vmem>>, vector<1x1x4x384xf32>
    %37 = vector.shape_cast %36 : vector<1x1x4x384xf32> to vector<1x4x384xf32>
    %38 = vector.shape_cast %0 : vector<4x1xf32> to vector<1x4x1xf32>
    %39 = vector.broadcast %38 : vector<1x4x1xf32> to vector<1x4x384xf32>
    %40 = arith.mulf %37, %39 : vector<1x4x384xf32>
    %41 = vector.shape_cast %1 : vector<4x1xf32> to vector<1x4x1xf32>
    %42 = vector.broadcast %41 : vector<1x4x1xf32> to vector<1x4x384xf32>
    %43 = arith.addf %40, %42 : vector<1x4x384xf32>
    %44 = arith.index_cast %c1_i32 : i32 to index
    %c0_20 = arith.constant 0 : index
    %c0_21 = arith.constant 0 : index
    %c0_22 = arith.constant 0 : index
    %45 = vector.load %arg3[%44, %c0_20, %c0_21, %c0_22] : memref<4x1x4x384xf32, #tpu.memory_space<vmem>>, vector<1x1x4x384xf32>
    %46 = vector.shape_cast %45 : vector<1x1x4x384xf32> to vector<1x4x384xf32>
    %47 = arith.addf %43, %46 : vector<1x4x384xf32>
    %cst_23 = arith.constant 5.000000e-01 : f32
    %48 = vector.broadcast %cst_23 : f32 to vector<1x4x384xf32>
    %49 = arith.mulf %34, %48 : vector<1x4x384xf32>
    %50 = arith.addf %49, %47 : vector<1x4x384xf32>
    %cst_24 = arith.constant 1.000000e+00 : f32
    %51 = vector.broadcast %cst_24 : f32 to vector<1x4x384xf32>
    %52 = arith.cmpf oge, %50, %51 : vector<1x4x384xf32>
    %53 = arith.extui %52 : vector<1x4x384xi1> to vector<1x4x384xi32>
    %54 = arith.sitofp %53 : vector<1x4x384xi32> to vector<1x4x384xf32>
    %55 = vector.shape_cast %2 : vector<1x384xf32> to vector<1x1x384xf32>
    %56 = vector.broadcast %55 : vector<1x1x384xf32> to vector<1x4x384xf32>
    %57 = arith.mulf %54, %56 : vector<1x4x384xf32>
    %58 = arith.truncf %57 : vector<1x4x384xf32> to vector<1x4x384xbf16>
    %59 = arith.index_cast %c1_i32 : i32 to index
    %c0_25 = arith.constant 0 : index
    %c0_26 = arith.constant 0 : index
    %c0_27 = arith.constant 0 : index
    %60 = vector.load %arg7[%59, %c0_25, %c0_26, %c0_27] : memref<4x1x4x384xbf16, #tpu.memory_space<vmem>>, vector<1x1x4x384xbf16>
    %61 = vector.shape_cast %60 : vector<1x1x4x384xbf16> to vector<1x4x384xbf16>
    %62 = vector.shape_cast %58 : vector<1x4x384xbf16> to vector<1x1x4x384xbf16>
    tpu.vector_store %arg7[%59, %c0_25, %c0_26, %c0_27], %62 {strides = array<i32>} : memref<4x1x4x384xbf16, #tpu.memory_space<vmem>>, vector<1x1x4x384xbf16>,
    %cst_28 = arith.constant 1.000000e+00 : f32
    %63 = vector.broadcast %cst_28 : f32 to vector<1x4x384xf32>
    %64 = arith.subf %63, %54 : vector<1x4x384xf32>
    %65 = arith.mulf %50, %64 : vector<1x4x384xf32>
    %c2_i32 = arith.constant 2 : i32
    %66 = arith.index_cast %c2_i32 : i32 to index
    %c0_29 = arith.constant 0 : index
    %c0_30 = arith.constant 0 : index
    %c0_31 = arith.constant 0 : index
    %67 = vector.load %arg2[%66, %c0_29, %c0_30, %c0_31] : memref<4x1x4x384xf32, #tpu.memory_space<vmem>>, vector<1x1x4x384xf32>
    %68 = vector.shape_cast %67 : vector<1x1x4x384xf32> to vector<1x4x384xf32>
    %69 = vector.shape_cast %0 : vector<4x1xf32> to vector<1x4x1xf32>
    %70 = vector.broadcast %69 : vector<1x4x1xf32> to vector<1x4x384xf32>
    %71 = arith.mulf %68, %70 : vector<1x4x384xf32>
    %72 = vector.shape_cast %1 : vector<4x1xf32> to vector<1x4x1xf32>
    %73 = vector.broadcast %72 : vector<1x4x1xf32> to vector<1x4x384xf32>
    %74 = arith.addf %71, %73 : vector<1x4x384xf32>
    %75 = arith.index_cast %c2_i32 : i32 to index
    %c0_32 = arith.constant 0 : index
    %c0_33 = arith.constant 0 : index
    %c0_34 = arith.constant 0 : index
    %76 = vector.load %arg3[%75, %c0_32, %c0_33, %c0_34] : memref<4x1x4x384xf32, #tpu.memory_space<vmem>>, vector<1x1x4x384xf32>
    %77 = vector.shape_cast %76 : vector<1x1x4x384xf32> to vector<1x4x384xf32>
    %78 = arith.addf %74, %77 : vector<1x4x384xf32>
    %cst_35 = arith.constant 5.000000e-01 : f32
    %79 = vector.broadcast %cst_35 : f32 to vector<1x4x384xf32>
    %80 = arith.mulf %65, %79 : vector<1x4x384xf32>
    %81 = arith.addf %80, %78 : vector<1x4x384xf32>
    %cst_36 = arith.constant 1.000000e+00 : f32
    %82 = vector.broadcast %cst_36 : f32 to vector<1x4x384xf32>
    %83 = arith.cmpf oge, %81, %82 : vector<1x4x384xf32>
    %84 = arith.extui %83 : vector<1x4x384xi1> to vector<1x4x384xi32>
    %85 = arith.sitofp %84 : vector<1x4x384xi32> to vector<1x4x384xf32>
    %86 = vector.shape_cast %2 : vector<1x384xf32> to vector<1x1x384xf32>
    %87 = vector.broadcast %86 : vector<1x1x384xf32> to vector<1x4x384xf32>
    %88 = arith.mulf %85, %87 : vector<1x4x384xf32>
    %89 = arith.truncf %88 : vector<1x4x384xf32> to vector<1x4x384xbf16>
    %90 = arith.index_cast %c2_i32 : i32 to index
    %c0_37 = arith.constant 0 : index
    %c0_38 = arith.constant 0 : index
    %c0_39 = arith.constant 0 : index
    %91 = vector.load %arg7[%90, %c0_37, %c0_38, %c0_39] : memref<4x1x4x384xbf16, #tpu.memory_space<vmem>>, vector<1x1x4x384xbf16>
    %92 = vector.shape_cast %91 : vector<1x1x4x384xbf16> to vector<1x4x384xbf16>
    %93 = vector.shape_cast %89 : vector<1x4x384xbf16> to vector<1x1x4x384xbf16>
    tpu.vector_store %arg7[%90, %c0_37, %c0_38, %c0_39], %93 {strides = array<i32>} : memref<4x1x4x384xbf16, #tpu.memory_space<vmem>>, vector<1x1x4x384xbf16>,
    %cst_40 = arith.constant 1.000000e+00 : f32
    %94 = vector.broadcast %cst_40 : f32 to vector<1x4x384xf32>
    %95 = arith.subf %94, %85 : vector<1x4x384xf32>
    %96 = arith.mulf %81, %95 : vector<1x4x384xf32>
    %c3_i32 = arith.constant 3 : i32
    %97 = arith.index_cast %c3_i32 : i32 to index
    %c0_41 = arith.constant 0 : index
    %c0_42 = arith.constant 0 : index
    %c0_43 = arith.constant 0 : index
    %98 = vector.load %arg2[%97, %c0_41, %c0_42, %c0_43] : memref<4x1x4x384xf32, #tpu.memory_space<vmem>>, vector<1x1x4x384xf32>
    %99 = vector.shape_cast %98 : vector<1x1x4x384xf32> to vector<1x4x384xf32>
    %100 = vector.shape_cast %0 : vector<4x1xf32> to vector<1x4x1xf32>
    %101 = vector.broadcast %100 : vector<1x4x1xf32> to vector<1x4x384xf32>
    %102 = arith.mulf %99, %101 : vector<1x4x384xf32>
    %103 = vector.shape_cast %1 : vector<4x1xf32> to vector<1x4x1xf32>
    %104 = vector.broadcast %103 : vector<1x4x1xf32> to vector<1x4x384xf32>
    %105 = arith.addf %102, %104 : vector<1x4x384xf32>
    %106 = arith.index_cast %c3_i32 : i32 to index
    %c0_44 = arith.constant 0 : index
    %c0_45 = arith.constant 0 : index
    %c0_46 = arith.constant 0 : index
    %107 = vector.load %arg3[%106, %c0_44, %c0_45, %c0_46] : memref<4x1x4x384xf32, #tpu.memory_space<vmem>>, vector<1x1x4x384xf32>
    %108 = vector.shape_cast %107 : vector<1x1x4x384xf32> to vector<1x4x384xf32>
    %109 = arith.addf %105, %108 : vector<1x4x384xf32>
    %cst_47 = arith.constant 5.000000e-01 : f32
    %110 = vector.broadcast %cst_47 : f32 to vector<1x4x384xf32>
    %111 = arith.mulf %96, %110 : vector<1x4x384xf32>
    %112 = arith.addf %111, %109 : vector<1x4x384xf32>
    %cst_48 = arith.constant 1.000000e+00 : f32
    %113 = vector.broadcast %cst_48 : f32 to vector<1x4x384xf32>
    %114 = arith.cmpf oge, %112, %113 : vector<1x4x384xf32>
    %115 = arith.extui %114 : vector<1x4x384xi1> to vector<1x4x384xi32>
    %116 = arith.sitofp %115 : vector<1x4x384xi32> to vector<1x4x384xf32>
    %117 = vector.shape_cast %2 : vector<1x384xf32> to vector<1x1x384xf32>
    %118 = vector.broadcast %117 : vector<1x1x384xf32> to vector<1x4x384xf32>
    %119 = arith.mulf %116, %118 : vector<1x4x384xf32>
    %120 = arith.truncf %119 : vector<1x4x384xf32> to vector<1x4x384xbf16>
    %121 = arith.index_cast %c3_i32 : i32 to index
    %c0_49 = arith.constant 0 : index
    %c0_50 = arith.constant 0 : index
    %c0_51 = arith.constant 0 : index
    %122 = vector.load %arg7[%121, %c0_49, %c0_50, %c0_51] : memref<4x1x4x384xbf16, #tpu.memory_space<vmem>>, vector<1x1x4x384xbf16>
    %123 = vector.shape_cast %122 : vector<1x1x4x384xbf16> to vector<1x4x384xbf16>
    %124 = vector.shape_cast %120 : vector<1x4x384xbf16> to vector<1x1x4x384xbf16>
    tpu.vector_store %arg7[%121, %c0_49, %c0_50, %c0_51], %124 {strides = array<i32>} : memref<4x1x4x384xbf16, #tpu.memory_space<vmem>>, vector<1x1x4x384xbf16>,
    %cst_52 = arith.constant 1.000000e+00 : f32
    %125 = vector.broadcast %cst_52 : f32 to vector<1x4x384xf32>
    %126 = arith.subf %125, %116 : vector<1x4x384xf32>
    %127 = arith.mulf %112, %126 : vector<1x4x384xf32>
    %c4_i32 = arith.constant 4 : i32
    return
  }
  func.func @transform_0(%arg0: i32, %arg1: i32) -> (i32, i32, i32, i32) {
    %c0_i32 = arith.constant 0 : i32
    %c0_i32_0 = arith.constant 0 : i32
    %c0_i32_1 = arith.constant 0 : i32
    return %c0_i32, %arg0, %arg1, %c0_i32_0 : i32, i32, i32, i32
  }
  func.func @transform_1(%arg0: i32, %arg1: i32) -> (i32, i32, i32, i32) {
    %c0_i32 = arith.constant 0 : i32
    %c0_i32_0 = arith.constant 0 : i32
    %c0_i32_1 = arith.constant 0 : i32
    return %c0_i32, %arg0, %arg1, %c0_i32_0 : i32, i32, i32, i32
  }
  func.func @transform_2(%arg0: i32, %arg1: i32) -> (i32, i32) {
    %c0_i32 = arith.constant 0 : i32
    %c0_i32_0 = arith.constant 0 : i32
    return %arg1, %c0_i32 : i32, i32
  }
  func.func @transform_3(%arg0: i32, %arg1: i32) -> (i32, i32) {
    %c0_i32 = arith.constant 0 : i32
    %c0_i32_0 = arith.constant 0 : i32
    return %arg1, %c0_i32 : i32, i32
  }
  func.func @transform_4(%arg0: i32, %arg1: i32) -> (i32, i32) {
    %c0_i32 = arith.constant 0 : i32
    %c0_i32_0 = arith.constant 0 : i32
    %c0_i32_1 = arith.constant 0 : i32
    return %c0_i32, %c0_i32_0 : i32, i32
  }
  func.func @transform_5(%arg0: i32, %arg1: i32) -> (i32, i32, i32, i32) {
    %c0_i32 = arith.constant 0 : i32
    %c0_i32_0 = arith.constant 0 : i32
    %c0_i32_1 = arith.constant 0 : i32
    return %c0_i32, %arg0, %arg1, %c0_i32_0 : i32, i32, i32, i32
  }
}

</mosaic_0001>

<llo_original>
// kernel: basic_block_forward.5
$region0: #{basic_block_forward.5}
  #allocation0 [shape = 'u32[]', space=smem, size = 0x4, offset = 0x4, fixed_abs, tag = 'smem constant byte address 0x4 - core index']
  #allocation1 [shape = 'u32[72,128]{1,0:T(1,128)}', space=vmem, size = 0x9000, scoped, tag = 'internal scratch']
  %s0 = inlined_call_operand.vmem [shape: f32[4,2,4,384], index: 0, kind: input, shape index: {}]
  %s1 = inlined_call_operand.vmem [shape: f32[4,1], index: 1, kind: input, shape index: {}]
  %s2 = inlined_call_operand.vmem [shape: f32[4,1], index: 2, kind: input, shape index: {}]
  %s3 = inlined_call_operand.vmem [shape: f32[1,384], index: 3, kind: input, shape index: {}]
  %s4 = inlined_call_operand.vmem [shape: bf16[4,2,4,384], index: 4, kind: output, shape index: {}]
  %s5 = sld [smem:[#allocation0]]
  $region112: #{basic_block_forward.5} parent=0
    _
  %s7 = ssub.s32 1, %s5
  %s8 = scalar_select 0, %s7, %s5
  $region1: #{basic_block_forward.5} parent=0
    #allocation2 [shape = 'u8[49152]{0}', space=vmem, size = 0xc000, scoped, tag = 'input window, operand 0']
    #allocation3 [shape = 'u8[24576]{0}', space=vmem, size = 0x6000, scoped, tag = 'output window, operand 0']
    loop: start=0, step=1, limit=4
    $region2: #{basic_block_forward.5} parent=1 // loop_pre_header
      _
    $region3: #{basic_block_forward.5} parent=1 // loop_header
      %s10 = sphi 0, %s14
      %p11 = scmp.ge.s32.totalorder %s10, 4
      %s17 = sphi 0, %s29
      %s18 = sphi 0, %s25
      %s19 = sphi 0, %s17
      %s20 = sphi 0, %s18
      %s21 = sphi 0, %s19
      %s22 = sphi 0, %s20
      %s34 = sphi 0, %s36
      %s37 = sphi 0, %s34
      %s38 = sphi 0, %s37
      %s54 = sphi 0, %s38
      %s60 = sphi 0, %s62
      %s63 = sphi 0, %s60
      %s64 = sphi 0, %s63
      %s80 = sphi 0, %s64
      %s86 = sphi 0, %s88
      %s89 = sphi 0, %s86
      %s90 = sphi 0, %s89
      %s106 = sphi 0, %s90
      %s110 = sphi 0, %s110
      %s112 = sphi 0, %s110
      %s113 = sphi 0, %s112
      %s127 = sphi 0, %s113
      %s135 = sphi 0, %s137
      %s138 = sphi 0, %s135
      %s139 = sphi 0, %s138
      %s155 = sphi 0, %s139
    $region4: #{basic_block_forward.5} parent=1 // loop_header_branch
      %13 = sbr.rel (%p11) target = $region8
    $region5: #{basic_block_forward.5} parent=1 // loop_body
      %s15 = ssub.s32 %s10, 1
      %s16 = ssub.s32 %s10, 2
      %s23 = sadd.s32 1, %s18
      %p24 = scmp.ge.s32.totalorder %s23, 1
      %s25 = scalar_select %p24, 0, %s23
      %s26 = sadd.s32 1, %s17
      %s27 = scalar_select %p24, %s26, %s17
      %p28 = scmp.ge.s32.totalorder %s27, 2
      %s29 = scalar_select %p28, 0, %s27
      %s30 = ssub.s32 %s17, %s29
      %s31 = ssub.s32 %s18, %s25
      %s32 = sor.u32 %s30, %s31
      %p33 = scmp.eq.s32.totalorder %s32, 0
      %s35 = sadd.s32 %s34, 1
      %s36 = scalar_select %p33, %s34, %s35
      %p39 = pneg %p33
      %p40 = scmp.eq.s32.totalorder %s10, 1
      %p41 = por %p39, %p40
      %p42 = scmp.ne.s32.totalorder %s34, %s37
      %p43 = scmp.eq.s32.totalorder %s10, 0
      %p44 = por %p42, %p43
      %p45 = scmp.ne.s32.totalorder %s34, %s37
      %p46 = scmp.eq.s32.totalorder %s15, 1
      %p47 = por %p45, %p46
      %p48 = scmp.ne.s32.totalorder %s37, %s38
      %p49 = scmp.eq.s32.totalorder %s15, 0
      %p50 = por %p48, %p49
      %p51 = scmp.ne.s32.totalorder %s37, %s38
      %p52 = scmp.eq.s32.totalorder %s16, 1
      %p53 = por %p51, %p52
      %p55 = scmp.ne.s32.totalorder %s38, %s54
      %p56 = scmp.eq.s32.totalorder %s16, 0
      %p57 = por %p55, %p56
      %s58 = ssub.s32 %s18, %s25
      %p59 = scmp.eq.s32.totalorder %s58, 0
      %s61 = sadd.s32 %s60, 1
      %s62 = scalar_select %p59, %s60, %s61
      %p65 = pneg %p59
      %p66 = scmp.eq.s32.totalorder %s10, 1
      %p67 = por %p65, %p66
      %p68 = scmp.ne.s32.totalorder %s60, %s63
      %p69 = scmp.eq.s32.totalorder %s10, 0
      %p70 = por %p68, %p69
      %p71 = scmp.ne.s32.totalorder %s60, %s63
      %p72 = scmp.eq.s32.totalorder %s15, 1
      %p73 = por %p71, %p72
      %p74 = scmp.ne.s32.totalorder %s63, %s64
      %p75 = scmp.eq.s32.totalorder %s15, 0
      %p76 = por %p74, %p75
      %p77 = scmp.ne.s32.totalorder %s63, %s64
      %p78 = scmp.eq.s32.totalorder %s16, 1
      %p79 = por %p77, %p78
      %p81 = scmp.ne.s32.totalorder %s64, %s80
      %p82 = scmp.eq.s32.totalorder %s16, 0
      %p83 = por %p81, %p82
      %s84 = ssub.s32 %s18, %s25
      %p85 = scmp.eq.s32.totalorder %s84, 0
      %s87 = sadd.s32 %s86, 1
      %s88 = scalar_select %p85, %s86, %s87
      %p91 = pneg %p85
      %p92 = scmp.eq.s32.totalorder %s10, 1
      %p93 = por %p91, %p92
      %p94 = scmp.ne.s32.totalorder %s86, %s89
      %p95 = scmp.eq.s32.totalorder %s10, 0
      %p96 = por %p94, %p95
      %p97 = scmp.ne.s32.totalorder %s86, %s89
      %p98 = scmp.eq.s32.totalorder %s15, 1
      %p99 = por %p97, %p98
      %p100 = scmp.ne.s32.totalorder %s89, %s90
      %p101 = scmp.eq.s32.totalorder %s15, 0
      %p102 = por %p100, %p101
      %p103 = scmp.ne.s32.totalorder %s89, %s90
      %p104 = scmp.eq.s32.totalorder %s16, 1
      %p105 = por %p103, %p104
      %p107 = scmp.ne.s32.totalorder %s90, %s106
      %p108 = scmp.eq.s32.totalorder %s16, 0
      %p109 = por %p107, %p108
      %s111 = sadd.s32 %s110, 1
      %p114 = scmp.eq.s32.totalorder %s10, 1
      %p115 = scmp.ne.s32.totalorder %s110, %s112
      %p116 = scmp.eq.s32.totalorder %s10, 0
      %p117 = por %p115, %p116
      %p118 = scmp.ne.s32.totalorder %s110, %s112
      %p119 = scmp.eq.s32.totalorder %s15, 1
      %p120 = por %p118, %p119
      %p121 = scmp.ne.s32.totalorder %s112, %s113
      %p122 = scmp.eq.s32.totalorder %s15, 0
      %p123 = por %p121, %p122
      %p124 = scmp.ne.s32.totalorder %s112, %s113
      %p125 = scmp.eq.s32.totalorder %s16, 1
      %p126 = por %p124, %p125
      %p128 = scmp.ne.s32.totalorder %s113, %s127
      %p129 = scmp.eq.s32.totalorder %s16, 0
      %p130 = por %p128, %p129
      %s131 = ssub.s32 %s17, %s29
      %s132 = ssub.s32 %s18, %s25
      %s133 = sor.u32 %s131, %s132
      %p134 = scmp.eq.s32.totalorder %s133, 0
      %s136 = sadd.s32 %s135, 1
      %s137 = scalar_select %p134, %s135, %s136
      %p140 = pneg %p134
      %p141 = scmp.eq.s32.totalorder %s10, 1
      %p142 = por %p140, %p141
      %p143 = scmp.ne.s32.totalorder %s135, %s138
      %p144 = scmp.eq.s32.totalorder %s10, 0
      %p145 = por %p143, %p144
      %p146 = scmp.ne.s32.totalorder %s135, %s138
      %p147 = scmp.eq.s32.totalorder %s15, 1
      %p148 = por %p146, %p147
      %p149 = scmp.ne.s32.totalorder %s138, %s139
      %p150 = scmp.eq.s32.totalorder %s15, 0
      %p151 = por %p149, %p150
      %p152 = scmp.ne.s32.totalorder %s138, %s139
      %p153 = scmp.eq.s32.totalorder %s16, 1
      %p154 = por %p152, %p153
      %p156 = scmp.ne.s32.totalorder %s139, %s155
      %p157 = scmp.eq.s32.totalorder %s16, 0
      %p158 = por %p156, %p157
      %p159 = scmp.le.s32.totalorder 1, %s10
      %p160 = scmp.lt.s32.totalorder %s10, 3
      %p161 = pnand %p159, %p160
      %p162 = pneg %p161
      // Predicated region
      $region9: #{basic_block_forward.5} parent=5 // pred_check
        _
      $region10: #{basic_block_forward.5} parent=5 // pred_check_branch
        %164 = sbr.rel (%p161) target = $region12
      $region11: #{basic_block_forward.5} parent=5 // pred_region
        %s165 = ssub.s32 %s10, 1
        // Predicated region
        $region13: #{basic_block_forward.5} parent=11 // pred_check
          %p166 = pneg %p76
        $region14: #{basic_block_forward.5} parent=11 // pred_check_branch
          %168 = sbr.rel (%p166) target = $region16
        $region15: #{basic_block_forward.5} parent=11 // pred_region
          %p169 = scmp.lt.s32.totalorder %s20, 0
          %s170 = scalar_select %p169, %s20, 0
          %s171 = smul.addr %s170, 4
          %s172 = scalar_lea.vmem %s1, %s171
        $region16: #{basic_block_forward.5} parent=11 // pred_fallthru
          _
        // Predicated region
        $region17: #{basic_block_forward.5} parent=11 // pred_check
          %p173 = pneg %p102
        $region18: #{basic_block_forward.5} parent=11 // pred_check_branch
          %175 = sbr.rel (%p173) target = $region20
        $region19: #{basic_block_forward.5} parent=11 // pred_region
          %p176 = scmp.lt.s32.totalorder %s20, 0
          %s177 = scalar_select %p176, %s20, 0
          %s178 = smul.addr %s177, 4
          %s179 = scalar_lea.vmem %s2, %s178
        $region20: #{basic_block_forward.5} parent=11 // pred_fallthru
          _
        // Predicated region
        $region21: #{basic_block_forward.5} parent=11 // pred_check
          %p180 = pneg %p123
        $region22: #{basic_block_forward.5} parent=11 // pred_check_branch
          %182 = sbr.rel (%p180) target = $region24
        $region23: #{basic_block_forward.5} parent=11 // pred_region
          _
        $region24: #{basic_block_forward.5} parent=11 // pred_fallthru
          _
      $region12: #{basic_block_forward.5} parent=5 // pred_fallthru
        _
      %p183 = scmp.lt.s32.totalorder %s10, 2
      // Predicated region
      $region25: #{basic_block_forward.5} parent=5 // pred_check
        %p184 = pneg %p183
      $region26: #{basic_block_forward.5} parent=5 // pred_check_branch
        %186 = sbr.rel (%p184) target = $region28
      $region27: #{basic_block_forward.5} parent=5 // pred_region
        // Predicated region
        $region29: #{basic_block_forward.5} parent=27 // pred_check
          %p187 = pneg %p44
        $region30: #{basic_block_forward.5} parent=27 // pred_check_branch
          %189 = sbr.rel (%p187) target = $region32
        $region31: #{basic_block_forward.5} parent=27 // pred_region
          %s190 = sand.u32 %s34, 1
          %s191 = sand.u32 %s34, 1
          %s192 = smul.addr %s191, 48
          %s193 = scalar_lea.vmem [#allocation2], %s192
          %s194 = smul.addr %s18, 3
          %s195 = smul.addr %s17, 3
          %s196 = sadd.s32 %s194, %s195
          %s197 = smul.addr %s196, 4
          %s198 = scalar_lea.vmem %s0, %s197
          // Predicated region
          $region33: #{basic_block_forward.5} parent=31 // pred_check
            _
          $region34: #{basic_block_forward.5} parent=31 // pred_check_branch
            %200 = sbr.rel (0) target = $region36
          $region35: #{basic_block_forward.5} parent=31 // pred_region
            // Predicated region
            $region37: #{basic_block_forward.5} parent=35 // pred_check
              _
            $region38: #{basic_block_forward.5} parent=35 // pred_check_branch
              %202 = sbr.rel (0) target = $region40
            $region39: #{basic_block_forward.5} parent=35 // pred_region
              %s203 = scalar_lea.vmem %s198, 8
              %s204 = scalar_lea.vmem %s193, 8 [#allocation2]
              loop: start=0, step=1, limit=1
              $region41: #{basic_block_forward.5} parent=39 // loop_pre_header
                _
              $region42: #{basic_block_forward.5} parent=39 // loop_header
                %s206 = sphi 0, %s210
                %p207 = scmp.ge.s32.totalorder %s206, 1
                %s211 = sphi %s198, %s198
                %s212 = sphi %s193, %s193
              $region43: #{basic_block_forward.5} parent=39 // loop_header_branch
                %209 = sbr.rel (%p207) target = $region47
              $region44: #{basic_block_forward.5} parent=39 // loop_body
                %v213 = vld [vmem:[%s211] sm:$0xff]
                %214 = vst [vmem:[%s212] sm:$0xff] %v213
                %v215 = vld [vmem:[%s211 + $0x18] sm:$0xff]
                %216 = vst [vmem:[%s212 + $0xc] sm:$0xff] %v215
                %v217 = vld [vmem:[%s211 + $0x30] sm:$0xff]
                %218 = vst [vmem:[%s212 + $0x18] sm:$0xff] %v217
                %v219 = vld [vmem:[%s211 + $0x48] sm:$0xff]
                %220 = vst [vmem:[%s212 + $0x24] sm:$0xff] %v219
              $region45: #{basic_block_forward.5} parent=39 // loop_footer
                %s210 = sadd.s32 1, %s206
              $region46: #{basic_block_forward.5} parent=39 // loop_footer_branch
                %205 = sbr.rel target = $region42
              $region47: #{basic_block_forward.5} parent=39 // loop_exit
                _
              %s222 = ssub.s32 16, 1
              loop: start=0, step=1, limit=1
              $region48: #{basic_block_forward.5} parent=39 // loop_pre_header
                _
              $region49: #{basic_block_forward.5} parent=39 // loop_header
                %s224 = sphi 0, %s228
                %p225 = scmp.ge.s32.totalorder %s224, 1
                %s229 = sphi %s203, %s203
                %s230 = sphi %s204, %s204
              $region50: #{basic_block_forward.5} parent=39 // loop_header_branch
                %227 = sbr.rel (%p225) target = $region54
              $region51: #{basic_block_forward.5} parent=39 // loop_body
                %v231 = vld [vmem:[%s229] sm:%s222]
                %232 = vst [vmem:[%s230] sm:%s222] %v231
                %v233 = vld [vmem:[%s229 + $0x18] sm:%s222]
                %234 = vst [vmem:[%s230 + $0xc] sm:%s222] %v233
                %v235 = vld [vmem:[%s229 + $0x30] sm:%s222]
                %236 = vst [vmem:[%s230 + $0x18] sm:%s222] %v235
                %v237 = vld [vmem:[%s229 + $0x48] sm:%s222]
                %238 = vst [vmem:[%s230 + $0x24] sm:%s222] %v237
              $region52: #{basic_block_forward.5} parent=39 // loop_footer
                %s228 = sadd.s32 1, %s224
              $region53: #{basic_block_forward.5} parent=39 // loop_footer_branch
                %223 = sbr.rel target = $region49
              $region54: #{basic_block_forward.5} parent=39 // loop_exit
                _
            $region40: #{basic_block_forward.5} parent=35 // pred_fallthru
              _
          $region36: #{basic_block_forward.5} parent=31 // pred_fallthru
            _
          %239 = vnop
        $region32: #{basic_block_forward.5} parent=27 // pred_fallthru
          _
      $region28: #{basic_block_forward.5} parent=5 // pred_fallthru
        _
      %p240 = scmp.le.s32.totalorder 1, %s10
      %p241 = scmp.lt.s32.totalorder %s10, 3
      %p242 = pnand %p240, %p241
      %p243 = pneg %p242
      // Predicated region
      $region55: #{basic_block_forward.5} parent=5 // pred_check
        _
      $region56: #{basic_block_forward.5} parent=5 // pred_check_branch
        %245 = sbr.rel (%p242) target = $region58
      $region57: #{basic_block_forward.5} parent=5 // pred_region
        %s246 = ssub.s32 %s10, 1
        %s247 = sand.u32 %s37, 1
        %s248 = sand.u32 %s37, 1
        %s249 = smul.addr %s248, 48
        %s250 = scalar_lea.vmem [#allocation2], %s249
        // Predicated region
        $region59: #{basic_block_forward.5} parent=57 // pred_check
          %p251 = pneg %p50
        $region60: #{basic_block_forward.5} parent=57 // pred_check_branch
          %253 = sbr.rel (%p251) target = $region62
        $region61: #{basic_block_forward.5} parent=57 // pred_region
          _
        $region62: #{basic_block_forward.5} parent=57 // pred_fallthru
          _
        %s254 = sand.u32 %s37, 1
        %s255 = sand.u32 %s37, 1
        %s256 = smul.addr %s255, 48
        %s257 = scalar_lea.vmem [#allocation2], %s256
        %p258 = pneg %p50
        %p259 = pneg %p47
        %p260 = scmp.lt.s32.totalorder %s20, 0
        %s261 = scalar_select %p260, %s20, 0
        %s262 = smul.addr %s261, 4
        %s263 = scalar_lea.vmem %s1, %s262
        %p264 = pneg %p76
        %p265 = pneg %p73
        %p266 = scmp.lt.s32.totalorder %s20, 0
        %s267 = scalar_select %p266, %s20, 0
        %s268 = smul.addr %s267, 4
        %s269 = scalar_lea.vmem %s2, %s268
        %p270 = pneg %p102
        %p271 = pneg %p99
        %p272 = pneg %p123
        %p273 = pneg %p120
        %p274 = pneg %p151
        %p275 = pneg %p148
        %s276 = sand.u32 %s138, 1
        %s277 = sand.u32 %s138, 1
        %s278 = smul.addr %s277, 24
        %s279 = scalar_lea.vmem [#allocation3], %s278
        %p280 = scmp.lt.s32.totalorder %s20, 0
        %s281 = scalar_select %p280, %s20, 0
        %s282 = smul.addr %s281, 4
        %s283 = scalar_lea.vmem %s1, %s282
        %p284 = scmp.lt.s32.totalorder %s20, 0
        %s285 = scalar_select %p284, %s20, 0
        %s286 = smul.addr %s285, 4
        %s287 = scalar_lea.vmem %s2, %s286
        %v288 = vld [vmem:[%s283] sm:$0xf]
        %v289 = vld [vmem:[%s287] sm:$0xf]
        %v290 = vld [vmem:[%s3] sm:$0x7]
        %v291 = vld [vmem:[%s250] sm:$0xff]
        %v292 = vld [vmem:[%s250 + $0x8] sm:$0xf]
        %294 = vset.pattern.permute.xlu0 0
        %295 = vperm.xlu0 %294, %v288
        %v296 = vpop.permute.xlu0 %295
        %v298 = vunpack.c.l.s4 839922192
        %v299 = vunpack.c.0.s8 %v298
        %v300 = vperm.slane %v296, %v299
        %v302 = vmul.f32 %v291, %v300
        %v303 = vmul.f32 %v292, %v300
        %305 = vset.pattern.permute.xlu0 0
        %306 = vperm.xlu0 %305, %v289
        %v307 = vpop.permute.xlu0 %306
        %v309 = vunpack.c.l.s4 839922192
        %v310 = vunpack.c.0.s8 %v309
        %v311 = vperm.slane %v307, %v310
        %v313 = vadd.f32 %v302, %v311
        %v314 = vadd.f32 %v303, %v311
        %v315 = vadd.f32 %v313, 0.0
        %v316 = vadd.f32 %v314, 0.0
        %vm317 = vcmp.ge.f32.partialorder %v315, 1.0
        %vm318 = vcmp.ge.f32.partialorder %v316, 1.0
        %v319 = vsel %vm317, 1, 0
        %v320 = vsel %vm318, 1, 0
        %v321 = vcvt.s32.f32 %v319
        %v322 = vcvt.s32.f32 %v320
        %v324 = vperm.slane %v290, 0
        %v325 = vperm.slane %v290, 1
        %v326 = vperm.slane %v290, 2
        %v328 = vrot.slane %v325, 4
        %vm329 = vcmask 1043456
        %v330 = vsel %vm329, %v324, %v328
        %v332 = vmul.f32 %v321, %v330
        %v333 = vmul.f32 %v322, %v326
        %336 = vst [vmem:[#allocation1] ss:$2 sm:$0xff] %v332
        %s337 = scalar_lea.vmem [#allocation1], 16
        %338 = vst [vmem:[%s337] ss:$2 sm:$0xff] %v333
        %v339 = vld.sshfl [vmem:[#allocation1] sm:$0xff pattern:$0x75316420]
        %v340 = vld.sshfl [vmem:[#allocation1 + $0x8] sm:$0xff pattern:$0x75316420]
        %v341 = vld.sshfl [vmem:[#allocation1 + $0x10] sm:$0xff pattern:$0x75316420]
        %v345 = vpack.c.bf16 %v340, %v339
        %v346 = vpack.c.bf16 %v341, %v341
        %v349 = vrot.slane %v345, 2
        %v350 = vrot.slane %v346, 4
        %v351 = vrot.slane %v346, 6
        %vm352 = vcmask 1041408
        %v355 = vsel %vm352, %v345, %v349
        %vm356 = vcmask 1045508
        %v359 = vsel %vm356, %v350, %v351
        %v360 = vsel %vm329, %v355, %v359
        %362 = vst [vmem:[%s279] sm:$0x3f] %v360
        %v363 = vsub.f32 1.0, %v321
        %v364 = vsub.f32 1.0, %v322
        %v365 = vmul.f32 %v315, %v363
        %v366 = vmul.f32 %v316, %v364
        %s367 = scalar_lea.vmem %s250, 12 [#allocation2]
        %v368 = vld [vmem:[%s367] sm:$0xff]
        %v369 = vld [vmem:[%s367 + $0x8] sm:$0xf]
        %v370 = vmul.f32 %v368, %v300
        %v371 = vmul.f32 %v369, %v300
        %v372 = vadd.f32 %v370, %v311
        %v373 = vadd.f32 %v371, %v311
        %v374 = vmul.f32 %v365, 0.5
        %v375 = vmul.f32 %v366, 0.5
        %v376 = vadd.f32 %v374, %v372
        %v377 = vadd.f32 %v375, %v373
        %vm378 = vcmp.ge.f32.partialorder %v376, 1.0
        %vm379 = vcmp.ge.f32.partialorder %v377, 1.0
        %v380 = vsel %vm378, 1, 0
        %v381 = vsel %vm379, 1, 0
        %v382 = vcvt.s32.f32 %v380
        %v383 = vcvt.s32.f32 %v381
        %v384 = vmul.f32 %v382, %v330
        %v385 = vmul.f32 %v383, %v326
        %388 = vst [vmem:[#allocation1] ss:$2 sm:$0xff] %v384
        %s389 = scalar_lea.vmem [#allocation1], 16
        %390 = vst [vmem:[%s389] ss:$2 sm:$0xff] %v385
        %v391 = vld.sshfl [vmem:[#allocation1] sm:$0xff pattern:$0x75316420]
        %v392 = vld.sshfl [vmem:[#allocation1 + $0x8] sm:$0xff pattern:$0x75316420]
        %v393 = vld.sshfl [vmem:[#allocation1 + $0x10] sm:$0xff pattern:$0x75316420]
        %v397 = vpack.c.bf16 %v392, %v391
        %v398 = vpack.c.bf16 %v393, %v393
        %v401 = vrot.slane %v397, 2
        %v402 = vrot.slane %v398, 4
        %v403 = vrot.slane %v398, 6
        %v406 = vsel %vm352, %v397, %v401
        %v409 = vsel %vm356, %v402, %v403
        %v410 = vsel %vm329, %v406, %v409
        %s412 = scalar_lea.vmem %s279, 6 [#allocation3]
        %413 = vst [vmem:[%s412] sm:$0x3f] %v410
        %v414 = vsub.f32 1.0, %v382
        %v415 = vsub.f32 1.0, %v383
        %v416 = vmul.f32 %v376, %v414
        %v417 = vmul.f32 %v377, %v415
        %s418 = scalar_lea.vmem %s250, 24 [#allocation2]
        %v419 = vld [vmem:[%s418] sm:$0xff]
        %v420 = vld [vmem:[%s418 + $0x8] sm:$0xf]
        %v421 = vmul.f32 %v419, %v300
        %v422 = vmul.f32 %v420, %v300
        %v423 = vadd.f32 %v421, %v311
        %v424 = vadd.f32 %v422, %v311
        %v425 = vmul.f32 %v416, 0.5
        %v426 = vmul.f32 %v417, 0.5
        %v427 = vadd.f32 %v425, %v423
        %v428 = vadd.f32 %v426, %v424
        %vm429 = vcmp.ge.f32.partialorder %v427, 1.0
        %vm430 = vcmp.ge.f32.partialorder %v428, 1.0
        %v431 = vsel %vm429, 1, 0
        %v432 = vsel %vm430, 1, 0
        %v433 = vcvt.s32.f32 %v431
        %v434 = vcvt.s32.f32 %v432
        %v435 = vmul.f32 %v433, %v330
        %v436 = vmul.f32 %v434, %v326
        %439 = vst [vmem:[#allocation1] ss:$2 sm:$0xff] %v435
        %s440 = scalar_lea.vmem [#allocation1], 16
        %441 = vst [vmem:[%s440] ss:$2 sm:$0xff] %v436
        %v442 = vld.sshfl [vmem:[#allocation1] sm:$0xff pattern:$0x75316420]
        %v443 = vld.sshfl [vmem:[#allocation1 + $0x8] sm:$0xff pattern:$0x75316420]
        %v444 = vld.sshfl [vmem:[#allocation1 + $0x10] sm:$0xff pattern:$0x75316420]
        %v448 = vpack.c.bf16 %v443, %v442
        %v449 = vpack.c.bf16 %v444, %v444
        %v452 = vrot.slane %v448, 2
        %v453 = vrot.slane %v449, 4
        %v454 = vrot.slane %v449, 6
        %v457 = vsel %vm352, %v448, %v452
        %v460 = vsel %vm356, %v453, %v454
        %v461 = vsel %vm329, %v457, %v460
        %s463 = scalar_lea.vmem %s279, 12 [#allocation3]
        %464 = vst [vmem:[%s463] sm:$0x3f] %v461
        %v465 = vsub.f32 1.0, %v433
        %v466 = vsub.f32 1.0, %v434
        %v467 = vmul.f32 %v427, %v465
        %v468 = vmul.f32 %v428, %v466
        %s469 = scalar_lea.vmem %s250, 36 [#allocation2]
        %v470 = vld [vmem:[%s469] sm:$0xff]
        %v471 = vld [vmem:[%s469 + $0x8] sm:$0xf]
        %v472 = vmul.f32 %v470, %v300
        %v473 = vmul.f32 %v471, %v300
        %v474 = vadd.f32 %v472, %v311
        %v475 = vadd.f32 %v473, %v311
        %v476 = vmul.f32 %v467, 0.5
        %v477 = vmul.f32 %v468, 0.5
        %v478 = vadd.f32 %v476, %v474
        %v479 = vadd.f32 %v477, %v475
        %vm480 = vcmp.ge.f32.partialorder %v478, 1.0
        %vm481 = vcmp.ge.f32.partialorder %v479, 1.0
        %v482 = vsel %vm480, 1, 0
        %v483 = vsel %vm481, 1, 0
        %v484 = vcvt.s32.f32 %v482
        %v485 = vcvt.s32.f32 %v483
        %v486 = vmul.f32 %v484, %v330
        %v487 = vmul.f32 %v485, %v326
        %490 = vst [vmem:[#allocation1] ss:$2 sm:$0xff] %v486
        %s491 = scalar_lea.vmem [#allocation1], 16
        %492 = vst [vmem:[%s491] ss:$2 sm:$0xff] %v487
        %v493 = vld.sshfl [vmem:[#allocation1] sm:$0xff pattern:$0x75316420]
        %v494 = vld.sshfl [vmem:[#allocation1 + $0x8] sm:$0xff pattern:$0x75316420]
        %v495 = vld.sshfl [vmem:[#allocation1 + $0x10] sm:$0xff pattern:$0x75316420]
        %v499 = vpack.c.bf16 %v494, %v493
        %v500 = vpack.c.bf16 %v495, %v495
        %v503 = vrot.slane %v499, 2
        %v504 = vrot.slane %v500, 4
        %v505 = vrot.slane %v500, 6
        %v508 = vsel %vm352, %v499, %v503
        %v511 = vsel %vm356, %v504, %v505
        %v512 = vsel %vm329, %v508, %v511
        %s514 = scalar_lea.vmem %s279, 18 [#allocation3]
        %515 = vst [vmem:[%s514] sm:$0x3f] %v512
        %s516 = sand.u32 %s138, 1
        %s517 = sand.u32 %s138, 1
        %s518 = smul.addr %s517, 24
        %s519 = scalar_lea.vmem [#allocation3], %s518
        // Predicated region
        $region63: #{basic_block_forward.5} parent=57 // pred_check
          %p520 = pneg %p148
        $region64: #{basic_block_forward.5} parent=57 // pred_check_branch
          %522 = sbr.rel (%p520) target = $region66
        $region65: #{basic_block_forward.5} parent=57 // pred_region
          %s523 = smul.addr %s20, 3
          %s524 = smul.addr %s19, 3
          %s525 = sadd.s32 %s523, %s524
          %s526 = smul.addr %s525, 2
          %s527 = scalar_lea.vmem %s4, %s526
          // Predicated region
          $region67: #{basic_block_forward.5} parent=65 // pred_check
            _
          $region68: #{basic_block_forward.5} parent=65 // pred_check_branch
            %529 = sbr.rel (0) target = $region70
          $region69: #{basic_block_forward.5} parent=65 // pred_region
            // Predicated region
            $region71: #{basic_block_forward.5} parent=69 // pred_check
              _
            $region72: #{basic_block_forward.5} parent=69 // pred_check_branch
              %531 = sbr.rel target = $region74
            $region73: #{basic_block_forward.5} parent=69 // pred_region
              // Predicated region
              $region86: #{basic_block_forward.5} parent=73 // pred_check
                _
              $region87: #{basic_block_forward.5} parent=73 // pred_check_branch
                %553 = sbr.rel (0) target = $region89
              $region88: #{basic_block_forward.5} parent=73 // pred_region
                loop: start=0, step=1, limit=1
                $region90: #{basic_block_forward.5} parent=88 // loop_pre_header
                  _
                $region91: #{basic_block_forward.5} parent=88 // loop_header
                  %s555 = sphi 0, %s559
                  %p556 = scmp.ge.s32.totalorder %s555, 1
                  %s560 = sphi %s519, %s519
                  %s561 = sphi %s527, %s527
                $region92: #{basic_block_forward.5} parent=88 // loop_header_branch
                  %558 = sbr.rel (%p556) target = $region96
                $region93: #{basic_block_forward.5} parent=88 // loop_body
                  _
                $region94: #{basic_block_forward.5} parent=88 // loop_footer
                  %s559 = sadd.s32 1, %s555
                $region95: #{basic_block_forward.5} parent=88 // loop_footer_branch
                  %554 = sbr.rel target = $region91
                $region96: #{basic_block_forward.5} parent=88 // loop_exit
                  _
                %s563 = ssub.s32 64, 1
                loop: start=0, step=1, limit=1
                $region97: #{basic_block_forward.5} parent=88 // loop_pre_header
                  _
                $region98: #{basic_block_forward.5} parent=88 // loop_header
                  %s565 = sphi 0, %s569
                  %p566 = scmp.ge.s32.totalorder %s565, 1
                  %s570 = sphi %s519, %s519
                  %s571 = sphi %s527, %s527
                $region99: #{basic_block_forward.5} parent=88 // loop_header_branch
                  %568 = sbr.rel (%p566) target = $region103
                $region100: #{basic_block_forward.5} parent=88 // loop_body
                  %v572 = vld [vmem:[%s570] sm:%s563]
                  %573 = vst [vmem:[%s571] sm:%s563] %v572
                  %v574 = vld [vmem:[%s570 + $0x6] sm:%s563]
                  %575 = vst [vmem:[%s571 + $0xc] sm:%s563] %v574
                  %v576 = vld [vmem:[%s570 + $0xc] sm:%s563]
                  %577 = vst [vmem:[%s571 + $0x18] sm:%s563] %v576
                  %v578 = vld [vmem:[%s570 + $0x12] sm:%s563]
                  %579 = vst [vmem:[%s571 + $0x24] sm:%s563] %v578
                $region101: #{basic_block_forward.5} parent=88 // loop_footer
                  %s569 = sadd.s32 1, %s565
                $region102: #{basic_block_forward.5} parent=88 // loop_footer_branch
                  %564 = sbr.rel target = $region98
                $region103: #{basic_block_forward.5} parent=88 // loop_exit
                  _
              $region89: #{basic_block_forward.5} parent=73 // pred_fallthru
                _
            $region74: #{basic_block_forward.5} parent=69 // pred_fallthru
              _
            // Predicated region
            $region75: #{basic_block_forward.5} parent=69 // pred_check
              _
            $region76: #{basic_block_forward.5} parent=69 // pred_check_branch
              %533 = sbr.rel (0) target = $region78
            $region77: #{basic_block_forward.5} parent=69 // pred_region
              %s535 = ssub.s32 64, 1
              loop: start=0, step=1, limit=1
              $region79: #{basic_block_forward.5} parent=77 // loop_pre_header
                _
              $region80: #{basic_block_forward.5} parent=77 // loop_header
                %s537 = sphi 0, %s541
                %p538 = scmp.ge.s32.totalorder %s537, 1
                %s542 = sphi %s519, %s519
                %s543 = sphi %s527, %s527
              $region81: #{basic_block_forward.5} parent=77 // loop_header_branch
                %540 = sbr.rel (%p538) target = $region85
              $region82: #{basic_block_forward.5} parent=77 // loop_body
                %v544 = vld [vmem:[%s542] sm:%s535]
                %545 = vst [vmem:[%s543] sm:%s535] %v544
                %v546 = vld [vmem:[%s542 + $0x6] sm:%s535]
                %547 = vst [vmem:[%s543 + $0xc] sm:%s535] %v546
                %v548 = vld [vmem:[%s542 + $0xc] sm:%s535]
                %549 = vst [vmem:[%s543 + $0x18] sm:%s535] %v548
                %v550 = vld [vmem:[%s542 + $0x12] sm:%s535]
                %551 = vst [vmem:[%s543 + $0x24] sm:%s535] %v550
              $region83: #{basic_block_forward.5} parent=77 // loop_footer
                %s541 = sadd.s32 1, %s537
              $region84: #{basic_block_forward.5} parent=77 // loop_footer_branch
                %536 = sbr.rel target = $region80
              $region85: #{basic_block_forward.5} parent=77 // loop_exit
                _
            $region78: #{basic_block_forward.5} parent=69 // pred_fallthru
              _
          $region70: #{basic_block_forward.5} parent=65 // pred_fallthru
            _
          %580 = vnop
        $region66: #{basic_block_forward.5} parent=57 // pred_fallthru
          _
      $region58: #{basic_block_forward.5} parent=5 // pred_fallthru
        _
      %p581 = scmp.le.s32.totalorder 2, %s10
      // Predicated region
      $region104: #{basic_block_forward.5} parent=5 // pred_check
        %p582 = pneg %p581
      $region105: #{basic_block_forward.5} parent=5 // pred_check_branch
        %584 = sbr.rel (%p582) target = $region107
      $region106: #{basic_block_forward.5} parent=5 // pred_region
        %s585 = ssub.s32 %s10, 2
        // Predicated region
        $region108: #{basic_block_forward.5} parent=106 // pred_check
          %p586 = pneg %p154
        $region109: #{basic_block_forward.5} parent=106 // pred_check_branch
          %588 = sbr.rel (%p586) target = $region111
        $region110: #{basic_block_forward.5} parent=106 // pred_region
          %s589 = sand.u32 %s139, 1
          %s590 = sand.u32 %s139, 1
          %s591 = smul.addr %s590, 24
          %s592 = scalar_lea.vmem [#allocation3], %s591
        $region111: #{basic_block_forward.5} parent=106 // pred_fallthru
          _
      $region107: #{basic_block_forward.5} parent=5 // pred_fallthru
        _
    $region6: #{basic_block_forward.5} parent=1 // loop_footer
      %s14 = sadd.s32 1, %s10
    $region7: #{basic_block_forward.5} parent=1 // loop_footer_branch
      %9 = sbr.rel target = $region3
    $region8: #{basic_block_forward.5} parent=1 // loop_exit
      _

// kernel: basic_block_forward.7
$region0: #{basic_block_forward.7}
  #allocation0 [shape = 'u32[]', space=smem, size = 0x4, offset = 0x4, fixed_abs, tag = 'smem constant byte address 0x4 - core index']
  #allocation1 [shape = 'u32[72,128]{1,0:T(1,128)}', space=vmem, size = 0x9000, scoped, tag = 'internal scratch']
  %s0 = inlined_call_operand.vmem [shape: f32[4,2,4,384], index: 0, kind: input, shape index: {}]
  %s1 = inlined_call_operand.vmem [shape: f32[4,2,4,384], index: 1, kind: input, shape index: {}]
  %s2 = inlined_call_operand.vmem [shape: f32[4,1], index: 2, kind: input, shape index: {}]
  %s3 = inlined_call_operand.vmem [shape: f32[4,1], index: 3, kind: input, shape index: {}]
  %s4 = inlined_call_operand.vmem [shape: f32[1,384], index: 4, kind: input, shape index: {}]
  %s5 = inlined_call_operand.vmem [shape: bf16[4,2,4,384], index: 5, kind: output, shape index: {}]
  %s6 = sld [smem:[#allocation0]]
  $region142: #{basic_block_forward.7} parent=0
    _
  %s8 = ssub.s32 1, %s6
  %s9 = scalar_select 0, %s8, %s6
  $region1: #{basic_block_forward.7} parent=0
    #allocation2 [shape = 'u8[49152]{0}', space=vmem, size = 0xc000, scoped, tag = 'input window, operand 0']
    #allocation3 [shape = 'u8[49152]{0}', space=vmem, size = 0xc000, scoped, tag = 'input window, operand 1']
    #allocation4 [shape = 'u8[24576]{0}', space=vmem, size = 0x6000, scoped, tag = 'output window, operand 0']
    loop: start=0, step=1, limit=4
    $region2: #{basic_block_forward.7} parent=1 // loop_pre_header
      _
    $region3: #{basic_block_forward.7} parent=1 // loop_header
      %s11 = sphi 0, %s15
      %p12 = scmp.ge.s32.totalorder %s11, 4
      %s18 = sphi 0, %s30
      %s19 = sphi 0, %s26
      %s20 = sphi 0, %s18
      %s21 = sphi 0, %s19
      %s22 = sphi 0, %s20
      %s23 = sphi 0, %s21
      %s35 = sphi 0, %s37
      %s38 = sphi 0, %s35
      %s39 = sphi 0, %s38
      %s55 = sphi 0, %s39
      %s63 = sphi 0, %s65
      %s66 = sphi 0, %s63
      %s67 = sphi 0, %s66
      %s83 = sphi 0, %s67
      %s89 = sphi 0, %s91
      %s92 = sphi 0, %s89
      %s93 = sphi 0, %s92
      %s109 = sphi 0, %s93
      %s115 = sphi 0, %s117
      %s118 = sphi 0, %s115
      %s119 = sphi 0, %s118
      %s135 = sphi 0, %s119
      %s139 = sphi 0, %s139
      %s141 = sphi 0, %s139
      %s142 = sphi 0, %s141
      %s156 = sphi 0, %s142
      %s164 = sphi 0, %s166
      %s167 = sphi 0, %s164
      %s168 = sphi 0, %s167
      %s184 = sphi 0, %s168
    $region4: #{basic_block_forward.7} parent=1 // loop_header_branch
      %14 = sbr.rel (%p12) target = $region8
    $region5: #{basic_block_forward.7} parent=1 // loop_body
      %s16 = ssub.s32 %s11, 1
      %s17 = ssub.s32 %s11, 2
      %s24 = sadd.s32 1, %s19
      %p25 = scmp.ge.s32.totalorder %s24, 1
      %s26 = scalar_select %p25, 0, %s24
      %s27 = sadd.s32 1, %s18
      %s28 = scalar_select %p25, %s27, %s18
      %p29 = scmp.ge.s32.totalorder %s28, 2
      %s30 = scalar_select %p29, 0, %s28
      %s31 = ssub.s32 %s18, %s30
      %s32 = ssub.s32 %s19, %s26
      %s33 = sor.u32 %s31, %s32
      %p34 = scmp.eq.s32.totalorder %s33, 0
      %s36 = sadd.s32 %s35, 1
      %s37 = scalar_select %p34, %s35, %s36
      %p40 = pneg %p34
      %p41 = scmp.eq.s32.totalorder %s11, 1
      %p42 = por %p40, %p41
      %p43 = scmp.ne.s32.totalorder %s35, %s38
      %p44 = scmp.eq.s32.totalorder %s11, 0
      %p45 = por %p43, %p44
      %p46 = scmp.ne.s32.totalorder %s35, %s38
      %p47 = scmp.eq.s32.totalorder %s16, 1
      %p48 = por %p46, %p47
      %p49 = scmp.ne.s32.totalorder %s38, %s39
      %p50 = scmp.eq.s32.totalorder %s16, 0
      %p51 = por %p49, %p50
      %p52 = scmp.ne.s32.totalorder %s38, %s39
      %p53 = scmp.eq.s32.totalorder %s17, 1
      %p54 = por %p52, %p53
      %p56 = scmp.ne.s32.totalorder %s39, %s55
      %p57 = scmp.eq.s32.totalorder %s17, 0
      %p58 = por %p56, %p57
      %s59 = ssub.s32 %s18, %s30
      %s60 = ssub.s32 %s19, %s26
      %s61 = sor.u32 %s59, %s60
      %p62 = scmp.eq.s32.totalorder %s61, 0
      %s64 = sadd.s32 %s63, 1
      %s65 = scalar_select %p62, %s63, %s64
      %p68 = pneg %p62
      %p69 = scmp.eq.s32.totalorder %s11, 1
      %p70 = por %p68, %p69
      %p71 = scmp.ne.s32.totalorder %s63, %s66
      %p72 = scmp.eq.s32.totalorder %s11, 0
      %p73 = por %p71, %p72
      %p74 = scmp.ne.s32.totalorder %s63, %s66
      %p75 = scmp.eq.s32.totalorder %s16, 1
      %p76 = por %p74, %p75
      %p77 = scmp.ne.s32.totalorder %s66, %s67
      %p78 = scmp.eq.s32.totalorder %s16, 0
      %p79 = por %p77, %p78
      %p80 = scmp.ne.s32.totalorder %s66, %s67
      %p81 = scmp.eq.s32.totalorder %s17, 1
      %p82 = por %p80, %p81
      %p84 = scmp.ne.s32.totalorder %s67, %s83
      %p85 = scmp.eq.s32.totalorder %s17, 0
      %p86 = por %p84, %p85
      %s87 = ssub.s32 %s19, %s26
      %p88 = scmp.eq.s32.totalorder %s87, 0
      %s90 = sadd.s32 %s89, 1
      %s91 = scalar_select %p88, %s89, %s90
      %p94 = pneg %p88
      %p95 = scmp.eq.s32.totalorder %s11, 1
      %p96 = por %p94, %p95
      %p97 = scmp.ne.s32.totalorder %s89, %s92
      %p98 = scmp.eq.s32.totalorder %s11, 0
      %p99 = por %p97, %p98
      %p100 = scmp.ne.s32.totalorder %s89, %s92
      %p101 = scmp.eq.s32.totalorder %s16, 1
      %p102 = por %p100, %p101
      %p103 = scmp.ne.s32.totalorder %s92, %s93
      %p104 = scmp.eq.s32.totalorder %s16, 0
      %p105 = por %p103, %p104
      %p106 = scmp.ne.s32.totalorder %s92, %s93
      %p107 = scmp.eq.s32.totalorder %s17, 1
      %p108 = por %p106, %p107
      %p110 = scmp.ne.s32.totalorder %s93, %s109
      %p111 = scmp.eq.s32.totalorder %s17, 0
      %p112 = por %p110, %p111
      %s113 = ssub.s32 %s19, %s26
      %p114 = scmp.eq.s32.totalorder %s113, 0
      %s116 = sadd.s32 %s115, 1
      %s117 = scalar_select %p114, %s115, %s116
      %p120 = pneg %p114
      %p121 = scmp.eq.s32.totalorder %s11, 1
      %p122 = por %p120, %p121
      %p123 = scmp.ne.s32.totalorder %s115, %s118
      %p124 = scmp.eq.s32.totalorder %s11, 0
      %p125 = por %p123, %p124
      %p126 = scmp.ne.s32.totalorder %s115, %s118
      %p127 = scmp.eq.s32.totalorder %s16, 1
      %p128 = por %p126, %p127
      %p129 = scmp.ne.s32.totalorder %s118, %s119
      %p130 = scmp.eq.s32.totalorder %s16, 0
      %p131 = por %p129, %p130
      %p132 = scmp.ne.s32.totalorder %s118, %s119
      %p133 = scmp.eq.s32.totalorder %s17, 1
      %p134 = por %p132, %p133
      %p136 = scmp.ne.s32.totalorder %s119, %s135
      %p137 = scmp.eq.s32.totalorder %s17, 0
      %p138 = por %p136, %p137
      %s140 = sadd.s32 %s139, 1
      %p143 = scmp.eq.s32.totalorder %s11, 1
      %p144 = scmp.ne.s32.totalorder %s139, %s141
      %p145 = scmp.eq.s32.totalorder %s11, 0
      %p146 = por %p144, %p145
      %p147 = scmp.ne.s32.totalorder %s139, %s141
      %p148 = scmp.eq.s32.totalorder %s16, 1
      %p149 = por %p147, %p148
      %p150 = scmp.ne.s32.totalorder %s141, %s142
      %p151 = scmp.eq.s32.totalorder %s16, 0
      %p152 = por %p150, %p151
      %p153 = scmp.ne.s32.totalorder %s141, %s142
      %p154 = scmp.eq.s32.totalorder %s17, 1
      %p155 = por %p153, %p154
      %p157 = scmp.ne.s32.totalorder %s142, %s156
      %p158 = scmp.eq.s32.totalorder %s17, 0
      %p159 = por %p157, %p158
      %s160 = ssub.s32 %s18, %s30
      %s161 = ssub.s32 %s19, %s26
      %s162 = sor.u32 %s160, %s161
      %p163 = scmp.eq.s32.totalorder %s162, 0
      %s165 = sadd.s32 %s164, 1
      %s166 = scalar_select %p163, %s164, %s165
      %p169 = pneg %p163
      %p170 = scmp.eq.s32.totalorder %s11, 1
      %p171 = por %p169, %p170
      %p172 = scmp.ne.s32.totalorder %s164, %s167
      %p173 = scmp.eq.s32.totalorder %s11, 0
      %p174 = por %p172, %p173
      %p175 = scmp.ne.s32.totalorder %s164, %s167
      %p176 = scmp.eq.s32.totalorder %s16, 1
      %p177 = por %p175, %p176
      %p178 = scmp.ne.s32.totalorder %s167, %s168
      %p179 = scmp.eq.s32.totalorder %s16, 0
      %p180 = por %p178, %p179
      %p181 = scmp.ne.s32.totalorder %s167, %s168
      %p182 = scmp.eq.s32.totalorder %s17, 1
      %p183 = por %p181, %p182
      %p185 = scmp.ne.s32.totalorder %s168, %s184
      %p186 = scmp.eq.s32.totalorder %s17, 0
      %p187 = por %p185, %p186
      %p188 = scmp.le.s32.totalorder 1, %s11
      %p189 = scmp.lt.s32.totalorder %s11, 3
      %p190 = pnand %p188, %p189
      %p191 = pneg %p190
      // Predicated region
      $region9: #{basic_block_forward.7} parent=5 // pred_check
        _
      $region10: #{basic_block_forward.7} parent=5 // pred_check_branch
        %193 = sbr.rel (%p190) target = $region12
      $region11: #{basic_block_forward.7} parent=5 // pred_region
        %s194 = ssub.s32 %s11, 1
        // Predicated region
        $region13: #{basic_block_forward.7} parent=11 // pred_check
          %p195 = pneg %p105
        $region14: #{basic_block_forward.7} parent=11 // pred_check_branch
          %197 = sbr.rel (%p195) target = $region16
        $region15: #{basic_block_forward.7} parent=11 // pred_region
          %p198 = scmp.lt.s32.totalorder %s21, 0
          %s199 = scalar_select %p198, %s21, 0
          %s200 = smul.addr %s199, 4
          %s201 = scalar_lea.vmem %s2, %s200
        $region16: #{basic_block_forward.7} parent=11 // pred_fallthru
          _
        // Predicated region
        $region17: #{basic_block_forward.7} parent=11 // pred_check
          %p202 = pneg %p131
        $region18: #{basic_block_forward.7} parent=11 // pred_check_branch
          %204 = sbr.rel (%p202) target = $region20
        $region19: #{basic_block_forward.7} parent=11 // pred_region
          %p205 = scmp.lt.s32.totalorder %s21, 0
          %s206 = scalar_select %p205, %s21, 0
          %s207 = smul.addr %s206, 4
          %s208 = scalar_lea.vmem %s3, %s207
        $region20: #{basic_block_forward.7} parent=11 // pred_fallthru
          _
        // Predicated region
        $region21: #{basic_block_forward.7} parent=11 // pred_check
          %p209 = pneg %p152
        $region22: #{basic_block_forward.7} parent=11 // pred_check_branch
          %211 = sbr.rel (%p209) target = $region24
        $region23: #{basic_block_forward.7} parent=11 // pred_region
          _
        $region24: #{basic_block_forward.7} parent=11 // pred_fallthru
          _
      $region12: #{basic_block_forward.7} parent=5 // pred_fallthru
        _
      %p212 = scmp.lt.s32.totalorder %s11, 2
      // Predicated region
      $region25: #{basic_block_forward.7} parent=5 // pred_check
        %p213 = pneg %p212
      $region26: #{basic_block_forward.7} parent=5 // pred_check_branch
        %215 = sbr.rel (%p213) target = $region28
      $region27: #{basic_block_forward.7} parent=5 // pred_region
        // Predicated region
        $region29: #{basic_block_forward.7} parent=27 // pred_check
          %p216 = pneg %p45
        $region30: #{basic_block_forward.7} parent=27 // pred_check_branch
          %218 = sbr.rel (%p216) target = $region32
        $region31: #{basic_block_forward.7} parent=27 // pred_region
          %s219 = sand.u32 %s35, 1
          %s220 = sand.u32 %s35, 1
          %s221 = smul.addr %s220, 48
          %s222 = scalar_lea.vmem [#allocation2], %s221
          %s223 = smul.addr %s19, 3
          %s224 = smul.addr %s18, 3
          %s225 = sadd.s32 %s223, %s224
          %s226 = smul.addr %s225, 4
          %s227 = scalar_lea.vmem %s0, %s226
          // Predicated region
          $region33: #{basic_block_forward.7} parent=31 // pred_check
            _
          $region34: #{basic_block_forward.7} parent=31 // pred_check_branch
            %229 = sbr.rel (0) target = $region36
          $region35: #{basic_block_forward.7} parent=31 // pred_region
            // Predicated region
            $region37: #{basic_block_forward.7} parent=35 // pred_check
              _
            $region38: #{basic_block_forward.7} parent=35 // pred_check_branch
              %231 = sbr.rel (0) target = $region40
            $region39: #{basic_block_forward.7} parent=35 // pred_region
              %s232 = scalar_lea.vmem %s227, 8
              %s233 = scalar_lea.vmem %s222, 8 [#allocation2]
              loop: start=0, step=1, limit=1
              $region41: #{basic_block_forward.7} parent=39 // loop_pre_header
                _
              $region42: #{basic_block_forward.7} parent=39 // loop_header
                %s235 = sphi 0, %s239
                %p236 = scmp.ge.s32.totalorder %s235, 1
                %s240 = sphi %s227, %s227
                %s241 = sphi %s222, %s222
              $region43: #{basic_block_forward.7} parent=39 // loop_header_branch
                %238 = sbr.rel (%p236) target = $region47
              $region44: #{basic_block_forward.7} parent=39 // loop_body
                %v242 = vld [vmem:[%s240] sm:$0xff]
                %243 = vst [vmem:[%s241] sm:$0xff] %v242
                %v244 = vld [vmem:[%s240 + $0x18] sm:$0xff]
                %245 = vst [vmem:[%s241 + $0xc] sm:$0xff] %v244
                %v246 = vld [vmem:[%s240 + $0x30] sm:$0xff]
                %247 = vst [vmem:[%s241 + $0x18] sm:$0xff] %v246
                %v248 = vld [vmem:[%s240 + $0x48] sm:$0xff]
                %249 = vst [vmem:[%s241 + $0x24] sm:$0xff] %v248
              $region45: #{basic_block_forward.7} parent=39 // loop_footer
                %s239 = sadd.s32 1, %s235
              $region46: #{basic_block_forward.7} parent=39 // loop_footer_branch
                %234 = sbr.rel target = $region42
              $region47: #{basic_block_forward.7} parent=39 // loop_exit
                _
              %s251 = ssub.s32 16, 1
              loop: start=0, step=1, limit=1
              $region48: #{basic_block_forward.7} parent=39 // loop_pre_header
                _
              $region49: #{basic_block_forward.7} parent=39 // loop_header
                %s253 = sphi 0, %s257
                %p254 = scmp.ge.s32.totalorder %s253, 1
                %s258 = sphi %s232, %s232
                %s259 = sphi %s233, %s233
              $region50: #{basic_block_forward.7} parent=39 // loop_header_branch
                %256 = sbr.rel (%p254) target = $region54
              $region51: #{basic_block_forward.7} parent=39 // loop_body
                %v260 = vld [vmem:[%s258] sm:%s251]
                %261 = vst [vmem:[%s259] sm:%s251] %v260
                %v262 = vld [vmem:[%s258 + $0x18] sm:%s251]
                %263 = vst [vmem:[%s259 + $0xc] sm:%s251] %v262
                %v264 = vld [vmem:[%s258 + $0x30] sm:%s251]
                %265 = vst [vmem:[%s259 + $0x18] sm:%s251] %v264
                %v266 = vld [vmem:[%s258 + $0x48] sm:%s251]
                %267 = vst [vmem:[%s259 + $0x24] sm:%s251] %v266
              $region52: #{basic_block_forward.7} parent=39 // loop_footer
                %s257 = sadd.s32 1, %s253
              $region53: #{basic_block_forward.7} parent=39 // loop_footer_branch
                %252 = sbr.rel target = $region49
              $region54: #{basic_block_forward.7} parent=39 // loop_exit
                _
            $region40: #{basic_block_forward.7} parent=35 // pred_fallthru
              _
          $region36: #{basic_block_forward.7} parent=31 // pred_fallthru
            _
          %268 = vnop
        $region32: #{basic_block_forward.7} parent=27 // pred_fallthru
          _
        // Predicated region
        $region55: #{basic_block_forward.7} parent=27 // pred_check
          %p269 = pneg %p73
        $region56: #{basic_block_forward.7} parent=27 // pred_check_branch
          %271 = sbr.rel (%p269) target = $region58
        $region57: #{basic_block_forward.7} parent=27 // pred_region
          %s272 = sand.u32 %s63, 1
          %s273 = sand.u32 %s63, 1
          %s274 = smul.addr %s273, 48
          %s275 = scalar_lea.vmem [#allocation3], %s274
          %s276 = smul.addr %s19, 3
          %s277 = smul.addr %s18, 3
          %s278 = sadd.s32 %s276, %s277
          %s279 = smul.addr %s278, 4
          %s280 = scalar_lea.vmem %s1, %s279
          // Predicated region
          $region59: #{basic_block_forward.7} parent=57 // pred_check
            _
          $region60: #{basic_block_forward.7} parent=57 // pred_check_branch
            %282 = sbr.rel (0) target = $region62
          $region61: #{basic_block_forward.7} parent=57 // pred_region
            // Predicated region
            $region63: #{basic_block_forward.7} parent=61 // pred_check
              _
            $region64: #{basic_block_forward.7} parent=61 // pred_check_branch
              %284 = sbr.rel (0) target = $region66
            $region65: #{basic_block_forward.7} parent=61 // pred_region
              %s285 = scalar_lea.vmem %s280, 8
              %s286 = scalar_lea.vmem %s275, 8 [#allocation3]
              loop: start=0, step=1, limit=1
              $region67: #{basic_block_forward.7} parent=65 // loop_pre_header
                _
              $region68: #{basic_block_forward.7} parent=65 // loop_header
                %s288 = sphi 0, %s292
                %p289 = scmp.ge.s32.totalorder %s288, 1
                %s293 = sphi %s280, %s280
                %s294 = sphi %s275, %s275
              $region69: #{basic_block_forward.7} parent=65 // loop_header_branch
                %291 = sbr.rel (%p289) target = $region73
              $region70: #{basic_block_forward.7} parent=65 // loop_body
                %v295 = vld [vmem:[%s293] sm:$0xff]
                %296 = vst [vmem:[%s294] sm:$0xff] %v295
                %v297 = vld [vmem:[%s293 + $0x18] sm:$0xff]
                %298 = vst [vmem:[%s294 + $0xc] sm:$0xff] %v297
                %v299 = vld [vmem:[%s293 + $0x30] sm:$0xff]
                %300 = vst [vmem:[%s294 + $0x18] sm:$0xff] %v299
                %v301 = vld [vmem:[%s293 + $0x48] sm:$0xff]
                %302 = vst [vmem:[%s294 + $0x24] sm:$0xff] %v301
              $region71: #{basic_block_forward.7} parent=65 // loop_footer
                %s292 = sadd.s32 1, %s288
              $region72: #{basic_block_forward.7} parent=65 // loop_footer_branch
                %287 = sbr.rel target = $region68
              $region73: #{basic_block_forward.7} parent=65 // loop_exit
                _
              %s304 = ssub.s32 16, 1
              loop: start=0, step=1, limit=1
              $region74: #{basic_block_forward.7} parent=65 // loop_pre_header
                _
              $region75: #{basic_block_forward.7} parent=65 // loop_header
                %s306 = sphi 0, %s310
                %p307 = scmp.ge.s32.totalorder %s306, 1
                %s311 = sphi %s285, %s285
                %s312 = sphi %s286, %s286
              $region76: #{basic_block_forward.7} parent=65 // loop_header_branch
                %309 = sbr.rel (%p307) target = $region80
              $region77: #{basic_block_forward.7} parent=65 // loop_body
                %v313 = vld [vmem:[%s311] sm:%s304]
                %314 = vst [vmem:[%s312] sm:%s304] %v313
                %v315 = vld [vmem:[%s311 + $0x18] sm:%s304]
                %316 = vst [vmem:[%s312 + $0xc] sm:%s304] %v315
                %v317 = vld [vmem:[%s311 + $0x30] sm:%s304]
                %318 = vst [vmem:[%s312 + $0x18] sm:%s304] %v317
                %v319 = vld [vmem:[%s311 + $0x48] sm:%s304]
                %320 = vst [vmem:[%s312 + $0x24] sm:%s304] %v319
              $region78: #{basic_block_forward.7} parent=65 // loop_footer
                %s310 = sadd.s32 1, %s306
              $region79: #{basic_block_forward.7} parent=65 // loop_footer_branch
                %305 = sbr.rel target = $region75
              $region80: #{basic_block_forward.7} parent=65 // loop_exit
                _
            $region66: #{basic_block_forward.7} parent=61 // pred_fallthru
              _
          $region62: #{basic_block_forward.7} parent=57 // pred_fallthru
            _
          %321 = vnop
        $region58: #{basic_block_forward.7} parent=27 // pred_fallthru
          _
      $region28: #{basic_block_forward.7} parent=5 // pred_fallthru
        _
      %p322 = scmp.le.s32.totalorder 1, %s11
      %p323 = scmp.lt.s32.totalorder %s11, 3
      %p324 = pnand %p322, %p323
      %p325 = pneg %p324
      // Predicated region
      $region81: #{basic_block_forward.7} parent=5 // pred_check
        _
      $region82: #{basic_block_forward.7} parent=5 // pred_check_branch
        %327 = sbr.rel (%p324) target = $region84
      $region83: #{basic_block_forward.7} parent=5 // pred_region
        %s328 = ssub.s32 %s11, 1
        %s329 = sand.u32 %s38, 1
        %s330 = sand.u32 %s38, 1
        %s331 = smul.addr %s330, 48
        %s332 = scalar_lea.vmem [#allocation2], %s331
        // Predicated region
        $region85: #{basic_block_forward.7} parent=83 // pred_check
          %p333 = pneg %p51
        $region86: #{basic_block_forward.7} parent=83 // pred_check_branch
          %335 = sbr.rel (%p333) target = $region88
        $region87: #{basic_block_forward.7} parent=83 // pred_region
          _
        $region88: #{basic_block_forward.7} parent=83 // pred_fallthru
          _
        %s336 = sand.u32 %s66, 1
        %s337 = sand.u32 %s66, 1
        %s338 = smul.addr %s337, 48
        %s339 = scalar_lea.vmem [#allocation3], %s338
        // Predicated region
        $region89: #{basic_block_forward.7} parent=83 // pred_check
          %p340 = pneg %p79
        $region90: #{basic_block_forward.7} parent=83 // pred_check_branch
          %342 = sbr.rel (%p340) target = $region92
        $region91: #{basic_block_forward.7} parent=83 // pred_region
          _
        $region92: #{basic_block_forward.7} parent=83 // pred_fallthru
          _
        %s343 = sand.u32 %s38, 1
        %s344 = sand.u32 %s38, 1
        %s345 = smul.addr %s344, 48
        %s346 = scalar_lea.vmem [#allocation2], %s345
        %p347 = pneg %p51
        %p348 = pneg %p48
        %s349 = sand.u32 %s66, 1
        %s350 = sand.u32 %s66, 1
        %s351 = smul.addr %s350, 48
        %s352 = scalar_lea.vmem [#allocation3], %s351
        %p353 = pneg %p79
        %p354 = pneg %p76
        %p355 = scmp.lt.s32.totalorder %s21, 0
        %s356 = scalar_select %p355, %s21, 0
        %s357 = smul.addr %s356, 4
        %s358 = scalar_lea.vmem %s2, %s357
        %p359 = pneg %p105
        %p360 = pneg %p102
        %p361 = scmp.lt.s32.totalorder %s21, 0
        %s362 = scalar_select %p361, %s21, 0
        %s363 = smul.addr %s362, 4
        %s364 = scalar_lea.vmem %s3, %s363
        %p365 = pneg %p131
        %p366 = pneg %p128
        %p367 = pneg %p152
        %p368 = pneg %p149
        %p369 = pneg %p180
        %p370 = pneg %p177
        %s371 = sand.u32 %s167, 1
        %s372 = sand.u32 %s167, 1
        %s373 = smul.addr %s372, 24
        %s374 = scalar_lea.vmem [#allocation4], %s373
        %p375 = scmp.lt.s32.totalorder %s21, 0
        %s376 = scalar_select %p375, %s21, 0
        %s377 = smul.addr %s376, 4
        %s378 = scalar_lea.vmem %s2, %s377
        %p379 = scmp.lt.s32.totalorder %s21, 0
        %s380 = scalar_select %p379, %s21, 0
        %s381 = smul.addr %s380, 4
        %s382 = scalar_lea.vmem %s3, %s381
        %v383 = vld [vmem:[%s378] sm:$0xf]
        %v384 = vld [vmem:[%s382] sm:$0xf]
        %v385 = vld [vmem:[%s4] sm:$0x7]
        %v386 = vld [vmem:[%s332] sm:$0xff]
        %v387 = vld [vmem:[%s332 + $0x8] sm:$0xf]
        %389 = vset.pattern.permute.xlu0 0
        %390 = vperm.xlu0 %389, %v383
        %v391 = vpop.permute.xlu0 %390
        %v393 = vunpack.c.l.s4 839922192
        %v394 = vunpack.c.0.s8 %v393
        %v395 = vperm.slane %v391, %v394
        %v397 = vmul.f32 %v386, %v395
        %v398 = vmul.f32 %v387, %v395
        %400 = vset.pattern.permute.xlu0 0
        %401 = vperm.xlu0 %400, %v384
        %v402 = vpop.permute.xlu0 %401
        %v404 = vunpack.c.l.s4 839922192
        %v405 = vunpack.c.0.s8 %v404
        %v406 = vperm.slane %v402, %v405
        %v408 = vadd.f32 %v397, %v406
        %v409 = vadd.f32 %v398, %v406
        %v410 = vld [vmem:[%s339] sm:$0xff]
        %v411 = vld [vmem:[%s339 + $0x8] sm:$0xf]
        %v412 = vadd.f32 %v408, %v410
        %v413 = vadd.f32 %v409, %v411
        %v414 = vadd.f32 %v412, 0.0
        %v415 = vadd.f32 %v413, 0.0
        %vm416 = vcmp.ge.f32.partialorder %v414, 1.0
        %vm417 = vcmp.ge.f32.partialorder %v415, 1.0
        %v418 = vsel %vm416, 1, 0
        %v419 = vsel %vm417, 1, 0
        %v420 = vcvt.s32.f32 %v418
        %v421 = vcvt.s32.f32 %v419
        %v423 = vperm.slane %v385, 0
        %v424 = vperm.slane %v385, 1
        %v425 = vperm.slane %v385, 2
        %v427 = vrot.slane %v424, 4
        %vm428 = vcmask 1043456
        %v429 = vsel %vm428, %v423, %v427
        %v431 = vmul.f32 %v420, %v429
        %v432 = vmul.f32 %v421, %v425
        %435 = vst [vmem:[#allocation1] ss:$2 sm:$0xff] %v431
        %s436 = scalar_lea.vmem [#allocation1], 16
        %437 = vst [vmem:[%s436] ss:$2 sm:$0xff] %v432
        %v438 = vld.sshfl [vmem:[#allocation1] sm:$0xff pattern:$0x75316420]
        %v439 = vld.sshfl [vmem:[#allocation1 + $0x8] sm:$0xff pattern:$0x75316420]
        %v440 = vld.sshfl [vmem:[#allocation1 + $0x10] sm:$0xff pattern:$0x75316420]
        %v444 = vpack.c.bf16 %v439, %v438
        %v445 = vpack.c.bf16 %v440, %v440
        %v448 = vrot.slane %v444, 2
        %v449 = vrot.slane %v445, 4
        %v450 = vrot.slane %v445, 6
        %vm451 = vcmask 1041408
        %v454 = vsel %vm451, %v444, %v448
        %vm455 = vcmask 1045508
        %v458 = vsel %vm455, %v449, %v450
        %v459 = vsel %vm428, %v454, %v458
        %461 = vst [vmem:[%s374] sm:$0x3f] %v459
        %v462 = vsub.f32 1.0, %v420
        %v463 = vsub.f32 1.0, %v421
        %v464 = vmul.f32 %v414, %v462
        %v465 = vmul.f32 %v415, %v463
        %s466 = scalar_lea.vmem %s332, 12 [#allocation2]
        %v467 = vld [vmem:[%s466] sm:$0xff]
        %v468 = vld [vmem:[%s466 + $0x8] sm:$0xf]
        %v469 = vmul.f32 %v467, %v395
        %v470 = vmul.f32 %v468, %v395
        %v471 = vadd.f32 %v469, %v406
        %v472 = vadd.f32 %v470, %v406
        %s473 = scalar_lea.vmem %s339, 12 [#allocation3]
        %v474 = vld [vmem:[%s473] sm:$0xff]
        %v475 = vld [vmem:[%s473 + $0x8] sm:$0xf]
        %v476 = vadd.f32 %v471, %v474
        %v477 = vadd.f32 %v472, %v475
        %v478 = vmul.f32 %v464, 0.5
        %v479 = vmul.f32 %v465, 0.5
        %v480 = vadd.f32 %v478, %v476
        %v481 = vadd.f32 %v479, %v477
        %vm482 = vcmp.ge.f32.partialorder %v480, 1.0
        %vm483 = vcmp.ge.f32.partialorder %v481, 1.0
        %v484 = vsel %vm482, 1, 0
        %v485 = vsel %vm483, 1, 0
        %v486 = vcvt.s32.f32 %v484
        %v487 = vcvt.s32.f32 %v485
        %v488 = vmul.f32 %v486, %v429
        %v489 = vmul.f32 %v487, %v425
        %492 = vst [vmem:[#allocation1] ss:$2 sm:$0xff] %v488
        %s493 = scalar_lea.vmem [#allocation1], 16
        %494 = vst [vmem:[%s493] ss:$2 sm:$0xff] %v489
        %v495 = vld.sshfl [vmem:[#allocation1] sm:$0xff pattern:$0x75316420]
        %v496 = vld.sshfl [vmem:[#allocation1 + $0x8] sm:$0xff pattern:$0x75316420]
        %v497 = vld.sshfl [vmem:[#allocation1 + $0x10] sm:$0xff pattern:$0x75316420]
        %v501 = vpack.c.bf16 %v496, %v495
        %v502 = vpack.c.bf16 %v497, %v497
        %v505 = vrot.slane %v501, 2
        %v506 = vrot.slane %v502, 4
        %v507 = vrot.slane %v502, 6
        %v510 = vsel %vm451, %v501, %v505
        %v513 = vsel %vm455, %v506, %v507
        %v514 = vsel %vm428, %v510, %v513
        %s516 = scalar_lea.vmem %s374, 6 [#allocation4]
        %517 = vst [vmem:[%s516] sm:$0x3f] %v514
        %v518 = vsub.f32 1.0, %v486
        %v519 = vsub.f32 1.0, %v487
        %v520 = vmul.f32 %v480, %v518
        %v521 = vmul.f32 %v481, %v519
        %s522 = scalar_lea.vmem %s332, 24 [#allocation2]
        %v523 = vld [vmem:[%s522] sm:$0xff]
        %v524 = vld [vmem:[%s522 + $0x8] sm:$0xf]
        %v525 = vmul.f32 %v523, %v395
        %v526 = vmul.f32 %v524, %v395
        %v527 = vadd.f32 %v525, %v406
        %v528 = vadd.f32 %v526, %v406
        %s529 = scalar_lea.vmem %s339, 24 [#allocation3]
        %v530 = vld [vmem:[%s529] sm:$0xff]
        %v531 = vld [vmem:[%s529 + $0x8] sm:$0xf]
        %v532 = vadd.f32 %v527, %v530
        %v533 = vadd.f32 %v528, %v531
        %v534 = vmul.f32 %v520, 0.5
        %v535 = vmul.f32 %v521, 0.5
        %v536 = vadd.f32 %v534, %v532
        %v537 = vadd.f32 %v535, %v533
        %vm538 = vcmp.ge.f32.partialorder %v536, 1.0
        %vm539 = vcmp.ge.f32.partialorder %v537, 1.0
        %v540 = vsel %vm538, 1, 0
        %v541 = vsel %vm539, 1, 0
        %v542 = vcvt.s32.f32 %v540
        %v543 = vcvt.s32.f32 %v541
        %v544 = vmul.f32 %v542, %v429
        %v545 = vmul.f32 %v543, %v425
        %548 = vst [vmem:[#allocation1] ss:$2 sm:$0xff] %v544
        %s549 = scalar_lea.vmem [#allocation1], 16
        %550 = vst [vmem:[%s549] ss:$2 sm:$0xff] %v545
        %v551 = vld.sshfl [vmem:[#allocation1] sm:$0xff pattern:$0x75316420]
        %v552 = vld.sshfl [vmem:[#allocation1 + $0x8] sm:$0xff pattern:$0x75316420]
        %v553 = vld.sshfl [vmem:[#allocation1 + $0x10] sm:$0xff pattern:$0x75316420]
        %v557 = vpack.c.bf16 %v552, %v551
        %v558 = vpack.c.bf16 %v553, %v553
        %v561 = vrot.slane %v557, 2
        %v562 = vrot.slane %v558, 4
        %v563 = vrot.slane %v558, 6
        %v566 = vsel %vm451, %v557, %v561
        %v569 = vsel %vm455, %v562, %v563
        %v570 = vsel %vm428, %v566, %v569
        %s572 = scalar_lea.vmem %s374, 12 [#allocation4]
        %573 = vst [vmem:[%s572] sm:$0x3f] %v570
        %v574 = vsub.f32 1.0, %v542
        %v575 = vsub.f32 1.0, %v543
        %v576 = vmul.f32 %v536, %v574
        %v577 = vmul.f32 %v537, %v575
        %s578 = scalar_lea.vmem %s332, 36 [#allocation2]
        %v579 = vld [vmem:[%s578] sm:$0xff]
        %v580 = vld [vmem:[%s578 + $0x8] sm:$0xf]
        %v581 = vmul.f32 %v579, %v395
        %v582 = vmul.f32 %v580, %v395
        %v583 = vadd.f32 %v581, %v406
        %v584 = vadd.f32 %v582, %v406
        %s585 = scalar_lea.vmem %s339, 36 [#allocation3]
        %v586 = vld [vmem:[%s585] sm:$0xff]
        %v587 = vld [vmem:[%s585 + $0x8] sm:$0xf]
        %v588 = vadd.f32 %v583, %v586
        %v589 = vadd.f32 %v584, %v587
        %v590 = vmul.f32 %v576, 0.5
        %v591 = vmul.f32 %v577, 0.5
        %v592 = vadd.f32 %v590, %v588
        %v593 = vadd.f32 %v591, %v589
        %vm594 = vcmp.ge.f32.partialorder %v592, 1.0
        %vm595 = vcmp.ge.f32.partialorder %v593, 1.0
        %v596 = vsel %vm594, 1, 0
        %v597 = vsel %vm595, 1, 0
        %v598 = vcvt.s32.f32 %v596
        %v599 = vcvt.s32.f32 %v597
        %v600 = vmul.f32 %v598, %v429
        %v601 = vmul.f32 %v599, %v425
        %604 = vst [vmem:[#allocation1] ss:$2 sm:$0xff] %v600
        %s605 = scalar_lea.vmem [#allocation1], 16
        %606 = vst [vmem:[%s605] ss:$2 sm:$0xff] %v601
        %v607 = vld.sshfl [vmem:[#allocation1] sm:$0xff pattern:$0x75316420]
        %v608 = vld.sshfl [vmem:[#allocation1 + $0x8] sm:$0xff pattern:$0x75316420]
        %v609 = vld.sshfl [vmem:[#allocation1 + $0x10] sm:$0xff pattern:$0x75316420]
        %v613 = vpack.c.bf16 %v608, %v607
        %v614 = vpack.c.bf16 %v609, %v609
        %v617 = vrot.slane %v613, 2
        %v618 = vrot.slane %v614, 4
        %v619 = vrot.slane %v614, 6
        %v622 = vsel %vm451, %v613, %v617
        %v625 = vsel %vm455, %v618, %v619
        %v626 = vsel %vm428, %v622, %v625
        %s628 = scalar_lea.vmem %s374, 18 [#allocation4]
        %629 = vst [vmem:[%s628] sm:$0x3f] %v626
        %s630 = sand.u32 %s167, 1
        %s631 = sand.u32 %s167, 1
        %s632 = smul.addr %s631, 24
        %s633 = scalar_lea.vmem [#allocation4], %s632
        // Predicated region
        $region93: #{basic_block_forward.7} parent=83 // pred_check
          %p634 = pneg %p177
        $region94: #{basic_block_forward.7} parent=83 // pred_check_branch
          %636 = sbr.rel (%p634) target = $region96
        $region95: #{basic_block_forward.7} parent=83 // pred_region
          %s637 = smul.addr %s21, 3
          %s638 = smul.addr %s20, 3
          %s639 = sadd.s32 %s637, %s638
          %s640 = smul.addr %s639, 2
          %s641 = scalar_lea.vmem %s5, %s640
          // Predicated region
          $region97: #{basic_block_forward.7} parent=95 // pred_check
            _
          $region98: #{basic_block_forward.7} parent=95 // pred_check_branch
            %643 = sbr.rel (0) target = $region100
          $region99: #{basic_block_forward.7} parent=95 // pred_region
            // Predicated region
            $region101: #{basic_block_forward.7} parent=99 // pred_check
              _
            $region102: #{basic_block_forward.7} parent=99 // pred_check_branch
              %645 = sbr.rel target = $region104
            $region103: #{basic_block_forward.7} parent=99 // pred_region
              // Predicated region
              $region116: #{basic_block_forward.7} parent=103 // pred_check
                _
              $region117: #{basic_block_forward.7} parent=103 // pred_check_branch
                %667 = sbr.rel (0) target = $region119
              $region118: #{basic_block_forward.7} parent=103 // pred_region
                loop: start=0, step=1, limit=1
                $region120: #{basic_block_forward.7} parent=118 // loop_pre_header
                  _
                $region121: #{basic_block_forward.7} parent=118 // loop_header
                  %s669 = sphi 0, %s673
                  %p670 = scmp.ge.s32.totalorder %s669, 1
                  %s674 = sphi %s633, %s633
                  %s675 = sphi %s641, %s641
                $region122: #{basic_block_forward.7} parent=118 // loop_header_branch
                  %672 = sbr.rel (%p670) target = $region126
                $region123: #{basic_block_forward.7} parent=118 // loop_body
                  _
                $region124: #{basic_block_forward.7} parent=118 // loop_footer
                  %s673 = sadd.s32 1, %s669
                $region125: #{basic_block_forward.7} parent=118 // loop_footer_branch
                  %668 = sbr.rel target = $region121
                $region126: #{basic_block_forward.7} parent=118 // loop_exit
                  _
                %s677 = ssub.s32 64, 1
                loop: start=0, step=1, limit=1
                $region127: #{basic_block_forward.7} parent=118 // loop_pre_header
                  _
                $region128: #{basic_block_forward.7} parent=118 // loop_header
                  %s679 = sphi 0, %s683
                  %p680 = scmp.ge.s32.totalorder %s679, 1
                  %s684 = sphi %s633, %s633
                  %s685 = sphi %s641, %s641
                $region129: #{basic_block_forward.7} parent=118 // loop_header_branch
                  %682 = sbr.rel (%p680) target = $region133
                $region130: #{basic_block_forward.7} parent=118 // loop_body
                  %v686 = vld [vmem:[%s684] sm:%s677]
                  %687 = vst [vmem:[%s685] sm:%s677] %v686
                  %v688 = vld [vmem:[%s684 + $0x6] sm:%s677]
                  %689 = vst [vmem:[%s685 + $0xc] sm:%s677] %v688
                  %v690 = vld [vmem:[%s684 + $0xc] sm:%s677]
                  %691 = vst [vmem:[%s685 + $0x18] sm:%s677] %v690
                  %v692 = vld [vmem:[%s684 + $0x12] sm:%s677]
                  %693 = vst [vmem:[%s685 + $0x24] sm:%s677] %v692
                $region131: #{basic_block_forward.7} parent=118 // loop_footer
                  %s683 = sadd.s32 1, %s679
                $region132: #{basic_block_forward.7} parent=118 // loop_footer_branch
                  %678 = sbr.rel target = $region128
                $region133: #{basic_block_forward.7} parent=118 // loop_exit
                  _
              $region119: #{basic_block_forward.7} parent=103 // pred_fallthru
                _
            $region104: #{basic_block_forward.7} parent=99 // pred_fallthru
              _
            // Predicated region
            $region105: #{basic_block_forward.7} parent=99 // pred_check
              _
            $region106: #{basic_block_forward.7} parent=99 // pred_check_branch
              %647 = sbr.rel (0) target = $region108
            $region107: #{basic_block_forward.7} parent=99 // pred_region
              %s649 = ssub.s32 64, 1
              loop: start=0, step=1, limit=1
              $region109: #{basic_block_forward.7} parent=107 // loop_pre_header
                _
              $region110: #{basic_block_forward.7} parent=107 // loop_header
                %s651 = sphi 0, %s655
                %p652 = scmp.ge.s32.totalorder %s651, 1
                %s656 = sphi %s633, %s633
                %s657 = sphi %s641, %s641
              $region111: #{basic_block_forward.7} parent=107 // loop_header_branch
                %654 = sbr.rel (%p652) target = $region115
              $region112: #{basic_block_forward.7} parent=107 // loop_body
                %v658 = vld [vmem:[%s656] sm:%s649]
                %659 = vst [vmem:[%s657] sm:%s649] %v658
                %v660 = vld [vmem:[%s656 + $0x6] sm:%s649]
                %661 = vst [vmem:[%s657 + $0xc] sm:%s649] %v660
                %v662 = vld [vmem:[%s656 + $0xc] sm:%s649]
                %663 = vst [vmem:[%s657 + $0x18] sm:%s649] %v662
                %v664 = vld [vmem:[%s656 + $0x12] sm:%s649]
                %665 = vst [vmem:[%s657 + $0x24] sm:%s649] %v664
              $region113: #{basic_block_forward.7} parent=107 // loop_footer
                %s655 = sadd.s32 1, %s651
              $region114: #{basic_block_forward.7} parent=107 // loop_footer_branch
                %650 = sbr.rel target = $region110
              $region115: #{basic_block_forward.7} parent=107 // loop_exit
                _
            $region108: #{basic_block_forward.7} parent=99 // pred_fallthru
              _
          $region100: #{basic_block_forward.7} parent=95 // pred_fallthru
            _
          %694 = vnop
        $region96: #{basic_block_forward.7} parent=83 // pred_fallthru
          _
      $region84: #{basic_block_forward.7} parent=5 // pred_fallthru
        _
      %p695 = scmp.le.s32.totalorder 2, %s11
      // Predicated region
      $region134: #{basic_block_forward.7} parent=5 // pred_check
        %p696 = pneg %p695
      $region135: #{basic_block_forward.7} parent=5 // pred_check_branch
        %698 = sbr.rel (%p696) target = $region137
      $region136: #{basic_block_forward.7} parent=5 // pred_region
        %s699 = ssub.s32 %s11, 2
        // Predicated region
        $region138: #{basic_block_forward.7} parent=136 // pred_check
          %p700 = pneg %p183
        $region139: #{basic_block_forward.7} parent=136 // pred_check_branch
          %702 = sbr.rel (%p700) target = $region141
        $region140: #{basic_block_forward.7} parent=136 // pred_region
          %s703 = sand.u32 %s168, 1
          %s704 = sand.u32 %s168, 1
          %s705 = smul.addr %s704, 24
          %s706 = scalar_lea.vmem [#allocation4], %s705
        $region141: #{basic_block_forward.7} parent=136 // pred_fallthru
          _
      $region137: #{basic_block_forward.7} parent=5 // pred_fallthru
        _
    $region6: #{basic_block_forward.7} parent=1 // loop_footer
      %s15 = sadd.s32 1, %s11
    $region7: #{basic_block_forward.7} parent=1 // loop_footer_branch
      %10 = sbr.rel target = $region3
    $region8: #{basic_block_forward.7} parent=1 // loop_exit
      _

// kernel: basic_block_forward.6
$region0: #{basic_block_forward.6}
  #allocation0 [shape = 'u32[]', space=smem, size = 0x4, offset = 0x4, fixed_abs, tag = 'smem constant byte address 0x4 - core index']
  #allocation1 [shape = 'u32[72,128]{1,0:T(1,128)}', space=vmem, size = 0x9000, scoped, tag = 'internal scratch']
  %s0 = inlined_call_operand.vmem [shape: bf16[8,4,384], index: 0, kind: input, shape index: {}]
  %s1 = inlined_call_operand.vmem [shape: bf16[4,36], index: 1, kind: input, shape index: {}]
  %s2 = inlined_call_operand.vmem [shape: f32[1,384], index: 2, kind: input, shape index: {}]
  %s3 = inlined_call_operand.vmem [shape: f32[8,4,384], index: 3, kind: output, shape index: {0}]
  %s4 = inlined_call_operand.vmem [shape: f32[2,4,2], index: 4, kind: output, shape index: {1}]
  %5 = xla_tuple %s3, %s4
  %s6 = sld [smem:[#allocation0]]
  $region53: #{basic_block_forward.6} parent=0
    _
  %s8 = ssub.s32 1, %s6
  %s9 = scalar_select 0, %s8, %s6
  loop: start=0, step=1, limit=4
  $region2: #{basic_block_forward.6} parent=0 // loop_pre_header
    _
  $region3: #{basic_block_forward.6} parent=0 // loop_header
    %s11 = sphi 0, %s15
    %p12 = scmp.ge.s32.totalorder %s11, 4
    %s21 = sphi 0, %s23
    %s24 = sphi 0, %s21
    %s25 = sphi 0, %s24
    %s41 = sphi 0, %s25
    %s45 = sphi 0, %s45
    %s47 = sphi 0, %s45
    %s48 = sphi 0, %s47
    %s62 = sphi 0, %s48
    %s66 = sphi 0, %s66
    %s68 = sphi 0, %s66
    %s69 = sphi 0, %s68
    %s83 = sphi 0, %s69
    %s89 = sphi 0, %s91
    %s92 = sphi 0, %s89
    %s93 = sphi 0, %s92
    %s109 = sphi 0, %s93
    %s115 = sphi 0, %s117
    %s118 = sphi 0, %s115
    %s119 = sphi 0, %s118
    %s135 = sphi 0, %s119
  $region4: #{basic_block_forward.6} parent=0 // loop_header_branch
    %14 = sbr.rel (%p12) target = $region8
  $region5: #{basic_block_forward.6} parent=0 // loop_body
    %s16 = ssub.s32 %s11, 1
    %s17 = ssub.s32 %s11, 2
    %s18 = sadd.s32 %s11, 1
    %s19 = ssub.s32 %s11, %s18
    %p20 = scmp.eq.s32.totalorder %s19, 0
    %s22 = sadd.s32 %s21, 1
    %s23 = scalar_select %p20, %s21, %s22
    %p26 = pneg %p20
    %p27 = scmp.eq.s32.totalorder %s11, 1
    %p28 = por %p26, %p27
    %p29 = scmp.ne.s32.totalorder %s21, %s24
    %p30 = scmp.eq.s32.totalorder %s11, 0
    %p31 = por %p29, %p30
    %p32 = scmp.ne.s32.totalorder %s21, %s24
    %p33 = scmp.eq.s32.totalorder %s16, 1
    %p34 = por %p32, %p33
    %p35 = scmp.ne.s32.totalorder %s24, %s25
    %p36 = scmp.eq.s32.totalorder %s16, 0
    %p37 = por %p35, %p36
    %p38 = scmp.ne.s32.totalorder %s24, %s25
    %p39 = scmp.eq.s32.totalorder %s17, 1
    %p40 = por %p38, %p39
    %p42 = scmp.ne.s32.totalorder %s25, %s41
    %p43 = scmp.eq.s32.totalorder %s17, 0
    %p44 = por %p42, %p43
    %s46 = sadd.s32 %s45, 1
    %p49 = scmp.eq.s32.totalorder %s11, 1
    %p50 = scmp.ne.s32.totalorder %s45, %s47
    %p51 = scmp.eq.s32.totalorder %s11, 0
    %p52 = por %p50, %p51
    %p53 = scmp.ne.s32.totalorder %s45, %s47
    %p54 = scmp.eq.s32.totalorder %s16, 1
    %p55 = por %p53, %p54
    %p56 = scmp.ne.s32.totalorder %s47, %s48
    %p57 = scmp.eq.s32.totalorder %s16, 0
    %p58 = por %p56, %p57
    %p59 = scmp.ne.s32.totalorder %s47, %s48
    %p60 = scmp.eq.s32.totalorder %s17, 1
    %p61 = por %p59, %p60
    %p63 = scmp.ne.s32.totalorder %s48, %s62
    %p64 = scmp.eq.s32.totalorder %s17, 0
    %p65 = por %p63, %p64
    %s67 = sadd.s32 %s66, 1
    %p70 = scmp.eq.s32.totalorder %s11, 1
    %p71 = scmp.ne.s32.totalorder %s66, %s68
    %p72 = scmp.eq.s32.totalorder %s11, 0
    %p73 = por %p71, %p72
    %p74 = scmp.ne.s32.totalorder %s66, %s68
    %p75 = scmp.eq.s32.totalorder %s16, 1
    %p76 = por %p74, %p75
    %p77 = scmp.ne.s32.totalorder %s68, %s69
    %p78 = scmp.eq.s32.totalorder %s16, 0
    %p79 = por %p77, %p78
    %p80 = scmp.ne.s32.totalorder %s68, %s69
    %p81 = scmp.eq.s32.totalorder %s17, 1
    %p82 = por %p80, %p81
    %p84 = scmp.ne.s32.totalorder %s69, %s83
    %p85 = scmp.eq.s32.totalorder %s17, 0
    %p86 = por %p84, %p85
    %s87 = ssub.s32 %s11, %s18
    %p88 = scmp.eq.s32.totalorder %s87, 0
    %s90 = sadd.s32 %s89, 1
    %s91 = scalar_select %p88, %s89, %s90
    %p94 = pneg %p88
    %p95 = scmp.eq.s32.totalorder %s11, 1
    %p96 = por %p94, %p95
    %p97 = scmp.ne.s32.totalorder %s89, %s92
    %p98 = scmp.eq.s32.totalorder %s11, 0
    %p99 = por %p97, %p98
    %p100 = scmp.ne.s32.totalorder %s89, %s92
    %p101 = scmp.eq.s32.totalorder %s16, 1
    %p102 = por %p100, %p101
    %p103 = scmp.ne.s32.totalorder %s92, %s93
    %p104 = scmp.eq.s32.totalorder %s16, 0
    %p105 = por %p103, %p104
    %p106 = scmp.ne.s32.totalorder %s92, %s93
    %p107 = scmp.eq.s32.totalorder %s17, 1
    %p108 = por %p106, %p107
    %p110 = scmp.ne.s32.totalorder %s93, %s109
    %p111 = scmp.eq.s32.totalorder %s17, 0
    %p112 = por %p110, %p111
    %s113 = ssub.s32 %s11, %s18
    %p114 = scmp.eq.s32.totalorder %s113, 0
    %s116 = sadd.s32 %s115, 1
    %s117 = scalar_select %p114, %s115, %s116
    %p120 = pneg %p114
    %p121 = scmp.eq.s32.totalorder %s11, 1
    %p122 = por %p120, %p121
    %p123 = scmp.ne.s32.totalorder %s115, %s118
    %p124 = scmp.eq.s32.totalorder %s11, 0
    %p125 = por %p123, %p124
    %p126 = scmp.ne.s32.totalorder %s115, %s118
    %p127 = scmp.eq.s32.totalorder %s16, 1
    %p128 = por %p126, %p127
    %p129 = scmp.ne.s32.totalorder %s118, %s119
    %p130 = scmp.eq.s32.totalorder %s16, 0
    %p131 = por %p129, %p130
    %p132 = scmp.ne.s32.totalorder %s118, %s119
    %p133 = scmp.eq.s32.totalorder %s17, 1
    %p134 = por %p132, %p133
    %p136 = scmp.ne.s32.totalorder %s119, %s135
    %p137 = scmp.eq.s32.totalorder %s17, 0
    %p138 = por %p136, %p137
    %p139 = scmp.le.s32.totalorder 1, %s11
    %p140 = scmp.lt.s32.totalorder %s11, 3
    %p141 = pnand %p139, %p140
    %p142 = pneg %p141
    // Predicated region
    $region9: #{basic_block_forward.6} parent=5 // pred_check
      _
    $region10: #{basic_block_forward.6} parent=5 // pred_check_branch
      %144 = sbr.rel (%p141) target = $region12
    $region11: #{basic_block_forward.6} parent=5 // pred_region
      %s145 = ssub.s32 %s11, 1
      // Predicated region
      $region13: #{basic_block_forward.6} parent=11 // pred_check
        %p146 = pneg %p58
      $region14: #{basic_block_forward.6} parent=11 // pred_check_branch
        %148 = sbr.rel (%p146) target = $region16
      $region15: #{basic_block_forward.6} parent=11 // pred_region
        _
      $region16: #{basic_block_forward.6} parent=11 // pred_fallthru
        _
      // Predicated region
      $region17: #{basic_block_forward.6} parent=11 // pred_check
        %p149 = pneg %p79
      $region18: #{basic_block_forward.6} parent=11 // pred_check_branch
        %151 = sbr.rel (%p149) target = $region20
      $region19: #{basic_block_forward.6} parent=11 // pred_region
        _
      $region20: #{basic_block_forward.6} parent=11 // pred_fallthru
        _
    $region12: #{basic_block_forward.6} parent=5 // pred_fallthru
      _
    %p152 = scmp.lt.s32.totalorder %s11, 2
    // Predicated region
    $region21: #{basic_block_forward.6} parent=5 // pred_check
      %p153 = pneg %p152
    $region22: #{basic_block_forward.6} parent=5 // pred_check_branch
      %155 = sbr.rel (%p153) target = $region24
    $region23: #{basic_block_forward.6} parent=5 // pred_region
      // Predicated region
      $region25: #{basic_block_forward.6} parent=23 // pred_check
        %p156 = pneg %p31
      $region26: #{basic_block_forward.6} parent=23 // pred_check_branch
        %158 = sbr.rel (%p156) target = $region28
      $region27: #{basic_block_forward.6} parent=23 // pred_region
        %s159 = smul.u32 4, %s11
        %p160 = scmp.lt.s32.totalorder %s159, 7
        %s161 = scalar_select %p160, %s159, 7
        %s162 = smul.addr %s161, 3
        %s163 = smul.addr %s162, 2
        %s164 = scalar_lea.vmem %s0, %s163
        %s165 = smul.u32 4, %s11
      $region28: #{basic_block_forward.6} parent=23 // pred_fallthru
        _
    $region24: #{basic_block_forward.6} parent=5 // pred_fallthru
      _
    %p166 = scmp.le.s32.totalorder 1, %s11
    %p167 = scmp.lt.s32.totalorder %s11, 3
    %p168 = pnand %p166, %p167
    %p169 = pneg %p168
    // Predicated region
    $region29: #{basic_block_forward.6} parent=5 // pred_check
      _
    $region30: #{basic_block_forward.6} parent=5 // pred_check_branch
      %171 = sbr.rel (%p168) target = $region32
    $region31: #{basic_block_forward.6} parent=5 // pred_region
      %s172 = ssub.s32 %s11, 1
      %s173 = smul.u32 4, %s16
      %p174 = scmp.lt.s32.totalorder %s173, 7
      %s175 = scalar_select %p174, %s173, 7
      %s176 = smul.addr %s175, 3
      %s177 = smul.addr %s176, 2
      %s178 = scalar_lea.vmem %s0, %s177
      %p179 = pneg %p37
      %p180 = pneg %p34
      %p181 = pneg %p58
      %p182 = pneg %p55
      %p183 = pneg %p79
      %p184 = pneg %p76
      %p185 = pneg %p105
      %p186 = pneg %p102
      %s187 = smul.u32 4, %s16
      %p188 = scmp.lt.s32.totalorder %s187, 7
      %s189 = scalar_select %p188, %s187, 7
      %s190 = smul.addr %s189, 3
      %s191 = smul.addr %s190, 4
      %s192 = scalar_lea.vmem %s3, %s191
      %p193 = pneg %p131
      %p194 = pneg %p128
      %p195 = scmp.lt.s32.totalorder %s16, 1
      %s196 = scalar_select %p195, %s16, 1
      %s197 = smul.addr %s196, 4
      %s198 = scalar_lea.vmem %s4, %s197
      %s199 = smul.u32 4, %s16
      %p200 = scmp.lt.s32.totalorder %s199, 7
      %s201 = scalar_select %p200, %s199, 7
      %s202 = smul.addr %s201, 3
      %s203 = smul.addr %s202, 2
      %s204 = scalar_lea.vmem %s0, %s203
      %s205 = smul.u32 4, %s16
      %s206 = smul.u32 4, %s16
      %p207 = scmp.lt.s32.totalorder %s206, 7
      %s208 = scalar_select %p207, %s206, 7
      %s209 = smul.addr %s208, 3
      %s210 = smul.addr %s209, 4
      %s211 = scalar_lea.vmem %s3, %s210
      %s212 = smul.u32 4, %s16
      %p213 = scmp.lt.s32.totalorder %s16, 1
      %s214 = scalar_select %p213, %s16, 1
      %s215 = smul.addr %s214, 4
      %s216 = scalar_lea.vmem %s4, %s215
      %v218 = vld [vmem:[%s1] sm:$0x3]
      %v219 = vld [vmem:[%s2] sm:$0x7]
      %v220 = vld [vmem:[%s204] sm:$0x3f]
      %222 = vst [vmem:[#allocation1] ss:$4 sm:$0xff] %v220
      %v223 = vld.sshfl [vmem:[#allocation1] sm:$0xff pattern:$0x73625140]
      %v225 = vld.sshfl [vmem:[#allocation1 + $0x8] sm:$0xff pattern:$0x73625140]
      %v227 = vld.sshfl [vmem:[#allocation1 + $0x10] sm:$0xff pattern:$0x73625140]
      %229 = vrot.lane.b32.xlu0 %v223, 19
      %v230 = vpop.permute.xlu0 %229
      %231 = vrot.lane.b32.xlu0 %v225, 19
      %v232 = vpop.permute.xlu0 %231
      %233 = vrot.lane.b32.xlu0 %v227, 19
      %v234 = vpop.permute.xlu0 %233
      %vm235 = vcmask 154624
      %v236 = vsel %vm235, %v230, %v232
      %v237 = vsel %vm235, %v232, %v234
      %vm238 = vcmask 154624
      %v241 = vsel %vm238, 0, %v230
      %v243 = vsel %vm238, %v234, 0
      %v246 = vrot.slane %v241, 6
      %v247 = vrot.slane %v236, 6
      %v248 = vrot.slane %v237, 6
      %v249 = vrot.slane %v243, 6
      %250 = vrot.lane.b32.xlu0 %v246, 127
      %v251 = vpop.permute.xlu0 %250
      %252 = vrot.lane.b32.xlu0 %v247, 127
      %v253 = vpop.permute.xlu0 %252
      %254 = vrot.lane.b32.xlu0 %v248, 127
      %v255 = vpop.permute.xlu0 %254
      %256 = vrot.lane.b32.xlu0 %v249, 127
      %v257 = vpop.permute.xlu0 %256
      %vm258 = vcmask 1039360
      %v259 = vsel %vm258, %v251, %v253
      %v260 = vsel %vm258, %v253, %v255
      %v261 = vsel %vm258, %v255, %v257
      %v262 = vrot.slane %v241, 4
      %v263 = vrot.slane %v236, 4
      %v264 = vrot.slane %v237, 4
      %v265 = vrot.slane %v243, 4
      %266 = vrot.lane.b32.xlu0 %v262, 126
      %v267 = vpop.permute.xlu0 %266
      %268 = vrot.lane.b32.xlu0 %v263, 126
      %v269 = vpop.permute.xlu0 %268
      %270 = vrot.lane.b32.xlu0 %v264, 126
      %v271 = vpop.permute.xlu0 %270
      %272 = vrot.lane.b32.xlu0 %v265, 126
      %v273 = vpop.permute.xlu0 %272
      %vm274 = vcmask 1031168
      %v275 = vsel %vm274, %v267, %v269
      %v276 = vsel %vm274, %v269, %v271
      %v277 = vsel %vm274, %v271, %v273
      %v278 = vrot.slane %v241, 2
      %v279 = vrot.slane %v236, 2
      %v280 = vrot.slane %v237, 2
      %v281 = vrot.slane %v243, 2
      %282 = vrot.lane.b32.xlu0 %v278, 110
      %v283 = vpop.permute.xlu0 %282
      %284 = vrot.lane.b32.xlu0 %v279, 110
      %v285 = vpop.permute.xlu0 %284
      %286 = vrot.lane.b32.xlu0 %v280, 110
      %v287 = vpop.permute.xlu0 %286
      %288 = vrot.lane.b32.xlu0 %v281, 110
      %v289 = vpop.permute.xlu0 %288
      %vm290 = vcmask 900096
      %v291 = vsel %vm290, %v283, %v285
      %v292 = vsel %vm290, %v285, %v287
      %v293 = vsel %vm290, %v287, %v289
      %294 = vrot.lane.b32.xlu0 %v241, 109
      %v295 = vpop.permute.xlu0 %294
      %296 = vrot.lane.b32.xlu0 %v236, 109
      %v297 = vpop.permute.xlu0 %296
      %298 = vrot.lane.b32.xlu0 %v237, 109
      %v299 = vpop.permute.xlu0 %298
      %300 = vrot.lane.b32.xlu0 %v243, 109
      %v301 = vpop.permute.xlu0 %300
      %vm302 = vcmask 891904
      %v303 = vsel %vm302, %v295, %v297
      %v304 = vsel %vm302, %v297, %v299
      %v305 = vsel %vm302, %v299, %v301
      %306 = vrot.lane.b32.xlu0 %v246, 108
      %v307 = vpop.permute.xlu0 %306
      %308 = vrot.lane.b32.xlu0 %v247, 108
      %v309 = vpop.permute.xlu0 %308
      %310 = vrot.lane.b32.xlu0 %v248, 108
      %v311 = vpop.permute.xlu0 %310
      %312 = vrot.lane.b32.xlu0 %v249, 108
      %v313 = vpop.permute.xlu0 %312
      %vm314 = vcmask 883712
      %v315 = vsel %vm314, %v307, %v309
      %v316 = vsel %vm314, %v309, %v311
      %v317 = vsel %vm314, %v311, %v313
      %318 = vrot.lane.b32.xlu0 %v262, 92
      %v319 = vpop.permute.xlu0 %318
      %320 = vrot.lane.b32.xlu0 %v263, 92
      %v321 = vpop.permute.xlu0 %320
      %322 = vrot.lane.b32.xlu0 %v264, 92
      %v323 = vpop.permute.xlu0 %322
      %324 = vrot.lane.b32.xlu0 %v265, 92
      %v325 = vpop.permute.xlu0 %324
      %vm326 = vcmask 752640
      %v327 = vsel %vm326, %v319, %v321
      %v328 = vsel %vm326, %v321, %v323
      %v329 = vsel %vm326, %v323, %v325
      %330 = vrot.lane.b32.xlu0 %v278, 91
      %v331 = vpop.permute.xlu0 %330
      %332 = vrot.lane.b32.xlu0 %v279, 91
      %v333 = vpop.permute.xlu0 %332
      %334 = vrot.lane.b32.xlu0 %v280, 91
      %v335 = vpop.permute.xlu0 %334
      %336 = vrot.lane.b32.xlu0 %v281, 91
      %v337 = vpop.permute.xlu0 %336
      %vm338 = vcmask 744448
      %v339 = vsel %vm338, %v331, %v333
      %v340 = vsel %vm338, %v333, %v335
      %v341 = vsel %vm338, %v335, %v337
      %342 = vrot.lane.b32.xlu0 %v241, 90
      %v343 = vpop.permute.xlu0 %342
      %344 = vrot.lane.b32.xlu0 %v236, 90
      %v345 = vpop.permute.xlu0 %344
      %346 = vrot.lane.b32.xlu0 %v237, 90
      %v347 = vpop.permute.xlu0 %346
      %348 = vrot.lane.b32.xlu0 %v243, 90
      %v349 = vpop.permute.xlu0 %348
      %vm350 = vcmask 736256
      %v351 = vsel %vm350, %v343, %v345
      %v352 = vsel %vm350, %v345, %v347
      %v353 = vsel %vm350, %v347, %v349
      %vm354 = vcmask 1041408
      %v356 = vsel %vm354, %v241, %v259
      %v359 = vsel %vm354, %v236, %v260
      %v362 = vsel %vm354, %v237, %v261
      %vm363 = vcmask 1043456
      %v365 = vsel %vm363, %v356, %v275
      %v367 = vsel %vm363, %v359, %v276
      %v369 = vsel %vm363, %v362, %v277
      %vm370 = vcmask 1045504
      %v372 = vsel %vm370, %v365, %v291
      %v375 = vsel %vm370, %v367, %v292
      %v378 = vsel %vm370, %v369, %v293
      %v382 = vsel %vm354, %v303, %v315
      %v385 = vsel %vm354, %v304, %v316
      %v388 = vsel %vm354, %v305, %v317
      %v390 = vsel %vm363, %v382, %v327
      %v392 = vsel %vm363, %v385, %v328
      %v394 = vsel %vm363, %v388, %v329
      %v396 = vsel %vm370, %v390, %v339
      %v399 = vsel %vm370, %v392, %v340
      %v402 = vsel %vm370, %v394, %v341
      %vm404 = vcmask 293888
      %v406 = vsel %vm404, %v218, 0
      %v409 = vsel %vm354, %v351, 0
      %v412 = vsel %vm354, %v352, 0
      %v415 = vsel %vm354, %v353, 0
      %417 = vmatpush.bf16.msra.mxu0 0
      %418 = vmatpush.bf16.msra.mxu0 0
      %419 = vmatpush.bf16.msra.mxu0 0
      %420 = vmatpush.bf16.msra.mxu0 0
      %421 = vmatpush.bf16.msra.mxu0 0
      %422 = vmatpush.bf16.msra.mxu0 %v409
      %423 = vmatpush.bf16.msra.mxu0 %v396
      %424 = vmatpush.bf16.msra.mxu0 %v372
      %425 = vmatmul.bf16.gmra.mxu0 %v406
      %v426 = vpop.f32.mrf.mxu0
      %v427 = vadd.f32 0.0, %v426
      %v428 = vpop.f32.mrf.mxu0
      %429 = vdwg.mxu0
      %430 = vmatpush.bf16.msra.mxu0 0
      %431 = vmatpush.bf16.msra.mxu0 0
      %432 = vmatpush.bf16.msra.mxu0 0
      %433 = vmatpush.bf16.msra.mxu0 0
      %434 = vmatpush.bf16.msra.mxu0 0
      %435 = vmatpush.bf16.msra.mxu0 %v412
      %436 = vmatpush.bf16.msra.mxu0 %v399
      %437 = vmatpush.bf16.msra.mxu0 %v375
      %438 = vmatmul.bf16.gmra.mxu0 %v406
      %v439 = vpop.f32.mrf.mxu0
      %v440 = vadd.f32 0.0, %v439
      %v441 = vpop.f32.mrf.mxu0
      %442 = vdwg.mxu0
      %443 = vmatpush.bf16.msra.mxu0 0
      %444 = vmatpush.bf16.msra.mxu0 0
      %445 = vmatpush.bf16.msra.mxu0 0
      %446 = vmatpush.bf16.msra.mxu0 0
      %447 = vmatpush.bf16.msra.mxu0 0
      %448 = vmatpush.bf16.msra.mxu0 %v415
      %449 = vmatpush.bf16.msra.mxu0 %v402
      %450 = vmatpush.bf16.msra.mxu0 %v378
      %451 = vmatmul.bf16.gmra.mxu0 %v406
      %v452 = vpop.f32.mrf.mxu0
      %v453 = vadd.f32 0.0, %v452
      %v454 = vpop.f32.mrf.mxu0
      %455 = vdwg.mxu0
      %v458 = vrot.slane %v440, 4
      %v459 = vsel %vm363, %v427, %v458
      %461 = vst [vmem:[%s211] sm:$0xff] %v459
      %462 = vst [vmem:[%s211 + $0x8] sm:$0xf] %v453
      %v464 = vperm.slane %v219, 0
      %v465 = vperm.slane %v219, 1
      %v466 = vperm.slane %v219, 2
      %v470 = vmul.f32 %v427, %v464
      %v471 = vmul.f32 %v440, %v465
      %v472 = vmul.f32 %v453, %v466
      %v473 = vsel %vm363, %v470, 0.0
      %v474 = vsel %vm363, %v471, 0.0
      %v475 = vadd.f32 %v473, %v474
      %v476 = vsel %vm363, %v472, 0.0
      %v477 = vadd.f32 %v475, %v476
      %478 = vadd.xlane.f32.xlu0 %v477
      %v479 = vpop.xlane.xlu0 %478
      %v480 = vadd.f32 %v479, 0.0
      %v481 = vmul.f32 %v470, %v427
      %v482 = vmul.f32 %v471, %v440
      %v483 = vmul.f32 %v472, %v453
      %v484 = vsel %vm363, %v481, 0.0
      %v485 = vsel %vm363, %v482, 0.0
      %v486 = vadd.f32 %v484, %v485
      %v487 = vsel %vm363, %v483, 0.0
      %v488 = vadd.f32 %v486, %v487
      %489 = vadd.xlane.f32.xlu0 %v488
      %v490 = vpop.xlane.xlu0 %489
      %v491 = vadd.f32 %v490, 0.0
      %s492 = scalar_lea.vmem %s204, 6
      %v493 = vld [vmem:[%s492] sm:$0x3f]
      %495 = vst [vmem:[#allocation1] ss:$4 sm:$0xff] %v493
      %v496 = vld.sshfl [vmem:[#allocation1] sm:$0xff pattern:$0x73625140]
      %v498 = vld.sshfl [vmem:[#allocation1 + $0x8] sm:$0xff pattern:$0x73625140]
      %v500 = vld.sshfl [vmem:[#allocation1 + $0x10] sm:$0xff pattern:$0x73625140]
      %502 = vrot.lane.b32.xlu0 %v496, 19
      %v503 = vpop.permute.xlu0 %502
      %504 = vrot.lane.b32.xlu0 %v498, 19
      %v505 = vpop.permute.xlu0 %504
      %506 = vrot.lane.b32.xlu0 %v500, 19
      %v507 = vpop.permute.xlu0 %506
      %v508 = vsel %vm235, %v503, %v505
      %v509 = vsel %vm235, %v505, %v507
      %v511 = vsel %vm238, 0, %v503
      %v513 = vsel %vm238, %v507, 0
      %v516 = vrot.slane %v511, 6
      %v517 = vrot.slane %v508, 6
      %v518 = vrot.slane %v509, 6
      %v519 = vrot.slane %v513, 6
      %520 = vrot.lane.b32.xlu0 %v516, 127
      %v521 = vpop.permute.xlu0 %520
      %522 = vrot.lane.b32.xlu0 %v517, 127
      %v523 = vpop.permute.xlu0 %522
      %524 = vrot.lane.b32.xlu0 %v518, 127
      %v525 = vpop.permute.xlu0 %524
      %526 = vrot.lane.b32.xlu0 %v519, 127
      %v527 = vpop.permute.xlu0 %526
      %v528 = vsel %vm258, %v521, %v523
      %v529 = vsel %vm258, %v523, %v525
      %v530 = vsel %vm258, %v525, %v527
      %v531 = vrot.slane %v511, 4
      %v532 = vrot.slane %v508, 4
      %v533 = vrot.slane %v509, 4
      %v534 = vrot.slane %v513, 4
      %535 = vrot.lane.b32.xlu0 %v531, 126
      %v536 = vpop.permute.xlu0 %535
      %537 = vrot.lane.b32.xlu0 %v532, 126
      %v538 = vpop.permute.xlu0 %537
      %539 = vrot.lane.b32.xlu0 %v533, 126
      %v540 = vpop.permute.xlu0 %539
      %541 = vrot.lane.b32.xlu0 %v534, 126
      %v542 = vpop.permute.xlu0 %541
      %v543 = vsel %vm274, %v536, %v538
      %v544 = vsel %vm274, %v538, %v540
      %v545 = vsel %vm274, %v540, %v542
      %v546 = vrot.slane %v511, 2
      %v547 = vrot.slane %v508, 2
      %v548 = vrot.slane %v509, 2
      %v549 = vrot.slane %v513, 2
      %550 = vrot.lane.b32.xlu0 %v546, 110
      %v551 = vpop.permute.xlu0 %550
      %552 = vrot.lane.b32.xlu0 %v547, 110
      %v553 = vpop.permute.xlu0 %552
      %554 = vrot.lane.b32.xlu0 %v548, 110
      %v555 = vpop.permute.xlu0 %554
      %556 = vrot.lane.b32.xlu0 %v549, 110
      %v557 = vpop.permute.xlu0 %556
      %v558 = vsel %vm290, %v551, %v553
      %v559 = vsel %vm290, %v553, %v555
      %v560 = vsel %vm290, %v555, %v557
      %561 = vrot.lane.b32.xlu0 %v511, 109
      %v562 = vpop.permute.xlu0 %561
      %563 = vrot.lane.b32.xlu0 %v508, 109
      %v564 = vpop.permute.xlu0 %563
      %565 = vrot.lane.b32.xlu0 %v509, 109
      %v566 = vpop.permute.xlu0 %565
      %567 = vrot.lane.b32.xlu0 %v513, 109
      %v568 = vpop.permute.xlu0 %567
      %v569 = vsel %vm302, %v562, %v564
      %v570 = vsel %vm302, %v564, %v566
      %v571 = vsel %vm302, %v566, %v568
      %572 = vrot.lane.b32.xlu0 %v516, 108
      %v573 = vpop.permute.xlu0 %572
      %574 = vrot.lane.b32.xlu0 %v517, 108
      %v575 = vpop.permute.xlu0 %574
      %576 = vrot.lane.b32.xlu0 %v518, 108
      %v577 = vpop.permute.xlu0 %576
      %578 = vrot.lane.b32.xlu0 %v519, 108
      %v579 = vpop.permute.xlu0 %578
      %v580 = vsel %vm314, %v573, %v575
      %v581 = vsel %vm314, %v575, %v577
      %v582 = vsel %vm314, %v577, %v579
      %583 = vrot.lane.b32.xlu0 %v531, 92
      %v584 = vpop.permute.xlu0 %583
      %585 = vrot.lane.b32.xlu0 %v532, 92
      %v586 = vpop.permute.xlu0 %585
      %587 = vrot.lane.b32.xlu0 %v533, 92
      %v588 = vpop.permute.xlu0 %587
      %589 = vrot.lane.b32.xlu0 %v534, 92
      %v590 = vpop.permute.xlu0 %589
      %v591 = vsel %vm326, %v584, %v586
      %v592 = vsel %vm326, %v586, %v588
      %v593 = vsel %vm326, %v588, %v590
      %594 = vrot.lane.b32.xlu0 %v546, 91
      %v595 = vpop.permute.xlu0 %594
      %596 = vrot.lane.b32.xlu0 %v547, 91
      %v597 = vpop.permute.xlu0 %596
      %598 = vrot.lane.b32.xlu0 %v548, 91
      %v599 = vpop.permute.xlu0 %598
      %600 = vrot.lane.b32.xlu0 %v549, 91
      %v601 = vpop.permute.xlu0 %600
      %v602 = vsel %vm338, %v595, %v597
      %v603 = vsel %vm338, %v597, %v599
      %v604 = vsel %vm338, %v599, %v601
      %605 = vrot.lane.b32.xlu0 %v511, 90
      %v606 = vpop.permute.xlu0 %605
      %607 = vrot.lane.b32.xlu0 %v508, 90
      %v608 = vpop.permute.xlu0 %607
      %609 = vrot.lane.b32.xlu0 %v509, 90
      %v610 = vpop.permute.xlu0 %609
      %611 = vrot.lane.b32.xlu0 %v513, 90
      %v612 = vpop.permute.xlu0 %611
      %v613 = vsel %vm350, %v606, %v608
      %v614 = vsel %vm350, %v608, %v610
      %v615 = vsel %vm350, %v610, %v612
      %v617 = vsel %vm354, %v511, %v528
      %v620 = vsel %vm354, %v508, %v529
      %v623 = vsel %vm354, %v509, %v530
      %v625 = vsel %vm363, %v617, %v543
      %v627 = vsel %vm363, %v620, %v544
      %v629 = vsel %vm363, %v623, %v545
      %v631 = vsel %vm370, %v625, %v558
      %v634 = vsel %vm370, %v627, %v559
      %v637 = vsel %vm370, %v629, %v560
      %v641 = vsel %vm354, %v569, %v580
      %v644 = vsel %vm354, %v570, %v581
      %v647 = vsel %vm354, %v571, %v582
      %v649 = vsel %vm363, %v641, %v591
      %v651 = vsel %vm363, %v644, %v592
      %v653 = vsel %vm363, %v647, %v593
      %v655 = vsel %vm370, %v649, %v602
      %v658 = vsel %vm370, %v651, %v603
      %v661 = vsel %vm370, %v653, %v604
      %v664 = vsel %vm354, %v613, 0
      %v667 = vsel %vm354, %v614, 0
      %v670 = vsel %vm354, %v615, 0
      %672 = vmatpush.bf16.msra.mxu0 0
      %673 = vmatpush.bf16.msra.mxu0 0
      %674 = vmatpush.bf16.msra.mxu0 0
      %675 = vmatpush.bf16.msra.mxu0 0
      %676 = vmatpush.bf16.msra.mxu0 0
      %677 = vmatpush.bf16.msra.mxu0 %v664
      %678 = vmatpush.bf16.msra.mxu0 %v655
      %679 = vmatpush.bf16.msra.mxu0 %v631
      %680 = vmatmul.bf16.gmra.mxu0 %v406
      %v681 = vpop.f32.mrf.mxu0
      %v682 = vadd.f32 0.0, %v681
      %v683 = vpop.f32.mrf.mxu0
      %684 = vdwg.mxu0
      %685 = vmatpush.bf16.msra.mxu0 0
      %686 = vmatpush.bf16.msra.mxu0 0
      %687 = vmatpush.bf16.msra.mxu0 0
      %688 = vmatpush.bf16.msra.mxu0 0
      %689 = vmatpush.bf16.msra.mxu0 0
      %690 = vmatpush.bf16.msra.mxu0 %v667
      %691 = vmatpush.bf16.msra.mxu0 %v658
      %692 = vmatpush.bf16.msra.mxu0 %v634
      %693 = vmatmul.bf16.gmra.mxu0 %v406
      %v694 = vpop.f32.mrf.mxu0
      %v695 = vadd.f32 0.0, %v694
      %v696 = vpop.f32.mrf.mxu0
      %697 = vdwg.mxu0
      %698 = vmatpush.bf16.msra.mxu0 0
      %699 = vmatpush.bf16.msra.mxu0 0
      %700 = vmatpush.bf16.msra.mxu0 0
      %701 = vmatpush.bf16.msra.mxu0 0
      %702 = vmatpush.bf16.msra.mxu0 0
      %703 = vmatpush.bf16.msra.mxu0 %v670
      %704 = vmatpush.bf16.msra.mxu0 %v661
      %705 = vmatpush.bf16.msra.mxu0 %v637
      %706 = vmatmul.bf16.gmra.mxu0 %v406
      %v707 = vpop.f32.mrf.mxu0
      %v708 = vadd.f32 0.0, %v707
      %v709 = vpop.f32.mrf.mxu0
      %710 = vdwg.mxu0
      %v713 = vrot.slane %v695, 4
      %v714 = vsel %vm363, %v682, %v713
      %s716 = scalar_lea.vmem %s211, 12
      %717 = vst [vmem:[%s716] sm:$0xff] %v714
      %718 = vst [vmem:[%s716 + $0x8] sm:$0xf] %v708
      %v719 = vmul.f32 %v682, %v464
      %v720 = vmul.f32 %v695, %v465
      %v721 = vmul.f32 %v708, %v466
      %v722 = vsel %vm363, %v719, 0.0
      %v723 = vsel %vm363, %v720, 0.0
      %v724 = vadd.f32 %v722, %v723
      %v725 = vsel %vm363, %v721, 0.0
      %v726 = vadd.f32 %v724, %v725
      %727 = vadd.xlane.f32.xlu0 %v726
      %v728 = vpop.xlane.xlu0 %727
      %v729 = vadd.f32 %v480, %v728
      %v730 = vmul.f32 %v719, %v682
      %v731 = vmul.f32 %v720, %v695
      %v732 = vmul.f32 %v721, %v708
      %v733 = vsel %vm363, %v730, 0.0
      %v734 = vsel %vm363, %v731, 0.0
      %v735 = vadd.f32 %v733, %v734
      %v736 = vsel %vm363, %v732, 0.0
      %v737 = vadd.f32 %v735, %v736
      %738 = vadd.xlane.f32.xlu0 %v737
      %v739 = vpop.xlane.xlu0 %738
      %v740 = vadd.f32 %v491, %v739
      %s741 = scalar_lea.vmem %s204, 12
      %v742 = vld [vmem:[%s741] sm:$0x3f]
      %744 = vst [vmem:[#allocation1] ss:$4 sm:$0xff] %v742
      %v745 = vld.sshfl [vmem:[#allocation1] sm:$0xff pattern:$0x73625140]
      %v747 = vld.sshfl [vmem:[#allocation1 + $0x8] sm:$0xff pattern:$0x73625140]
      %v749 = vld.sshfl [vmem:[#allocation1 + $0x10] sm:$0xff pattern:$0x73625140]
      %751 = vrot.lane.b32.xlu0 %v745, 19
      %v752 = vpop.permute.xlu0 %751
      %753 = vrot.lane.b32.xlu0 %v747, 19
      %v754 = vpop.permute.xlu0 %753
      %755 = vrot.lane.b32.xlu0 %v749, 19
      %v756 = vpop.permute.xlu0 %755
      %v757 = vsel %vm235, %v752, %v754
      %v758 = vsel %vm235, %v754, %v756
      %v760 = vsel %vm238, 0, %v752
      %v762 = vsel %vm238, %v756, 0
      %v765 = vrot.slane %v760, 6
      %v766 = vrot.slane %v757, 6
      %v767 = vrot.slane %v758, 6
      %v768 = vrot.slane %v762, 6
      %769 = vrot.lane.b32.xlu0 %v765, 127
      %v770 = vpop.permute.xlu0 %769
      %771 = vrot.lane.b32.xlu0 %v766, 127
      %v772 = vpop.permute.xlu0 %771
      %773 = vrot.lane.b32.xlu0 %v767, 127
      %v774 = vpop.permute.xlu0 %773
      %775 = vrot.lane.b32.xlu0 %v768, 127
      %v776 = vpop.permute.xlu0 %775
      %v777 = vsel %vm258, %v770, %v772
      %v778 = vsel %vm258, %v772, %v774
      %v779 = vsel %vm258, %v774, %v776
      %v780 = vrot.slane %v760, 4
      %v781 = vrot.slane %v757, 4
      %v782 = vrot.slane %v758, 4
      %v783 = vrot.slane %v762, 4
      %784 = vrot.lane.b32.xlu0 %v780, 126
      %v785 = vpop.permute.xlu0 %784
      %786 = vrot.lane.b32.xlu0 %v781, 126
      %v787 = vpop.permute.xlu0 %786
      %788 = vrot.lane.b32.xlu0 %v782, 126
      %v789 = vpop.permute.xlu0 %788
      %790 = vrot.lane.b32.xlu0 %v783, 126
      %v791 = vpop.permute.xlu0 %790
      %v792 = vsel %vm274, %v785, %v787
      %v793 = vsel %vm274, %v787, %v789
      %v794 = vsel %vm274, %v789, %v791
      %v795 = vrot.slane %v760, 2
      %v796 = vrot.slane %v757, 2
      %v797 = vrot.slane %v758, 2
      %v798 = vrot.slane %v762, 2
      %799 = vrot.lane.b32.xlu0 %v795, 110
      %v800 = vpop.permute.xlu0 %799
      %801 = vrot.lane.b32.xlu0 %v796, 110
      %v802 = vpop.permute.xlu0 %801
      %803 = vrot.lane.b32.xlu0 %v797, 110
      %v804 = vpop.permute.xlu0 %803
      %805 = vrot.lane.b32.xlu0 %v798, 110
      %v806 = vpop.permute.xlu0 %805
      %v807 = vsel %vm290, %v800, %v802
      %v808 = vsel %vm290, %v802, %v804
      %v809 = vsel %vm290, %v804, %v806
      %810 = vrot.lane.b32.xlu0 %v760, 109
      %v811 = vpop.permute.xlu0 %810
      %812 = vrot.lane.b32.xlu0 %v757, 109
      %v813 = vpop.permute.xlu0 %812
      %814 = vrot.lane.b32.xlu0 %v758, 109
      %v815 = vpop.permute.xlu0 %814
      %816 = vrot.lane.b32.xlu0 %v762, 109
      %v817 = vpop.permute.xlu0 %816
      %v818 = vsel %vm302, %v811, %v813
      %v819 = vsel %vm302, %v813, %v815
      %v820 = vsel %vm302, %v815, %v817
      %821 = vrot.lane.b32.xlu0 %v765, 108
      %v822 = vpop.permute.xlu0 %821
      %823 = vrot.lane.b32.xlu0 %v766, 108
      %v824 = vpop.permute.xlu0 %823
      %825 = vrot.lane.b32.xlu0 %v767, 108
      %v826 = vpop.permute.xlu0 %825
      %827 = vrot.lane.b32.xlu0 %v768, 108
      %v828 = vpop.permute.xlu0 %827
      %v829 = vsel %vm314, %v822, %v824
      %v830 = vsel %vm314, %v824, %v826
      %v831 = vsel %vm314, %v826, %v828
      %832 = vrot.lane.b32.xlu0 %v780, 92
      %v833 = vpop.permute.xlu0 %832
      %834 = vrot.lane.b32.xlu0 %v781, 92
      %v835 = vpop.permute.xlu0 %834
      %836 = vrot.lane.b32.xlu0 %v782, 92
      %v837 = vpop.permute.xlu0 %836
      %838 = vrot.lane.b32.xlu0 %v783, 92
      %v839 = vpop.permute.xlu0 %838
      %v840 = vsel %vm326, %v833, %v835
      %v841 = vsel %vm326, %v835, %v837
      %v842 = vsel %vm326, %v837, %v839
      %843 = vrot.lane.b32.xlu0 %v795, 91
      %v844 = vpop.permute.xlu0 %843
      %845 = vrot.lane.b32.xlu0 %v796, 91
      %v846 = vpop.permute.xlu0 %845
      %847 = vrot.lane.b32.xlu0 %v797, 91
      %v848 = vpop.permute.xlu0 %847
      %849 = vrot.lane.b32.xlu0 %v798, 91
      %v850 = vpop.permute.xlu0 %849
      %v851 = vsel %vm338, %v844, %v846
      %v852 = vsel %vm338, %v846, %v848
      %v853 = vsel %vm338, %v848, %v850
      %854 = vrot.lane.b32.xlu0 %v760, 90
      %v855 = vpop.permute.xlu0 %854
      %856 = vrot.lane.b32.xlu0 %v757, 90
      %v857 = vpop.permute.xlu0 %856
      %858 = vrot.lane.b32.xlu0 %v758, 90
      %v859 = vpop.permute.xlu0 %858
      %860 = vrot.lane.b32.xlu0 %v762, 90
      %v861 = vpop.permute.xlu0 %860
      %v862 = vsel %vm350, %v855, %v857
      %v863 = vsel %vm350, %v857, %v859
      %v864 = vsel %vm350, %v859, %v861
      %v866 = vsel %vm354, %v760, %v777
      %v869 = vsel %vm354, %v757, %v778
      %v872 = vsel %vm354, %v758, %v779
      %v874 = vsel %vm363, %v866, %v792
      %v876 = vsel %vm363, %v869, %v793
      %v878 = vsel %vm363, %v872, %v794
      %v880 = vsel %vm370, %v874, %v807
      %v883 = vsel %vm370, %v876, %v808
      %v886 = vsel %vm370, %v878, %v809
      %v890 = vsel %vm354, %v818, %v829
      %v893 = vsel %vm354, %v819, %v830
      %v896 = vsel %vm354, %v820, %v831
      %v898 = vsel %vm363, %v890, %v840
      %v900 = vsel %vm363, %v893, %v841
      %v902 = vsel %vm363, %v896, %v842
      %v904 = vsel %vm370, %v898, %v851
      %v907 = vsel %vm370, %v900, %v852
      %v910 = vsel %vm370, %v902, %v853
      %v913 = vsel %vm354, %v862, 0
      %v916 = vsel %vm354, %v863, 0
      %v919 = vsel %vm354, %v864, 0
      %921 = vmatpush.bf16.msra.mxu0 0
      %922 = vmatpush.bf16.msra.mxu0 0
      %923 = vmatpush.bf16.msra.mxu0 0
      %924 = vmatpush.bf16.msra.mxu0 0
      %925 = vmatpush.bf16.msra.mxu0 0
      %926 = vmatpush.bf16.msra.mxu0 %v913
      %927 = vmatpush.bf16.msra.mxu0 %v904
      %928 = vmatpush.bf16.msra.mxu0 %v880
      %929 = vmatmul.bf16.gmra.mxu0 %v406
      %v930 = vpop.f32.mrf.mxu0
      %v931 = vadd.f32 0.0, %v930
      %v932 = vpop.f32.mrf.mxu0
      %933 = vdwg.mxu0
      %934 = vmatpush.bf16.msra.mxu0 0
      %935 = vmatpush.bf16.msra.mxu0 0
      %936 = vmatpush.bf16.msra.mxu0 0
      %937 = vmatpush.bf16.msra.mxu0 0
      %938 = vmatpush.bf16.msra.mxu0 0
      %939 = vmatpush.bf16.msra.mxu0 %v916
      %940 = vmatpush.bf16.msra.mxu0 %v907
      %941 = vmatpush.bf16.msra.mxu0 %v883
      %942 = vmatmul.bf16.gmra.mxu0 %v406
      %v943 = vpop.f32.mrf.mxu0
      %v944 = vadd.f32 0.0, %v943
      %v945 = vpop.f32.mrf.mxu0
      %946 = vdwg.mxu0
      %947 = vmatpush.bf16.msra.mxu0 0
      %948 = vmatpush.bf16.msra.mxu0 0
      %949 = vmatpush.bf16.msra.mxu0 0
      %950 = vmatpush.bf16.msra.mxu0 0
      %951 = vmatpush.bf16.msra.mxu0 0
      %952 = vmatpush.bf16.msra.mxu0 %v919
      %953 = vmatpush.bf16.msra.mxu0 %v910
      %954 = vmatpush.bf16.msra.mxu0 %v886
      %955 = vmatmul.bf16.gmra.mxu0 %v406
      %v956 = vpop.f32.mrf.mxu0
      %v957 = vadd.f32 0.0, %v956
      %v958 = vpop.f32.mrf.mxu0
      %959 = vdwg.mxu0
      %v962 = vrot.slane %v944, 4
      %v963 = vsel %vm363, %v931, %v962
      %s965 = scalar_lea.vmem %s211, 24
      %966 = vst [vmem:[%s965] sm:$0xff] %v963
      %967 = vst [vmem:[%s965 + $0x8] sm:$0xf] %v957
      %v968 = vmul.f32 %v931, %v464
      %v969 = vmul.f32 %v944, %v465
      %v970 = vmul.f32 %v957, %v466
      %v971 = vsel %vm363, %v968, 0.0
      %v972 = vsel %vm363, %v969, 0.0
      %v973 = vadd.f32 %v971, %v972
      %v974 = vsel %vm363, %v970, 0.0
      %v975 = vadd.f32 %v973, %v974
      %976 = vadd.xlane.f32.xlu0 %v975
      %v977 = vpop.xlane.xlu0 %976
      %v978 = vadd.f32 %v729, %v977
      %v979 = vmul.f32 %v968, %v931
      %v980 = vmul.f32 %v969, %v944
      %v981 = vmul.f32 %v970, %v957
      %v982 = vsel %vm363, %v979, 0.0
      %v983 = vsel %vm363, %v980, 0.0
      %v984 = vadd.f32 %v982, %v983
      %v985 = vsel %vm363, %v981, 0.0
      %v986 = vadd.f32 %v984, %v985
      %987 = vadd.xlane.f32.xlu0 %v986
      %v988 = vpop.xlane.xlu0 %987
      %v989 = vadd.f32 %v740, %v988
      %s990 = scalar_lea.vmem %s204, 18
      %v991 = vld [vmem:[%s990] sm:$0x3f]
      %993 = vst [vmem:[#allocation1] ss:$4 sm:$0xff] %v991
      %v994 = vld.sshfl [vmem:[#allocation1] sm:$0xff pattern:$0x73625140]
      %v996 = vld.sshfl [vmem:[#allocation1 + $0x8] sm:$0xff pattern:$0x73625140]
      %v998 = vld.sshfl [vmem:[#allocation1 + $0x10] sm:$0xff pattern:$0x73625140]
      %1000 = vrot.lane.b32.xlu0 %v994, 19
      %v1001 = vpop.permute.xlu0 %1000
      %1002 = vrot.lane.b32.xlu0 %v996, 19
      %v1003 = vpop.permute.xlu0 %1002
      %1004 = vrot.lane.b32.xlu0 %v998, 19
      %v1005 = vpop.permute.xlu0 %1004
      %v1006 = vsel %vm235, %v1001, %v1003
      %v1007 = vsel %vm235, %v1003, %v1005
      %v1009 = vsel %vm238, 0, %v1001
      %v1011 = vsel %vm238, %v1005, 0
      %v1014 = vrot.slane %v1009, 6
      %v1015 = vrot.slane %v1006, 6
      %v1016 = vrot.slane %v1007, 6
      %v1017 = vrot.slane %v1011, 6
      %1018 = vrot.lane.b32.xlu0 %v1014, 127
      %v1019 = vpop.permute.xlu0 %1018
      %1020 = vrot.lane.b32.xlu0 %v1015, 127
      %v1021 = vpop.permute.xlu0 %1020
      %1022 = vrot.lane.b32.xlu0 %v1016, 127
      %v1023 = vpop.permute.xlu0 %1022
      %1024 = vrot.lane.b32.xlu0 %v1017, 127
      %v1025 = vpop.permute.xlu0 %1024
      %v1026 = vsel %vm258, %v1019, %v1021
      %v1027 = vsel %vm258, %v1021, %v1023
      %v1028 = vsel %vm258, %v1023, %v1025
      %v1029 = vrot.slane %v1009, 4
      %v1030 = vrot.slane %v1006, 4
      %v1031 = vrot.slane %v1007, 4
      %v1032 = vrot.slane %v1011, 4
      %1033 = vrot.lane.b32.xlu0 %v1029, 126
      %v1034 = vpop.permute.xlu0 %1033
      %1035 = vrot.lane.b32.xlu0 %v1030, 126
      %v1036 = vpop.permute.xlu0 %1035
      %1037 = vrot.lane.b32.xlu0 %v1031, 126
      %v1038 = vpop.permute.xlu0 %1037
      %1039 = vrot.lane.b32.xlu0 %v1032, 126
      %v1040 = vpop.permute.xlu0 %1039
      %v1041 = vsel %vm274, %v1034, %v1036
      %v1042 = vsel %vm274, %v1036, %v1038
      %v1043 = vsel %vm274, %v1038, %v1040
      %v1044 = vrot.slane %v1009, 2
      %v1045 = vrot.slane %v1006, 2
      %v1046 = vrot.slane %v1007, 2
      %v1047 = vrot.slane %v1011, 2
      %1048 = vrot.lane.b32.xlu0 %v1044, 110
      %v1049 = vpop.permute.xlu0 %1048
      %1050 = vrot.lane.b32.xlu0 %v1045, 110
      %v1051 = vpop.permute.xlu0 %1050
      %1052 = vrot.lane.b32.xlu0 %v1046, 110
      %v1053 = vpop.permute.xlu0 %1052
      %1054 = vrot.lane.b32.xlu0 %v1047, 110
      %v1055 = vpop.permute.xlu0 %1054
      %v1056 = vsel %vm290, %v1049, %v1051
      %v1057 = vsel %vm290, %v1051, %v1053
      %v1058 = vsel %vm290, %v1053, %v1055
      %1059 = vrot.lane.b32.xlu0 %v1009, 109
      %v1060 = vpop.permute.xlu0 %1059
      %1061 = vrot.lane.b32.xlu0 %v1006, 109
      %v1062 = vpop.permute.xlu0 %1061
      %1063 = vrot.lane.b32.xlu0 %v1007, 109
      %v1064 = vpop.permute.xlu0 %1063
      %1065 = vrot.lane.b32.xlu0 %v1011, 109
      %v1066 = vpop.permute.xlu0 %1065
      %v1067 = vsel %vm302, %v1060, %v1062
      %v1068 = vsel %vm302, %v1062, %v1064
      %v1069 = vsel %vm302, %v1064, %v1066
      %1070 = vrot.lane.b32.xlu0 %v1014, 108
      %v1071 = vpop.permute.xlu0 %1070
      %1072 = vrot.lane.b32.xlu0 %v1015, 108
      %v1073 = vpop.permute.xlu0 %1072
      %1074 = vrot.lane.b32.xlu0 %v1016, 108
      %v1075 = vpop.permute.xlu0 %1074
      %1076 = vrot.lane.b32.xlu0 %v1017, 108
      %v1077 = vpop.permute.xlu0 %1076
      %v1078 = vsel %vm314, %v1071, %v1073
      %v1079 = vsel %vm314, %v1073, %v1075
      %v1080 = vsel %vm314, %v1075, %v1077
      %1081 = vrot.lane.b32.xlu0 %v1029, 92
      %v1082 = vpop.permute.xlu0 %1081
      %1083 = vrot.lane.b32.xlu0 %v1030, 92
      %v1084 = vpop.permute.xlu0 %1083
      %1085 = vrot.lane.b32.xlu0 %v1031, 92
      %v1086 = vpop.permute.xlu0 %1085
      %1087 = vrot.lane.b32.xlu0 %v1032, 92
      %v1088 = vpop.permute.xlu0 %1087
      %v1089 = vsel %vm326, %v1082, %v1084
      %v1090 = vsel %vm326, %v1084, %v1086
      %v1091 = vsel %vm326, %v1086, %v1088
      %1092 = vrot.lane.b32.xlu0 %v1044, 91
      %v1093 = vpop.permute.xlu0 %1092
      %1094 = vrot.lane.b32.xlu0 %v1045, 91
      %v1095 = vpop.permute.xlu0 %1094
      %1096 = vrot.lane.b32.xlu0 %v1046, 91
      %v1097 = vpop.permute.xlu0 %1096
      %1098 = vrot.lane.b32.xlu0 %v1047, 91
      %v1099 = vpop.permute.xlu0 %1098
      %v1100 = vsel %vm338, %v1093, %v1095
      %v1101 = vsel %vm338, %v1095, %v1097
      %v1102 = vsel %vm338, %v1097, %v1099
      %1103 = vrot.lane.b32.xlu0 %v1009, 90
      %v1104 = vpop.permute.xlu0 %1103
      %1105 = vrot.lane.b32.xlu0 %v1006, 90
      %v1106 = vpop.permute.xlu0 %1105
      %1107 = vrot.lane.b32.xlu0 %v1007, 90
      %v1108 = vpop.permute.xlu0 %1107
      %1109 = vrot.lane.b32.xlu0 %v1011, 90
      %v1110 = vpop.permute.xlu0 %1109
      %v1111 = vsel %vm350, %v1104, %v1106
      %v1112 = vsel %vm350, %v1106, %v1108
      %v1113 = vsel %vm350, %v1108, %v1110
      %v1115 = vsel %vm354, %v1009, %v1026
      %v1118 = vsel %vm354, %v1006, %v1027
      %v1121 = vsel %vm354, %v1007, %v1028
      %v1123 = vsel %vm363, %v1115, %v1041
      %v1125 = vsel %vm363, %v1118, %v1042
      %v1127 = vsel %vm363, %v1121, %v1043
      %v1129 = vsel %vm370, %v1123, %v1056
      %v1132 = vsel %vm370, %v1125, %v1057
      %v1135 = vsel %vm370, %v1127, %v1058
      %v1139 = vsel %vm354, %v1067, %v1078
      %v1142 = vsel %vm354, %v1068, %v1079
      %v1145 = vsel %vm354, %v1069, %v1080
      %v1147 = vsel %vm363, %v1139, %v1089
      %v1149 = vsel %vm363, %v1142, %v1090
      %v1151 = vsel %vm363, %v1145, %v1091
      %v1153 = vsel %vm370, %v1147, %v1100
      %v1156 = vsel %vm370, %v1149, %v1101
      %v1159 = vsel %vm370, %v1151, %v1102
      %v1162 = vsel %vm354, %v1111, 0
      %v1165 = vsel %vm354, %v1112, 0
      %v1168 = vsel %vm354, %v1113, 0
      %1170 = vmatpush.bf16.msra.mxu0 0
      %1171 = vmatpush.bf16.msra.mxu0 0
      %1172 = vmatpush.bf16.msra.mxu0 0
      %1173 = vmatpush.bf16.msra.mxu0 0
      %1174 = vmatpush.bf16.msra.mxu0 0
      %1175 = vmatpush.bf16.msra.mxu0 %v1162
      %1176 = vmatpush.bf16.msra.mxu0 %v1153
      %1177 = vmatpush.bf16.msra.mxu0 %v1129
      %1178 = vmatmul.bf16.gmra.mxu0 %v406
      %v1179 = vpop.f32.mrf.mxu0
      %v1180 = vadd.f32 0.0, %v1179
      %v1181 = vpop.f32.mrf.mxu0
      %1182 = vdwg.mxu0
      %1183 = vmatpush.bf16.msra.mxu0 0
      %1184 = vmatpush.bf16.msra.mxu0 0
      %1185 = vmatpush.bf16.msra.mxu0 0
      %1186 = vmatpush.bf16.msra.mxu0 0
      %1187 = vmatpush.bf16.msra.mxu0 0
      %1188 = vmatpush.bf16.msra.mxu0 %v1165
      %1189 = vmatpush.bf16.msra.mxu0 %v1156
      %1190 = vmatpush.bf16.msra.mxu0 %v1132
      %1191 = vmatmul.bf16.gmra.mxu0 %v406
      %v1192 = vpop.f32.mrf.mxu0
      %v1193 = vadd.f32 0.0, %v1192
      %v1194 = vpop.f32.mrf.mxu0
      %1195 = vdwg.mxu0
      %1196 = vmatpush.bf16.msra.mxu0 0
      %1197 = vmatpush.bf16.msra.mxu0 0
      %1198 = vmatpush.bf16.msra.mxu0 0
      %1199 = vmatpush.bf16.msra.mxu0 0
      %1200 = vmatpush.bf16.msra.mxu0 0
      %1201 = vmatpush.bf16.msra.mxu0 %v1168
      %1202 = vmatpush.bf16.msra.mxu0 %v1159
      %1203 = vmatpush.bf16.msra.mxu0 %v1135
      %1204 = vmatmul.bf16.gmra.mxu0 %v406
      %v1205 = vpop.f32.mrf.mxu0
      %v1206 = vadd.f32 0.0, %v1205
      %v1207 = vpop.f32.mrf.mxu0
      %1208 = vdwg.mxu0
      %v1211 = vrot.slane %v1193, 4
      %v1212 = vsel %vm363, %v1180, %v1211
      %s1214 = scalar_lea.vmem %s211, 36
      %1215 = vst [vmem:[%s1214] sm:$0xff] %v1212
      %1216 = vst [vmem:[%s1214 + $0x8] sm:$0xf] %v1206
      %v1217 = vmul.f32 %v1180, %v464
      %v1218 = vmul.f32 %v1193, %v465
      %v1219 = vmul.f32 %v1206, %v466
      %v1220 = vsel %vm363, %v1217, 0.0
      %v1221 = vsel %vm363, %v1218, 0.0
      %v1222 = vadd.f32 %v1220, %v1221
      %v1223 = vsel %vm363, %v1219, 0.0
      %v1224 = vadd.f32 %v1222, %v1223
      %1225 = vadd.xlane.f32.xlu0 %v1224
      %v1226 = vpop.xlane.xlu0 %1225
      %v1227 = vadd.f32 %v978, %v1226
      %v1228 = vmul.f32 %v1217, %v1180
      %v1229 = vmul.f32 %v1218, %v1193
      %v1230 = vmul.f32 %v1219, %v1206
      %v1231 = vsel %vm363, %v1228, 0.0
      %v1232 = vsel %vm363, %v1229, 0.0
      %v1233 = vadd.f32 %v1231, %v1232
      %v1234 = vsel %vm363, %v1230, 0.0
      %v1235 = vadd.f32 %v1233, %v1234
      %1236 = vadd.xlane.f32.xlu0 %v1235
      %v1237 = vpop.xlane.xlu0 %1236
      %v1238 = vadd.f32 %v989, %v1237
      %vm1239 = vcmask 7168
      %v1240 = vsel %vm1239, %v1227, %v1238
      %vm1241 = vcmask 11264
      %1242 = vst.msk [vmem:[%s216] sm:$0xf] %vm1241, %v1240
      %s1243 = smul.u32 4, %s16
      %p1244 = scmp.lt.s32.totalorder %s1243, 7
      %s1245 = scalar_select %p1244, %s1243, 7
      %s1246 = smul.addr %s1245, 3
      %s1247 = smul.addr %s1246, 4
      %s1248 = scalar_lea.vmem %s3, %s1247
      %p1249 = scmp.lt.s32.totalorder %s16, 1
      %s1250 = scalar_select %p1249, %s16, 1
      %s1251 = smul.addr %s1250, 4
      %s1252 = scalar_lea.vmem %s4, %s1251
      // Predicated region
      $region33: #{basic_block_forward.6} parent=31 // pred_check
        %p1253 = pneg %p102
      $region34: #{basic_block_forward.6} parent=31 // pred_check_branch
        %1255 = sbr.rel (%p1253) target = $region36
      $region35: #{basic_block_forward.6} parent=31 // pred_region
        %s1256 = smul.u32 4, %s16
      $region36: #{basic_block_forward.6} parent=31 // pred_fallthru
        _
      // Predicated region
      $region37: #{basic_block_forward.6} parent=31 // pred_check
        %p1257 = pneg %p128
      $region38: #{basic_block_forward.6} parent=31 // pred_check_branch
        %1259 = sbr.rel (%p1257) target = $region40
      $region39: #{basic_block_forward.6} parent=31 // pred_region
        _
      $region40: #{basic_block_forward.6} parent=31 // pred_fallthru
        _
    $region32: #{basic_block_forward.6} parent=5 // pred_fallthru
      _
    %p1260 = scmp.le.s32.totalorder 2, %s11
    // Predicated region
    $region41: #{basic_block_forward.6} parent=5 // pred_check
      %p1261 = pneg %p1260
    $region42: #{basic_block_forward.6} parent=5 // pred_check_branch
      %1263 = sbr.rel (%p1261) target = $region44
    $region43: #{basic_block_forward.6} parent=5 // pred_region
      %s1264 = ssub.s32 %s11, 2
      // Predicated region
      $region45: #{basic_block_forward.6} parent=43 // pred_check
        %p1265 = pneg %p108
      $region46: #{basic_block_forward.6} parent=43 // pred_check_branch
        %1267 = sbr.rel (%p1265) target = $region48
      $region47: #{basic_block_forward.6} parent=43 // pred_region
        %s1268 = smul.u32 4, %s17
        %p1269 = scmp.lt.s32.totalorder %s1268, 7
        %s1270 = scalar_select %p1269, %s1268, 7
        %s1271 = smul.addr %s1270, 3
        %s1272 = smul.addr %s1271, 4
        %s1273 = scalar_lea.vmem %s3, %s1272
      $region48: #{basic_block_forward.6} parent=43 // pred_fallthru
        _
      // Predicated region
      $region49: #{basic_block_forward.6} parent=43 // pred_check
        %p1274 = pneg %p134
      $region50: #{basic_block_forward.6} parent=43 // pred_check_branch
        %1276 = sbr.rel (%p1274) target = $region52
      $region51: #{basic_block_forward.6} parent=43 // pred_region
        %p1277 = scmp.lt.s32.totalorder %s17, 1
        %s1278 = scalar_select %p1277, %s17, 1
        %s1279 = smul.addr %s1278, 4
        %s1280 = scalar_lea.vmem %s4, %s1279
      $region52: #{basic_block_forward.6} parent=43 // pred_fallthru
        _
    $region44: #{basic_block_forward.6} parent=5 // pred_fallthru
      _
  $region6: #{basic_block_forward.6} parent=0 // loop_footer
    %s15 = sadd.s32 1, %s11
  $region7: #{basic_block_forward.6} parent=0 // loop_footer_branch
    %10 = sbr.rel target = $region3
  $region8: #{basic_block_forward.6} parent=0 // loop_exit
    _

// kernel: basic_block_forward.4
$region0: #{basic_block_forward.4}
  #allocation0 [shape = 'u32[]', space=smem, size = 0x4, offset = 0x4, fixed_abs, tag = 'smem constant byte address 0x4 - core index']
  #allocation1 [shape = 'u32[72,128]{1,0:T(1,128)}', space=vmem, size = 0x9000, scoped, tag = 'internal scratch']
  %s0 = inlined_call_operand.vmem [shape: f32[8,4,384], index: 0, kind: input, shape index: {}]
  %s1 = inlined_call_operand.vmem [shape: bf16[4,36], index: 1, kind: input, shape index: {}]
  %s2 = inlined_call_operand.vmem [shape: f32[1,384], index: 2, kind: input, shape index: {}]
  %s3 = inlined_call_operand.vmem [shape: f32[8,4,384], index: 3, kind: output, shape index: {0}]
  %s4 = inlined_call_operand.vmem [shape: f32[2,4,2], index: 4, kind: output, shape index: {1}]
  %5 = xla_tuple %s3, %s4
  %s6 = sld [smem:[#allocation0]]
  $region53: #{basic_block_forward.4} parent=0
    _
  %s8 = ssub.s32 1, %s6
  %s9 = scalar_select 0, %s8, %s6
  loop: start=0, step=1, limit=4
  $region2: #{basic_block_forward.4} parent=0 // loop_pre_header
    _
  $region3: #{basic_block_forward.4} parent=0 // loop_header
    %s11 = sphi 0, %s15
    %p12 = scmp.ge.s32.totalorder %s11, 4
    %s21 = sphi 0, %s23
    %s24 = sphi 0, %s21
    %s25 = sphi 0, %s24
    %s41 = sphi 0, %s25
    %s45 = sphi 0, %s45
    %s47 = sphi 0, %s45
    %s48 = sphi 0, %s47
    %s62 = sphi 0, %s48
    %s66 = sphi 0, %s66
    %s68 = sphi 0, %s66
    %s69 = sphi 0, %s68
    %s83 = sphi 0, %s69
    %s89 = sphi 0, %s91
    %s92 = sphi 0, %s89
    %s93 = sphi 0, %s92
    %s109 = sphi 0, %s93
    %s115 = sphi 0, %s117
    %s118 = sphi 0, %s115
    %s119 = sphi 0, %s118
    %s135 = sphi 0, %s119
  $region4: #{basic_block_forward.4} parent=0 // loop_header_branch
    %14 = sbr.rel (%p12) target = $region8
  $region5: #{basic_block_forward.4} parent=0 // loop_body
    %s16 = ssub.s32 %s11, 1
    %s17 = ssub.s32 %s11, 2
    %s18 = sadd.s32 %s11, 1
    %s19 = ssub.s32 %s11, %s18
    %p20 = scmp.eq.s32.totalorder %s19, 0
    %s22 = sadd.s32 %s21, 1
    %s23 = scalar_select %p20, %s21, %s22
    %p26 = pneg %p20
    %p27 = scmp.eq.s32.totalorder %s11, 1
    %p28 = por %p26, %p27
    %p29 = scmp.ne.s32.totalorder %s21, %s24
    %p30 = scmp.eq.s32.totalorder %s11, 0
    %p31 = por %p29, %p30
    %p32 = scmp.ne.s32.totalorder %s21, %s24
    %p33 = scmp.eq.s32.totalorder %s16, 1
    %p34 = por %p32, %p33
    %p35 = scmp.ne.s32.totalorder %s24, %s25
    %p36 = scmp.eq.s32.totalorder %s16, 0
    %p37 = por %p35, %p36
    %p38 = scmp.ne.s32.totalorder %s24, %s25
    %p39 = scmp.eq.s32.totalorder %s17, 1
    %p40 = por %p38, %p39
    %p42 = scmp.ne.s32.totalorder %s25, %s41
    %p43 = scmp.eq.s32.totalorder %s17, 0
    %p44 = por %p42, %p43
    %s46 = sadd.s32 %s45, 1
    %p49 = scmp.eq.s32.totalorder %s11, 1
    %p50 = scmp.ne.s32.totalorder %s45, %s47
    %p51 = scmp.eq.s32.totalorder %s11, 0
    %p52 = por %p50, %p51
    %p53 = scmp.ne.s32.totalorder %s45, %s47
    %p54 = scmp.eq.s32.totalorder %s16, 1
    %p55 = por %p53, %p54
    %p56 = scmp.ne.s32.totalorder %s47, %s48
    %p57 = scmp.eq.s32.totalorder %s16, 0
    %p58 = por %p56, %p57
    %p59 = scmp.ne.s32.totalorder %s47, %s48
    %p60 = scmp.eq.s32.totalorder %s17, 1
    %p61 = por %p59, %p60
    %p63 = scmp.ne.s32.totalorder %s48, %s62
    %p64 = scmp.eq.s32.totalorder %s17, 0
    %p65 = por %p63, %p64
    %s67 = sadd.s32 %s66, 1
    %p70 = scmp.eq.s32.totalorder %s11, 1
    %p71 = scmp.ne.s32.totalorder %s66, %s68
    %p72 = scmp.eq.s32.totalorder %s11, 0
    %p73 = por %p71, %p72
    %p74 = scmp.ne.s32.totalorder %s66, %s68
    %p75 = scmp.eq.s32.totalorder %s16, 1
    %p76 = por %p74, %p75
    %p77 = scmp.ne.s32.totalorder %s68, %s69
    %p78 = scmp.eq.s32.totalorder %s16, 0
    %p79 = por %p77, %p78
    %p80 = scmp.ne.s32.totalorder %s68, %s69
    %p81 = scmp.eq.s32.totalorder %s17, 1
    %p82 = por %p80, %p81
    %p84 = scmp.ne.s32.totalorder %s69, %s83
    %p85 = scmp.eq.s32.totalorder %s17, 0
    %p86 = por %p84, %p85
    %s87 = ssub.s32 %s11, %s18
    %p88 = scmp.eq.s32.totalorder %s87, 0
    %s90 = sadd.s32 %s89, 1
    %s91 = scalar_select %p88, %s89, %s90
    %p94 = pneg %p88
    %p95 = scmp.eq.s32.totalorder %s11, 1
    %p96 = por %p94, %p95
    %p97 = scmp.ne.s32.totalorder %s89, %s92
    %p98 = scmp.eq.s32.totalorder %s11, 0
    %p99 = por %p97, %p98
    %p100 = scmp.ne.s32.totalorder %s89, %s92
    %p101 = scmp.eq.s32.totalorder %s16, 1
    %p102 = por %p100, %p101
    %p103 = scmp.ne.s32.totalorder %s92, %s93
    %p104 = scmp.eq.s32.totalorder %s16, 0
    %p105 = por %p103, %p104
    %p106 = scmp.ne.s32.totalorder %s92, %s93
    %p107 = scmp.eq.s32.totalorder %s17, 1
    %p108 = por %p106, %p107
    %p110 = scmp.ne.s32.totalorder %s93, %s109
    %p111 = scmp.eq.s32.totalorder %s17, 0
    %p112 = por %p110, %p111
    %s113 = ssub.s32 %s11, %s18
    %p114 = scmp.eq.s32.totalorder %s113, 0
    %s116 = sadd.s32 %s115, 1
    %s117 = scalar_select %p114, %s115, %s116
    %p120 = pneg %p114
    %p121 = scmp.eq.s32.totalorder %s11, 1
    %p122 = por %p120, %p121
    %p123 = scmp.ne.s32.totalorder %s115, %s118
    %p124 = scmp.eq.s32.totalorder %s11, 0
    %p125 = por %p123, %p124
    %p126 = scmp.ne.s32.totalorder %s115, %s118
    %p127 = scmp.eq.s32.totalorder %s16, 1
    %p128 = por %p126, %p127
    %p129 = scmp.ne.s32.totalorder %s118, %s119
    %p130 = scmp.eq.s32.totalorder %s16, 0
    %p131 = por %p129, %p130
    %p132 = scmp.ne.s32.totalorder %s118, %s119
    %p133 = scmp.eq.s32.totalorder %s17, 1
    %p134 = por %p132, %p133
    %p136 = scmp.ne.s32.totalorder %s119, %s135
    %p137 = scmp.eq.s32.totalorder %s17, 0
    %p138 = por %p136, %p137
    %p139 = scmp.le.s32.totalorder 1, %s11
    %p140 = scmp.lt.s32.totalorder %s11, 3
    %p141 = pnand %p139, %p140
    %p142 = pneg %p141
    // Predicated region
    $region9: #{basic_block_forward.4} parent=5 // pred_check
      _
    $region10: #{basic_block_forward.4} parent=5 // pred_check_branch
      %144 = sbr.rel (%p141) target = $region12
    $region11: #{basic_block_forward.4} parent=5 // pred_region
      %s145 = ssub.s32 %s11, 1
      // Predicated region
      $region13: #{basic_block_forward.4} parent=11 // pred_check
        %p146 = pneg %p58
      $region14: #{basic_block_forward.4} parent=11 // pred_check_branch
        %148 = sbr.rel (%p146) target = $region16
      $region15: #{basic_block_forward.4} parent=11 // pred_region
        _
      $region16: #{basic_block_forward.4} parent=11 // pred_fallthru
        _
      // Predicated region
      $region17: #{basic_block_forward.4} parent=11 // pred_check
        %p149 = pneg %p79
      $region18: #{basic_block_forward.4} parent=11 // pred_check_branch
        %151 = sbr.rel (%p149) target = $region20
      $region19: #{basic_block_forward.4} parent=11 // pred_region
        _
      $region20: #{basic_block_forward.4} parent=11 // pred_fallthru
        _
    $region12: #{basic_block_forward.4} parent=5 // pred_fallthru
      _
    %p152 = scmp.lt.s32.totalorder %s11, 2
    // Predicated region
    $region21: #{basic_block_forward.4} parent=5 // pred_check
      %p153 = pneg %p152
    $region22: #{basic_block_forward.4} parent=5 // pred_check_branch
      %155 = sbr.rel (%p153) target = $region24
    $region23: #{basic_block_forward.4} parent=5 // pred_region
      // Predicated region
      $region25: #{basic_block_forward.4} parent=23 // pred_check
        %p156 = pneg %p31
      $region26: #{basic_block_forward.4} parent=23 // pred_check_branch
        %158 = sbr.rel (%p156) target = $region28
      $region27: #{basic_block_forward.4} parent=23 // pred_region
        %s159 = smul.u32 4, %s11
        %p160 = scmp.lt.s32.totalorder %s159, 7
        %s161 = scalar_select %p160, %s159, 7
        %s162 = smul.addr %s161, 3
        %s163 = smul.addr %s162, 4
        %s164 = scalar_lea.vmem %s0, %s163
        %s165 = smul.u32 4, %s11
      $region28: #{basic_block_forward.4} parent=23 // pred_fallthru
        _
    $region24: #{basic_block_forward.4} parent=5 // pred_fallthru
      _
    %p166 = scmp.le.s32.totalorder 1, %s11
    %p167 = scmp.lt.s32.totalorder %s11, 3
    %p168 = pnand %p166, %p167
    %p169 = pneg %p168
    // Predicated region
    $region29: #{basic_block_forward.4} parent=5 // pred_check
      _
    $region30: #{basic_block_forward.4} parent=5 // pred_check_branch
      %171 = sbr.rel (%p168) target = $region32
    $region31: #{basic_block_forward.4} parent=5 // pred_region
      %s172 = ssub.s32 %s11, 1
      %s173 = smul.u32 4, %s16
      %p174 = scmp.lt.s32.totalorder %s173, 7
      %s175 = scalar_select %p174, %s173, 7
      %s176 = smul.addr %s175, 3
      %s177 = smul.addr %s176, 4
      %s178 = scalar_lea.vmem %s0, %s177
      %p179 = pneg %p37
      %p180 = pneg %p34
      %p181 = pneg %p58
      %p182 = pneg %p55
      %p183 = pneg %p79
      %p184 = pneg %p76
      %p185 = pneg %p105
      %p186 = pneg %p102
      %s187 = smul.u32 4, %s16
      %p188 = scmp.lt.s32.totalorder %s187, 7
      %s189 = scalar_select %p188, %s187, 7
      %s190 = smul.addr %s189, 3
      %s191 = smul.addr %s190, 4
      %s192 = scalar_lea.vmem %s3, %s191
      %p193 = pneg %p131
      %p194 = pneg %p128
      %p195 = scmp.lt.s32.totalorder %s16, 1
      %s196 = scalar_select %p195, %s16, 1
      %s197 = smul.addr %s196, 4
      %s198 = scalar_lea.vmem %s4, %s197
      %s199 = smul.u32 4, %s16
      %p200 = scmp.lt.s32.totalorder %s199, 7
      %s201 = scalar_select %p200, %s199, 7
      %s202 = smul.addr %s201, 3
      %s203 = smul.addr %s202, 4
      %s204 = scalar_lea.vmem %s0, %s203
      %s205 = smul.u32 4, %s16
      %s206 = smul.u32 4, %s16
      %p207 = scmp.lt.s32.totalorder %s206, 7
      %s208 = scalar_select %p207, %s206, 7
      %s209 = smul.addr %s208, 3
      %s210 = smul.addr %s209, 4
      %s211 = scalar_lea.vmem %s3, %s210
      %s212 = smul.u32 4, %s16
      %p213 = scmp.lt.s32.totalorder %s16, 1
      %s214 = scalar_select %p213, %s16, 1
      %s215 = smul.addr %s214, 4
      %s216 = scalar_lea.vmem %s4, %s215
      %v218 = vld [vmem:[%s1] sm:$0x3]
      %v219 = vld [vmem:[%s2] sm:$0x7]
      %v220 = vld [vmem:[%s204] sm:$0xff]
      %v221 = vld [vmem:[%s204 + $0x8] sm:$0xf]
      %224 = vst [vmem:[#allocation1] ss:$2 sm:$0xff] %v220
      %s225 = scalar_lea.vmem [#allocation1], 16
      %226 = vst [vmem:[%s225] ss:$2 sm:$0xff] %v221
      %v227 = vld.sshfl [vmem:[#allocation1] sm:$0xff pattern:$0x75316420]
      %v228 = vld.sshfl [vmem:[#allocation1 + $0x8] sm:$0xff pattern:$0x75316420]
      %v229 = vld.sshfl [vmem:[#allocation1 + $0x10] sm:$0xff pattern:$0x75316420]
      %v233 = vpack.c.bf16 %v228, %v227
      %v234 = vpack.c.bf16 %v229, %v229
      %v237 = vunpack.c.l.b16 %v233
      %v238 = vunpack.c.h.b16 %v233
      %v239 = vunpack.c.l.b16 %v234
      %v240 = vpack.c.b16 %v237, %v237
      %v241 = vpack.c.b16 %v238, %v238
      %v242 = vpack.c.b16 %v239, %v239
      %243 = vrot.lane.b32.xlu0 %v240, 19
      %v244 = vpop.permute.xlu0 %243
      %245 = vrot.lane.b32.xlu0 %v241, 19
      %v246 = vpop.permute.xlu0 %245
      %247 = vrot.lane.b32.xlu0 %v242, 19
      %v248 = vpop.permute.xlu0 %247
      %vm249 = vcmask 154624
      %v250 = vsel %vm249, %v244, %v246
      %v251 = vsel %vm249, %v246, %v248
      %vm252 = vcmask 154624
      %v255 = vsel %vm252, 0, %v244
      %v257 = vsel %vm252, %v248, 0
      %v260 = vrot.slane %v255, 6
      %v261 = vrot.slane %v250, 6
      %v262 = vrot.slane %v251, 6
      %v263 = vrot.slane %v257, 6
      %264 = vrot.lane.b32.xlu0 %v260, 127
      %v265 = vpop.permute.xlu0 %264
      %266 = vrot.lane.b32.xlu0 %v261, 127
      %v267 = vpop.permute.xlu0 %266
      %268 = vrot.lane.b32.xlu0 %v262, 127
      %v269 = vpop.permute.xlu0 %268
      %270 = vrot.lane.b32.xlu0 %v263, 127
      %v271 = vpop.permute.xlu0 %270
      %vm272 = vcmask 1039360
      %v273 = vsel %vm272, %v265, %v267
      %v274 = vsel %vm272, %v267, %v269
      %v275 = vsel %vm272, %v269, %v271
      %v276 = vrot.slane %v255, 4
      %v277 = vrot.slane %v250, 4
      %v278 = vrot.slane %v251, 4
      %v279 = vrot.slane %v257, 4
      %280 = vrot.lane.b32.xlu0 %v276, 126
      %v281 = vpop.permute.xlu0 %280
      %282 = vrot.lane.b32.xlu0 %v277, 126
      %v283 = vpop.permute.xlu0 %282
      %284 = vrot.lane.b32.xlu0 %v278, 126
      %v285 = vpop.permute.xlu0 %284
      %286 = vrot.lane.b32.xlu0 %v279, 126
      %v287 = vpop.permute.xlu0 %286
      %vm288 = vcmask 1031168
      %v289 = vsel %vm288, %v281, %v283
      %v290 = vsel %vm288, %v283, %v285
      %v291 = vsel %vm288, %v285, %v287
      %v292 = vrot.slane %v255, 2
      %v293 = vrot.slane %v250, 2
      %v294 = vrot.slane %v251, 2
      %v295 = vrot.slane %v257, 2
      %296 = vrot.lane.b32.xlu0 %v292, 110
      %v297 = vpop.permute.xlu0 %296
      %298 = vrot.lane.b32.xlu0 %v293, 110
      %v299 = vpop.permute.xlu0 %298
      %300 = vrot.lane.b32.xlu0 %v294, 110
      %v301 = vpop.permute.xlu0 %300
      %302 = vrot.lane.b32.xlu0 %v295, 110
      %v303 = vpop.permute.xlu0 %302
      %vm304 = vcmask 900096
      %v305 = vsel %vm304, %v297, %v299
      %v306 = vsel %vm304, %v299, %v301
      %v307 = vsel %vm304, %v301, %v303
      %308 = vrot.lane.b32.xlu0 %v255, 109
      %v309 = vpop.permute.xlu0 %308
      %310 = vrot.lane.b32.xlu0 %v250, 109
      %v311 = vpop.permute.xlu0 %310
      %312 = vrot.lane.b32.xlu0 %v251, 109
      %v313 = vpop.permute.xlu0 %312
      %314 = vrot.lane.b32.xlu0 %v257, 109
      %v315 = vpop.permute.xlu0 %314
      %vm316 = vcmask 891904
      %v317 = vsel %vm316, %v309, %v311
      %v318 = vsel %vm316, %v311, %v313
      %v319 = vsel %vm316, %v313, %v315
      %320 = vrot.lane.b32.xlu0 %v260, 108
      %v321 = vpop.permute.xlu0 %320
      %322 = vrot.lane.b32.xlu0 %v261, 108
      %v323 = vpop.permute.xlu0 %322
      %324 = vrot.lane.b32.xlu0 %v262, 108
      %v325 = vpop.permute.xlu0 %324
      %326 = vrot.lane.b32.xlu0 %v263, 108
      %v327 = vpop.permute.xlu0 %326
      %vm328 = vcmask 883712
      %v329 = vsel %vm328, %v321, %v323
      %v330 = vsel %vm328, %v323, %v325
      %v331 = vsel %vm328, %v325, %v327
      %332 = vrot.lane.b32.xlu0 %v276, 92
      %v333 = vpop.permute.xlu0 %332
      %334 = vrot.lane.b32.xlu0 %v277, 92
      %v335 = vpop.permute.xlu0 %334
      %336 = vrot.lane.b32.xlu0 %v278, 92
      %v337 = vpop.permute.xlu0 %336
      %338 = vrot.lane.b32.xlu0 %v279, 92
      %v339 = vpop.permute.xlu0 %338
      %vm340 = vcmask 752640
      %v341 = vsel %vm340, %v333, %v335
      %v342 = vsel %vm340, %v335, %v337
      %v343 = vsel %vm340, %v337, %v339
      %344 = vrot.lane.b32.xlu0 %v292, 91
      %v345 = vpop.permute.xlu0 %344
      %346 = vrot.lane.b32.xlu0 %v293, 91
      %v347 = vpop.permute.xlu0 %346
      %348 = vrot.lane.b32.xlu0 %v294, 91
      %v349 = vpop.permute.xlu0 %348
      %350 = vrot.lane.b32.xlu0 %v295, 91
      %v351 = vpop.permute.xlu0 %350
      %vm352 = vcmask 744448
      %v353 = vsel %vm352, %v345, %v347
      %v354 = vsel %vm352, %v347, %v349
      %v355 = vsel %vm352, %v349, %v351
      %356 = vrot.lane.b32.xlu0 %v255, 90
      %v357 = vpop.permute.xlu0 %356
      %358 = vrot.lane.b32.xlu0 %v250, 90
      %v359 = vpop.permute.xlu0 %358
      %360 = vrot.lane.b32.xlu0 %v251, 90
      %v361 = vpop.permute.xlu0 %360
      %362 = vrot.lane.b32.xlu0 %v257, 90
      %v363 = vpop.permute.xlu0 %362
      %vm364 = vcmask 736256
      %v365 = vsel %vm364, %v357, %v359
      %v366 = vsel %vm364, %v359, %v361
      %v367 = vsel %vm364, %v361, %v363
      %vm368 = vcmask 1041408
      %v370 = vsel %vm368, %v255, %v273
      %v373 = vsel %vm368, %v250, %v274
      %v376 = vsel %vm368, %v251, %v275
      %vm377 = vcmask 1043456
      %v379 = vsel %vm377, %v370, %v289
      %v381 = vsel %vm377, %v373, %v290
      %v383 = vsel %vm377, %v376, %v291
      %vm384 = vcmask 1045504
      %v386 = vsel %vm384, %v379, %v305
      %v389 = vsel %vm384, %v381, %v306
      %v392 = vsel %vm384, %v383, %v307
      %v396 = vsel %vm368, %v317, %v329
      %v399 = vsel %vm368, %v318, %v330
      %v402 = vsel %vm368, %v319, %v331
      %v404 = vsel %vm377, %v396, %v341
      %v406 = vsel %vm377, %v399, %v342
      %v408 = vsel %vm377, %v402, %v343
      %v410 = vsel %vm384, %v404, %v353
      %v413 = vsel %vm384, %v406, %v354
      %v416 = vsel %vm384, %v408, %v355
      %vm418 = vcmask 293888
      %v420 = vsel %vm418, %v218, 0
      %v423 = vsel %vm368, %v365, 0
      %v426 = vsel %vm368, %v366, 0
      %v429 = vsel %vm368, %v367, 0
      %431 = vmatpush.bf16.msra.mxu0 0
      %432 = vmatpush.bf16.msra.mxu0 0
      %433 = vmatpush.bf16.msra.mxu0 0
      %434 = vmatpush.bf16.msra.mxu0 0
      %435 = vmatpush.bf16.msra.mxu0 0
      %436 = vmatpush.bf16.msra.mxu0 %v423
      %437 = vmatpush.bf16.msra.mxu0 %v410
      %438 = vmatpush.bf16.msra.mxu0 %v386
      %439 = vmatmul.bf16.gmra.mxu0 %v420
      %v440 = vpop.f32.mrf.mxu0
      %v441 = vadd.f32 0.0, %v440
      %v442 = vpop.f32.mrf.mxu0
      %443 = vdwg.mxu0
      %444 = vmatpush.bf16.msra.mxu0 0
      %445 = vmatpush.bf16.msra.mxu0 0
      %446 = vmatpush.bf16.msra.mxu0 0
      %447 = vmatpush.bf16.msra.mxu0 0
      %448 = vmatpush.bf16.msra.mxu0 0
      %449 = vmatpush.bf16.msra.mxu0 %v426
      %450 = vmatpush.bf16.msra.mxu0 %v413
      %451 = vmatpush.bf16.msra.mxu0 %v389
      %452 = vmatmul.bf16.gmra.mxu0 %v420
      %v453 = vpop.f32.mrf.mxu0
      %v454 = vadd.f32 0.0, %v453
      %v455 = vpop.f32.mrf.mxu0
      %456 = vdwg.mxu0
      %457 = vmatpush.bf16.msra.mxu0 0
      %458 = vmatpush.bf16.msra.mxu0 0
      %459 = vmatpush.bf16.msra.mxu0 0
      %460 = vmatpush.bf16.msra.mxu0 0
      %461 = vmatpush.bf16.msra.mxu0 0
      %462 = vmatpush.bf16.msra.mxu0 %v429
      %463 = vmatpush.bf16.msra.mxu0 %v416
      %464 = vmatpush.bf16.msra.mxu0 %v392
      %465 = vmatmul.bf16.gmra.mxu0 %v420
      %v466 = vpop.f32.mrf.mxu0
      %v467 = vadd.f32 0.0, %v466
      %v468 = vpop.f32.mrf.mxu0
      %469 = vdwg.mxu0
      %v472 = vrot.slane %v454, 4
      %v473 = vsel %vm377, %v441, %v472
      %475 = vst [vmem:[%s211] sm:$0xff] %v473
      %476 = vst [vmem:[%s211 + $0x8] sm:$0xf] %v467
      %v478 = vperm.slane %v219, 0
      %v479 = vperm.slane %v219, 1
      %v480 = vperm.slane %v219, 2
      %v484 = vmul.f32 %v441, %v478
      %v485 = vmul.f32 %v454, %v479
      %v486 = vmul.f32 %v467, %v480
      %v487 = vsel %vm377, %v484, 0.0
      %v488 = vsel %vm377, %v485, 0.0
      %v489 = vadd.f32 %v487, %v488
      %v490 = vsel %vm377, %v486, 0.0
      %v491 = vadd.f32 %v489, %v490
      %492 = vadd.xlane.f32.xlu0 %v491
      %v493 = vpop.xlane.xlu0 %492
      %v494 = vadd.f32 %v493, 0.0
      %v495 = vmul.f32 %v484, %v441
      %v496 = vmul.f32 %v485, %v454
      %v497 = vmul.f32 %v486, %v467
      %v498 = vsel %vm377, %v495, 0.0
      %v499 = vsel %vm377, %v496, 0.0
      %v500 = vadd.f32 %v498, %v499
      %v501 = vsel %vm377, %v497, 0.0
      %v502 = vadd.f32 %v500, %v501
      %503 = vadd.xlane.f32.xlu0 %v502
      %v504 = vpop.xlane.xlu0 %503
      %v505 = vadd.f32 %v504, 0.0
      %s506 = scalar_lea.vmem %s204, 12
      %v507 = vld [vmem:[%s506] sm:$0xff]
      %v508 = vld [vmem:[%s506 + $0x8] sm:$0xf]
      %511 = vst [vmem:[#allocation1] ss:$2 sm:$0xff] %v507
      %s512 = scalar_lea.vmem [#allocation1], 16
      %513 = vst [vmem:[%s512] ss:$2 sm:$0xff] %v508
      %v514 = vld.sshfl [vmem:[#allocation1] sm:$0xff pattern:$0x75316420]
      %v515 = vld.sshfl [vmem:[#allocation1 + $0x8] sm:$0xff pattern:$0x75316420]
      %v516 = vld.sshfl [vmem:[#allocation1 + $0x10] sm:$0xff pattern:$0x75316420]
      %v520 = vpack.c.bf16 %v515, %v514
      %v521 = vpack.c.bf16 %v516, %v516
      %v524 = vunpack.c.l.b16 %v520
      %v525 = vunpack.c.h.b16 %v520
      %v526 = vunpack.c.l.b16 %v521
      %v527 = vpack.c.b16 %v524, %v524
      %v528 = vpack.c.b16 %v525, %v525
      %v529 = vpack.c.b16 %v526, %v526
      %530 = vrot.lane.b32.xlu0 %v527, 19
      %v531 = vpop.permute.xlu0 %530
      %532 = vrot.lane.b32.xlu0 %v528, 19
      %v533 = vpop.permute.xlu0 %532
      %534 = vrot.lane.b32.xlu0 %v529, 19
      %v535 = vpop.permute.xlu0 %534
      %v536 = vsel %vm249, %v531, %v533
      %v537 = vsel %vm249, %v533, %v535
      %v539 = vsel %vm252, 0, %v531
      %v541 = vsel %vm252, %v535, 0
      %v544 = vrot.slane %v539, 6
      %v545 = vrot.slane %v536, 6
      %v546 = vrot.slane %v537, 6
      %v547 = vrot.slane %v541, 6
      %548 = vrot.lane.b32.xlu0 %v544, 127
      %v549 = vpop.permute.xlu0 %548
      %550 = vrot.lane.b32.xlu0 %v545, 127
      %v551 = vpop.permute.xlu0 %550
      %552 = vrot.lane.b32.xlu0 %v546, 127
      %v553 = vpop.permute.xlu0 %552
      %554 = vrot.lane.b32.xlu0 %v547, 127
      %v555 = vpop.permute.xlu0 %554
      %v556 = vsel %vm272, %v549, %v551
      %v557 = vsel %vm272, %v551, %v553
      %v558 = vsel %vm272, %v553, %v555
      %v559 = vrot.slane %v539, 4
      %v560 = vrot.slane %v536, 4
      %v561 = vrot.slane %v537, 4
      %v562 = vrot.slane %v541, 4
      %563 = vrot.lane.b32.xlu0 %v559, 126
      %v564 = vpop.permute.xlu0 %563
      %565 = vrot.lane.b32.xlu0 %v560, 126
      %v566 = vpop.permute.xlu0 %565
      %567 = vrot.lane.b32.xlu0 %v561, 126
      %v568 = vpop.permute.xlu0 %567
      %569 = vrot.lane.b32.xlu0 %v562, 126
      %v570 = vpop.permute.xlu0 %569
      %v571 = vsel %vm288, %v564, %v566
      %v572 = vsel %vm288, %v566, %v568
      %v573 = vsel %vm288, %v568, %v570
      %v574 = vrot.slane %v539, 2
      %v575 = vrot.slane %v536, 2
      %v576 = vrot.slane %v537, 2
      %v577 = vrot.slane %v541, 2
      %578 = vrot.lane.b32.xlu0 %v574, 110
      %v579 = vpop.permute.xlu0 %578
      %580 = vrot.lane.b32.xlu0 %v575, 110
      %v581 = vpop.permute.xlu0 %580
      %582 = vrot.lane.b32.xlu0 %v576, 110
      %v583 = vpop.permute.xlu0 %582
      %584 = vrot.lane.b32.xlu0 %v577, 110
      %v585 = vpop.permute.xlu0 %584
      %v586 = vsel %vm304, %v579, %v581
      %v587 = vsel %vm304, %v581, %v583
      %v588 = vsel %vm304, %v583, %v585
      %589 = vrot.lane.b32.xlu0 %v539, 109
      %v590 = vpop.permute.xlu0 %589
      %591 = vrot.lane.b32.xlu0 %v536, 109
      %v592 = vpop.permute.xlu0 %591
      %593 = vrot.lane.b32.xlu0 %v537, 109
      %v594 = vpop.permute.xlu0 %593
      %595 = vrot.lane.b32.xlu0 %v541, 109
      %v596 = vpop.permute.xlu0 %595
      %v597 = vsel %vm316, %v590, %v592
      %v598 = vsel %vm316, %v592, %v594
      %v599 = vsel %vm316, %v594, %v596
      %600 = vrot.lane.b32.xlu0 %v544, 108
      %v601 = vpop.permute.xlu0 %600
      %602 = vrot.lane.b32.xlu0 %v545, 108
      %v603 = vpop.permute.xlu0 %602
      %604 = vrot.lane.b32.xlu0 %v546, 108
      %v605 = vpop.permute.xlu0 %604
      %606 = vrot.lane.b32.xlu0 %v547, 108
      %v607 = vpop.permute.xlu0 %606
      %v608 = vsel %vm328, %v601, %v603
      %v609 = vsel %vm328, %v603, %v605
      %v610 = vsel %vm328, %v605, %v607
      %611 = vrot.lane.b32.xlu0 %v559, 92
      %v612 = vpop.permute.xlu0 %611
      %613 = vrot.lane.b32.xlu0 %v560, 92
      %v614 = vpop.permute.xlu0 %613
      %615 = vrot.lane.b32.xlu0 %v561, 92
      %v616 = vpop.permute.xlu0 %615
      %617 = vrot.lane.b32.xlu0 %v562, 92
      %v618 = vpop.permute.xlu0 %617
      %v619 = vsel %vm340, %v612, %v614
      %v620 = vsel %vm340, %v614, %v616
      %v621 = vsel %vm340, %v616, %v618
      %622 = vrot.lane.b32.xlu0 %v574, 91
      %v623 = vpop.permute.xlu0 %622
      %624 = vrot.lane.b32.xlu0 %v575, 91
      %v625 = vpop.permute.xlu0 %624
      %626 = vrot.lane.b32.xlu0 %v576, 91
      %v627 = vpop.permute.xlu0 %626
      %628 = vrot.lane.b32.xlu0 %v577, 91
      %v629 = vpop.permute.xlu0 %628
      %v630 = vsel %vm352, %v623, %v625
      %v631 = vsel %vm352, %v625, %v627
      %v632 = vsel %vm352, %v627, %v629
      %633 = vrot.lane.b32.xlu0 %v539, 90
      %v634 = vpop.permute.xlu0 %633
      %635 = vrot.lane.b32.xlu0 %v536, 90
      %v636 = vpop.permute.xlu0 %635
      %637 = vrot.lane.b32.xlu0 %v537, 90
      %v638 = vpop.permute.xlu0 %637
      %639 = vrot.lane.b32.xlu0 %v541, 90
      %v640 = vpop.permute.xlu0 %639
      %v641 = vsel %vm364, %v634, %v636
      %v642 = vsel %vm364, %v636, %v638
      %v643 = vsel %vm364, %v638, %v640
      %v645 = vsel %vm368, %v539, %v556
      %v648 = vsel %vm368, %v536, %v557
      %v651 = vsel %vm368, %v537, %v558
      %v653 = vsel %vm377, %v645, %v571
      %v655 = vsel %vm377, %v648, %v572
      %v657 = vsel %vm377, %v651, %v573
      %v659 = vsel %vm384, %v653, %v586
      %v662 = vsel %vm384, %v655, %v587
      %v665 = vsel %vm384, %v657, %v588
      %v669 = vsel %vm368, %v597, %v608
      %v672 = vsel %vm368, %v598, %v609
      %v675 = vsel %vm368, %v599, %v610
      %v677 = vsel %vm377, %v669, %v619
      %v679 = vsel %vm377, %v672, %v620
      %v681 = vsel %vm377, %v675, %v621
      %v683 = vsel %vm384, %v677, %v630
      %v686 = vsel %vm384, %v679, %v631
      %v689 = vsel %vm384, %v681, %v632
      %v692 = vsel %vm368, %v641, 0
      %v695 = vsel %vm368, %v642, 0
      %v698 = vsel %vm368, %v643, 0
      %700 = vmatpush.bf16.msra.mxu0 0
      %701 = vmatpush.bf16.msra.mxu0 0
      %702 = vmatpush.bf16.msra.mxu0 0
      %703 = vmatpush.bf16.msra.mxu0 0
      %704 = vmatpush.bf16.msra.mxu0 0
      %705 = vmatpush.bf16.msra.mxu0 %v692
      %706 = vmatpush.bf16.msra.mxu0 %v683
      %707 = vmatpush.bf16.msra.mxu0 %v659
      %708 = vmatmul.bf16.gmra.mxu0 %v420
      %v709 = vpop.f32.mrf.mxu0
      %v710 = vadd.f32 0.0, %v709
      %v711 = vpop.f32.mrf.mxu0
      %712 = vdwg.mxu0
      %713 = vmatpush.bf16.msra.mxu0 0
      %714 = vmatpush.bf16.msra.mxu0 0
      %715 = vmatpush.bf16.msra.mxu0 0
      %716 = vmatpush.bf16.msra.mxu0 0
      %717 = vmatpush.bf16.msra.mxu0 0
      %718 = vmatpush.bf16.msra.mxu0 %v695
      %719 = vmatpush.bf16.msra.mxu0 %v686
      %720 = vmatpush.bf16.msra.mxu0 %v662
      %721 = vmatmul.bf16.gmra.mxu0 %v420
      %v722 = vpop.f32.mrf.mxu0
      %v723 = vadd.f32 0.0, %v722
      %v724 = vpop.f32.mrf.mxu0
      %725 = vdwg.mxu0
      %726 = vmatpush.bf16.msra.mxu0 0
      %727 = vmatpush.bf16.msra.mxu0 0
      %728 = vmatpush.bf16.msra.mxu0 0
      %729 = vmatpush.bf16.msra.mxu0 0
      %730 = vmatpush.bf16.msra.mxu0 0
      %731 = vmatpush.bf16.msra.mxu0 %v698
      %732 = vmatpush.bf16.msra.mxu0 %v689
      %733 = vmatpush.bf16.msra.mxu0 %v665
      %734 = vmatmul.bf16.gmra.mxu0 %v420
      %v735 = vpop.f32.mrf.mxu0
      %v736 = vadd.f32 0.0, %v735
      %v737 = vpop.f32.mrf.mxu0
      %738 = vdwg.mxu0
      %v741 = vrot.slane %v723, 4
      %v742 = vsel %vm377, %v710, %v741
      %s744 = scalar_lea.vmem %s211, 12
      %745 = vst [vmem:[%s744] sm:$0xff] %v742
      %746 = vst [vmem:[%s744 + $0x8] sm:$0xf] %v736
      %v747 = vmul.f32 %v710, %v478
      %v748 = vmul.f32 %v723, %v479
      %v749 = vmul.f32 %v736, %v480
      %v750 = vsel %vm377, %v747, 0.0
      %v751 = vsel %vm377, %v748, 0.0
      %v752 = vadd.f32 %v750, %v751
      %v753 = vsel %vm377, %v749, 0.0
      %v754 = vadd.f32 %v752, %v753
      %755 = vadd.xlane.f32.xlu0 %v754
      %v756 = vpop.xlane.xlu0 %755
      %v757 = vadd.f32 %v494, %v756
      %v758 = vmul.f32 %v747, %v710
      %v759 = vmul.f32 %v748, %v723
      %v760 = vmul.f32 %v749, %v736
      %v761 = vsel %vm377, %v758, 0.0
      %v762 = vsel %vm377, %v759, 0.0
      %v763 = vadd.f32 %v761, %v762
      %v764 = vsel %vm377, %v760, 0.0
      %v765 = vadd.f32 %v763, %v764
      %766 = vadd.xlane.f32.xlu0 %v765
      %v767 = vpop.xlane.xlu0 %766
      %v768 = vadd.f32 %v505, %v767
      %s769 = scalar_lea.vmem %s204, 24
      %v770 = vld [vmem:[%s769] sm:$0xff]
      %v771 = vld [vmem:[%s769 + $0x8] sm:$0xf]
      %774 = vst [vmem:[#allocation1] ss:$2 sm:$0xff] %v770
      %s775 = scalar_lea.vmem [#allocation1], 16
      %776 = vst [vmem:[%s775] ss:$2 sm:$0xff] %v771
      %v777 = vld.sshfl [vmem:[#allocation1] sm:$0xff pattern:$0x75316420]
      %v778 = vld.sshfl [vmem:[#allocation1 + $0x8] sm:$0xff pattern:$0x75316420]
      %v779 = vld.sshfl [vmem:[#allocation1 + $0x10] sm:$0xff pattern:$0x75316420]
      %v783 = vpack.c.bf16 %v778, %v777
      %v784 = vpack.c.bf16 %v779, %v779
      %v787 = vunpack.c.l.b16 %v783
      %v788 = vunpack.c.h.b16 %v783
      %v789 = vunpack.c.l.b16 %v784
      %v790 = vpack.c.b16 %v787, %v787
      %v791 = vpack.c.b16 %v788, %v788
      %v792 = vpack.c.b16 %v789, %v789
      %793 = vrot.lane.b32.xlu0 %v790, 19
      %v794 = vpop.permute.xlu0 %793
      %795 = vrot.lane.b32.xlu0 %v791, 19
      %v796 = vpop.permute.xlu0 %795
      %797 = vrot.lane.b32.xlu0 %v792, 19
      %v798 = vpop.permute.xlu0 %797
      %v799 = vsel %vm249, %v794, %v796
      %v800 = vsel %vm249, %v796, %v798
      %v802 = vsel %vm252, 0, %v794
      %v804 = vsel %vm252, %v798, 0
      %v807 = vrot.slane %v802, 6
      %v808 = vrot.slane %v799, 6
      %v809 = vrot.slane %v800, 6
      %v810 = vrot.slane %v804, 6
      %811 = vrot.lane.b32.xlu0 %v807, 127
      %v812 = vpop.permute.xlu0 %811
      %813 = vrot.lane.b32.xlu0 %v808, 127
      %v814 = vpop.permute.xlu0 %813
      %815 = vrot.lane.b32.xlu0 %v809, 127
      %v816 = vpop.permute.xlu0 %815
      %817 = vrot.lane.b32.xlu0 %v810, 127
      %v818 = vpop.permute.xlu0 %817
      %v819 = vsel %vm272, %v812, %v814
      %v820 = vsel %vm272, %v814, %v816
      %v821 = vsel %vm272, %v816, %v818
      %v822 = vrot.slane %v802, 4
      %v823 = vrot.slane %v799, 4
      %v824 = vrot.slane %v800, 4
      %v825 = vrot.slane %v804, 4
      %826 = vrot.lane.b32.xlu0 %v822, 126
      %v827 = vpop.permute.xlu0 %826
      %828 = vrot.lane.b32.xlu0 %v823, 126
      %v829 = vpop.permute.xlu0 %828
      %830 = vrot.lane.b32.xlu0 %v824, 126
      %v831 = vpop.permute.xlu0 %830
      %832 = vrot.lane.b32.xlu0 %v825, 126
      %v833 = vpop.permute.xlu0 %832
      %v834 = vsel %vm288, %v827, %v829
      %v835 = vsel %vm288, %v829, %v831
      %v836 = vsel %vm288, %v831, %v833
      %v837 = vrot.slane %v802, 2
      %v838 = vrot.slane %v799, 2
      %v839 = vrot.slane %v800, 2
      %v840 = vrot.slane %v804, 2
      %841 = vrot.lane.b32.xlu0 %v837, 110
      %v842 = vpop.permute.xlu0 %841
      %843 = vrot.lane.b32.xlu0 %v838, 110
      %v844 = vpop.permute.xlu0 %843
      %845 = vrot.lane.b32.xlu0 %v839, 110
      %v846 = vpop.permute.xlu0 %845
      %847 = vrot.lane.b32.xlu0 %v840, 110
      %v848 = vpop.permute.xlu0 %847
      %v849 = vsel %vm304, %v842, %v844
      %v850 = vsel %vm304, %v844, %v846
      %v851 = vsel %vm304, %v846, %v848
      %852 = vrot.lane.b32.xlu0 %v802, 109
      %v853 = vpop.permute.xlu0 %852
      %854 = vrot.lane.b32.xlu0 %v799, 109
      %v855 = vpop.permute.xlu0 %854
      %856 = vrot.lane.b32.xlu0 %v800, 109
      %v857 = vpop.permute.xlu0 %856
      %858 = vrot.lane.b32.xlu0 %v804, 109
      %v859 = vpop.permute.xlu0 %858
      %v860 = vsel %vm316, %v853, %v855
      %v861 = vsel %vm316, %v855, %v857
      %v862 = vsel %vm316, %v857, %v859
      %863 = vrot.lane.b32.xlu0 %v807, 108
      %v864 = vpop.permute.xlu0 %863
      %865 = vrot.lane.b32.xlu0 %v808, 108
      %v866 = vpop.permute.xlu0 %865
      %867 = vrot.lane.b32.xlu0 %v809, 108
      %v868 = vpop.permute.xlu0 %867
      %869 = vrot.lane.b32.xlu0 %v810, 108
      %v870 = vpop.permute.xlu0 %869
      %v871 = vsel %vm328, %v864, %v866
      %v872 = vsel %vm328, %v866, %v868
      %v873 = vsel %vm328, %v868, %v870
      %874 = vrot.lane.b32.xlu0 %v822, 92
      %v875 = vpop.permute.xlu0 %874
      %876 = vrot.lane.b32.xlu0 %v823, 92
      %v877 = vpop.permute.xlu0 %876
      %878 = vrot.lane.b32.xlu0 %v824, 92
      %v879 = vpop.permute.xlu0 %878
      %880 = vrot.lane.b32.xlu0 %v825, 92
      %v881 = vpop.permute.xlu0 %880
      %v882 = vsel %vm340, %v875, %v877
      %v883 = vsel %vm340, %v877, %v879
      %v884 = vsel %vm340, %v879, %v881
      %885 = vrot.lane.b32.xlu0 %v837, 91
      %v886 = vpop.permute.xlu0 %885
      %887 = vrot.lane.b32.xlu0 %v838, 91
      %v888 = vpop.permute.xlu0 %887
      %889 = vrot.lane.b32.xlu0 %v839, 91
      %v890 = vpop.permute.xlu0 %889
      %891 = vrot.lane.b32.xlu0 %v840, 91
      %v892 = vpop.permute.xlu0 %891
      %v893 = vsel %vm352, %v886, %v888
      %v894 = vsel %vm352, %v888, %v890
      %v895 = vsel %vm352, %v890, %v892
      %896 = vrot.lane.b32.xlu0 %v802, 90
      %v897 = vpop.permute.xlu0 %896
      %898 = vrot.lane.b32.xlu0 %v799, 90
      %v899 = vpop.permute.xlu0 %898
      %900 = vrot.lane.b32.xlu0 %v800, 90
      %v901 = vpop.permute.xlu0 %900
      %902 = vrot.lane.b32.xlu0 %v804, 90
      %v903 = vpop.permute.xlu0 %902
      %v904 = vsel %vm364, %v897, %v899
      %v905 = vsel %vm364, %v899, %v901
      %v906 = vsel %vm364, %v901, %v903
      %v908 = vsel %vm368, %v802, %v819
      %v911 = vsel %vm368, %v799, %v820
      %v914 = vsel %vm368, %v800, %v821
      %v916 = vsel %vm377, %v908, %v834
      %v918 = vsel %vm377, %v911, %v835
      %v920 = vsel %vm377, %v914, %v836
      %v922 = vsel %vm384, %v916, %v849
      %v925 = vsel %vm384, %v918, %v850
      %v928 = vsel %vm384, %v920, %v851
      %v932 = vsel %vm368, %v860, %v871
      %v935 = vsel %vm368, %v861, %v872
      %v938 = vsel %vm368, %v862, %v873
      %v940 = vsel %vm377, %v932, %v882
      %v942 = vsel %vm377, %v935, %v883
      %v944 = vsel %vm377, %v938, %v884
      %v946 = vsel %vm384, %v940, %v893
      %v949 = vsel %vm384, %v942, %v894
      %v952 = vsel %vm384, %v944, %v895
      %v955 = vsel %vm368, %v904, 0
      %v958 = vsel %vm368, %v905, 0
      %v961 = vsel %vm368, %v906, 0
      %963 = vmatpush.bf16.msra.mxu0 0
      %964 = vmatpush.bf16.msra.mxu0 0
      %965 = vmatpush.bf16.msra.mxu0 0
      %966 = vmatpush.bf16.msra.mxu0 0
      %967 = vmatpush.bf16.msra.mxu0 0
      %968 = vmatpush.bf16.msra.mxu0 %v955
      %969 = vmatpush.bf16.msra.mxu0 %v946
      %970 = vmatpush.bf16.msra.mxu0 %v922
      %971 = vmatmul.bf16.gmra.mxu0 %v420
      %v972 = vpop.f32.mrf.mxu0
      %v973 = vadd.f32 0.0, %v972
      %v974 = vpop.f32.mrf.mxu0
      %975 = vdwg.mxu0
      %976 = vmatpush.bf16.msra.mxu0 0
      %977 = vmatpush.bf16.msra.mxu0 0
      %978 = vmatpush.bf16.msra.mxu0 0
      %979 = vmatpush.bf16.msra.mxu0 0
      %980 = vmatpush.bf16.msra.mxu0 0
      %981 = vmatpush.bf16.msra.mxu0 %v958
      %982 = vmatpush.bf16.msra.mxu0 %v949
      %983 = vmatpush.bf16.msra.mxu0 %v925
      %984 = vmatmul.bf16.gmra.mxu0 %v420
      %v985 = vpop.f32.mrf.mxu0
      %v986 = vadd.f32 0.0, %v985
      %v987 = vpop.f32.mrf.mxu0
      %988 = vdwg.mxu0
      %989 = vmatpush.bf16.msra.mxu0 0
      %990 = vmatpush.bf16.msra.mxu0 0
      %991 = vmatpush.bf16.msra.mxu0 0
      %992 = vmatpush.bf16.msra.mxu0 0
      %993 = vmatpush.bf16.msra.mxu0 0
      %994 = vmatpush.bf16.msra.mxu0 %v961
      %995 = vmatpush.bf16.msra.mxu0 %v952
      %996 = vmatpush.bf16.msra.mxu0 %v928
      %997 = vmatmul.bf16.gmra.mxu0 %v420
      %v998 = vpop.f32.mrf.mxu0
      %v999 = vadd.f32 0.0, %v998
      %v1000 = vpop.f32.mrf.mxu0
      %1001 = vdwg.mxu0
      %v1004 = vrot.slane %v986, 4
      %v1005 = vsel %vm377, %v973, %v1004
      %s1007 = scalar_lea.vmem %s211, 24
      %1008 = vst [vmem:[%s1007] sm:$0xff] %v1005
      %1009 = vst [vmem:[%s1007 + $0x8] sm:$0xf] %v999
      %v1010 = vmul.f32 %v973, %v478
      %v1011 = vmul.f32 %v986, %v479
      %v1012 = vmul.f32 %v999, %v480
      %v1013 = vsel %vm377, %v1010, 0.0
      %v1014 = vsel %vm377, %v1011, 0.0
      %v1015 = vadd.f32 %v1013, %v1014
      %v1016 = vsel %vm377, %v1012, 0.0
      %v1017 = vadd.f32 %v1015, %v1016
      %1018 = vadd.xlane.f32.xlu0 %v1017
      %v1019 = vpop.xlane.xlu0 %1018
      %v1020 = vadd.f32 %v757, %v1019
      %v1021 = vmul.f32 %v1010, %v973
      %v1022 = vmul.f32 %v1011, %v986
      %v1023 = vmul.f32 %v1012, %v999
      %v1024 = vsel %vm377, %v1021, 0.0
      %v1025 = vsel %vm377, %v1022, 0.0
      %v1026 = vadd.f32 %v1024, %v1025
      %v1027 = vsel %vm377, %v1023, 0.0
      %v1028 = vadd.f32 %v1026, %v1027
      %1029 = vadd.xlane.f32.xlu0 %v1028
      %v1030 = vpop.xlane.xlu0 %1029
      %v1031 = vadd.f32 %v768, %v1030
      %s1032 = scalar_lea.vmem %s204, 36
      %v1033 = vld [vmem:[%s1032] sm:$0xff]
      %v1034 = vld [vmem:[%s1032 + $0x8] sm:$0xf]
      %1037 = vst [vmem:[#allocation1] ss:$2 sm:$0xff] %v1033
      %s1038 = scalar_lea.vmem [#allocation1], 16
      %1039 = vst [vmem:[%s1038] ss:$2 sm:$0xff] %v1034
      %v1040 = vld.sshfl [vmem:[#allocation1] sm:$0xff pattern:$0x75316420]
      %v1041 = vld.sshfl [vmem:[#allocation1 + $0x8] sm:$0xff pattern:$0x75316420]
      %v1042 = vld.sshfl [vmem:[#allocation1 + $0x10] sm:$0xff pattern:$0x75316420]
      %v1046 = vpack.c.bf16 %v1041, %v1040
      %v1047 = vpack.c.bf16 %v1042, %v1042
      %v1050 = vunpack.c.l.b16 %v1046
      %v1051 = vunpack.c.h.b16 %v1046
      %v1052 = vunpack.c.l.b16 %v1047
      %v1053 = vpack.c.b16 %v1050, %v1050
      %v1054 = vpack.c.b16 %v1051, %v1051
      %v1055 = vpack.c.b16 %v1052, %v1052
      %1056 = vrot.lane.b32.xlu0 %v1053, 19
      %v1057 = vpop.permute.xlu0 %1056
      %1058 = vrot.lane.b32.xlu0 %v1054, 19
      %v1059 = vpop.permute.xlu0 %1058
      %1060 = vrot.lane.b32.xlu0 %v1055, 19
      %v1061 = vpop.permute.xlu0 %1060
      %v1062 = vsel %vm249, %v1057, %v1059
      %v1063 = vsel %vm249, %v1059, %v1061
      %v1065 = vsel %vm252, 0, %v1057
      %v1067 = vsel %vm252, %v1061, 0
      %v1070 = vrot.slane %v1065, 6
      %v1071 = vrot.slane %v1062, 6
      %v1072 = vrot.slane %v1063, 6
      %v1073 = vrot.slane %v1067, 6
      %1074 = vrot.lane.b32.xlu0 %v1070, 127
      %v1075 = vpop.permute.xlu0 %1074
      %1076 = vrot.lane.b32.xlu0 %v1071, 127
      %v1077 = vpop.permute.xlu0 %1076
      %1078 = vrot.lane.b32.xlu0 %v1072, 127
      %v1079 = vpop.permute.xlu0 %1078
      %1080 = vrot.lane.b32.xlu0 %v1073, 127
      %v1081 = vpop.permute.xlu0 %1080
      %v1082 = vsel %vm272, %v1075, %v1077
      %v1083 = vsel %vm272, %v1077, %v1079
      %v1084 = vsel %vm272, %v1079, %v1081
      %v1085 = vrot.slane %v1065, 4
      %v1086 = vrot.slane %v1062, 4
      %v1087 = vrot.slane %v1063, 4
      %v1088 = vrot.slane %v1067, 4
      %1089 = vrot.lane.b32.xlu0 %v1085, 126
      %v1090 = vpop.permute.xlu0 %1089
      %1091 = vrot.lane.b32.xlu0 %v1086, 126
      %v1092 = vpop.permute.xlu0 %1091
      %1093 = vrot.lane.b32.xlu0 %v1087, 126
      %v1094 = vpop.permute.xlu0 %1093
      %1095 = vrot.lane.b32.xlu0 %v1088, 126
      %v1096 = vpop.permute.xlu0 %1095
      %v1097 = vsel %vm288, %v1090, %v1092
      %v1098 = vsel %vm288, %v1092, %v1094
      %v1099 = vsel %vm288, %v1094, %v1096
      %v1100 = vrot.slane %v1065, 2
      %v1101 = vrot.slane %v1062, 2
      %v1102 = vrot.slane %v1063, 2
      %v1103 = vrot.slane %v1067, 2
      %1104 = vrot.lane.b32.xlu0 %v1100, 110
      %v1105 = vpop.permute.xlu0 %1104
      %1106 = vrot.lane.b32.xlu0 %v1101, 110
      %v1107 = vpop.permute.xlu0 %1106
      %1108 = vrot.lane.b32.xlu0 %v1102, 110
      %v1109 = vpop.permute.xlu0 %1108
      %1110 = vrot.lane.b32.xlu0 %v1103, 110
      %v1111 = vpop.permute.xlu0 %1110
      %v1112 = vsel %vm304, %v1105, %v1107
      %v1113 = vsel %vm304, %v1107, %v1109
      %v1114 = vsel %vm304, %v1109, %v1111
      %1115 = vrot.lane.b32.xlu0 %v1065, 109
      %v1116 = vpop.permute.xlu0 %1115
      %1117 = vrot.lane.b32.xlu0 %v1062, 109
      %v1118 = vpop.permute.xlu0 %1117
      %1119 = vrot.lane.b32.xlu0 %v1063, 109
      %v1120 = vpop.permute.xlu0 %1119
      %1121 = vrot.lane.b32.xlu0 %v1067, 109
      %v1122 = vpop.permute.xlu0 %1121
      %v1123 = vsel %vm316, %v1116, %v1118
      %v1124 = vsel %vm316, %v1118, %v1120
      %v1125 = vsel %vm316, %v1120, %v1122
      %1126 = vrot.lane.b32.xlu0 %v1070, 108
      %v1127 = vpop.permute.xlu0 %1126
      %1128 = vrot.lane.b32.xlu0 %v1071, 108
      %v1129 = vpop.permute.xlu0 %1128
      %1130 = vrot.lane.b32.xlu0 %v1072, 108
      %v1131 = vpop.permute.xlu0 %1130
      %1132 = vrot.lane.b32.xlu0 %v1073, 108
      %v1133 = vpop.permute.xlu0 %1132
      %v1134 = vsel %vm328, %v1127, %v1129
      %v1135 = vsel %vm328, %v1129, %v1131
      %v1136 = vsel %vm328, %v1131, %v1133
      %1137 = vrot.lane.b32.xlu0 %v1085, 92
      %v1138 = vpop.permute.xlu0 %1137
      %1139 = vrot.lane.b32.xlu0 %v1086, 92
      %v1140 = vpop.permute.xlu0 %1139
      %1141 = vrot.lane.b32.xlu0 %v1087, 92
      %v1142 = vpop.permute.xlu0 %1141
      %1143 = vrot.lane.b32.xlu0 %v1088, 92
      %v1144 = vpop.permute.xlu0 %1143
      %v1145 = vsel %vm340, %v1138, %v1140
      %v1146 = vsel %vm340, %v1140, %v1142
      %v1147 = vsel %vm340, %v1142, %v1144
      %1148 = vrot.lane.b32.xlu0 %v1100, 91
      %v1149 = vpop.permute.xlu0 %1148
      %1150 = vrot.lane.b32.xlu0 %v1101, 91
      %v1151 = vpop.permute.xlu0 %1150
      %1152 = vrot.lane.b32.xlu0 %v1102, 91
      %v1153 = vpop.permute.xlu0 %1152
      %1154 = vrot.lane.b32.xlu0 %v1103, 91
      %v1155 = vpop.permute.xlu0 %1154
      %v1156 = vsel %vm352, %v1149, %v1151
      %v1157 = vsel %vm352, %v1151, %v1153
      %v1158 = vsel %vm352, %v1153, %v1155
      %1159 = vrot.lane.b32.xlu0 %v1065, 90
      %v1160 = vpop.permute.xlu0 %1159
      %1161 = vrot.lane.b32.xlu0 %v1062, 90
      %v1162 = vpop.permute.xlu0 %1161
      %1163 = vrot.lane.b32.xlu0 %v1063, 90
      %v1164 = vpop.permute.xlu0 %1163
      %1165 = vrot.lane.b32.xlu0 %v1067, 90
      %v1166 = vpop.permute.xlu0 %1165
      %v1167 = vsel %vm364, %v1160, %v1162
      %v1168 = vsel %vm364, %v1162, %v1164
      %v1169 = vsel %vm364, %v1164, %v1166
      %v1171 = vsel %vm368, %v1065, %v1082
      %v1174 = vsel %vm368, %v1062, %v1083
      %v1177 = vsel %vm368, %v1063, %v1084
      %v1179 = vsel %vm377, %v1171, %v1097
      %v1181 = vsel %vm377, %v1174, %v1098
      %v1183 = vsel %vm377, %v1177, %v1099
      %v1185 = vsel %vm384, %v1179, %v1112
      %v1188 = vsel %vm384, %v1181, %v1113
      %v1191 = vsel %vm384, %v1183, %v1114
      %v1195 = vsel %vm368, %v1123, %v1134
      %v1198 = vsel %vm368, %v1124, %v1135
      %v1201 = vsel %vm368, %v1125, %v1136
      %v1203 = vsel %vm377, %v1195, %v1145
      %v1205 = vsel %vm377, %v1198, %v1146
      %v1207 = vsel %vm377, %v1201, %v1147
      %v1209 = vsel %vm384, %v1203, %v1156
      %v1212 = vsel %vm384, %v1205, %v1157
      %v1215 = vsel %vm384, %v1207, %v1158
      %v1218 = vsel %vm368, %v1167, 0
      %v1221 = vsel %vm368, %v1168, 0
      %v1224 = vsel %vm368, %v1169, 0
      %1226 = vmatpush.bf16.msra.mxu0 0
      %1227 = vmatpush.bf16.msra.mxu0 0
      %1228 = vmatpush.bf16.msra.mxu0 0
      %1229 = vmatpush.bf16.msra.mxu0 0
      %1230 = vmatpush.bf16.msra.mxu0 0
      %1231 = vmatpush.bf16.msra.mxu0 %v1218
      %1232 = vmatpush.bf16.msra.mxu0 %v1209
      %1233 = vmatpush.bf16.msra.mxu0 %v1185
      %1234 = vmatmul.bf16.gmra.mxu0 %v420
      %v1235 = vpop.f32.mrf.mxu0
      %v1236 = vadd.f32 0.0, %v1235
      %v1237 = vpop.f32.mrf.mxu0
      %1238 = vdwg.mxu0
      %1239 = vmatpush.bf16.msra.mxu0 0
      %1240 = vmatpush.bf16.msra.mxu0 0
      %1241 = vmatpush.bf16.msra.mxu0 0
      %1242 = vmatpush.bf16.msra.mxu0 0
      %1243 = vmatpush.bf16.msra.mxu0 0
      %1244 = vmatpush.bf16.msra.mxu0 %v1221
      %1245 = vmatpush.bf16.msra.mxu0 %v1212
      %1246 = vmatpush.bf16.msra.mxu0 %v1188
      %1247 = vmatmul.bf16.gmra.mxu0 %v420
      %v1248 = vpop.f32.mrf.mxu0
      %v1249 = vadd.f32 0.0, %v1248
      %v1250 = vpop.f32.mrf.mxu0
      %1251 = vdwg.mxu0
      %1252 = vmatpush.bf16.msra.mxu0 0
      %1253 = vmatpush.bf16.msra.mxu0 0
      %1254 = vmatpush.bf16.msra.mxu0 0
      %1255 = vmatpush.bf16.msra.mxu0 0
      %1256 = vmatpush.bf16.msra.mxu0 0
      %1257 = vmatpush.bf16.msra.mxu0 %v1224
      %1258 = vmatpush.bf16.msra.mxu0 %v1215
      %1259 = vmatpush.bf16.msra.mxu0 %v1191
      %1260 = vmatmul.bf16.gmra.mxu0 %v420
      %v1261 = vpop.f32.mrf.mxu0
      %v1262 = vadd.f32 0.0, %v1261
      %v1263 = vpop.f32.mrf.mxu0
      %1264 = vdwg.mxu0
      %v1267 = vrot.slane %v1249, 4
      %v1268 = vsel %vm377, %v1236, %v1267
      %s1270 = scalar_lea.vmem %s211, 36
      %1271 = vst [vmem:[%s1270] sm:$0xff] %v1268
      %1272 = vst [vmem:[%s1270 + $0x8] sm:$0xf] %v1262
      %v1273 = vmul.f32 %v1236, %v478
      %v1274 = vmul.f32 %v1249, %v479
      %v1275 = vmul.f32 %v1262, %v480
      %v1276 = vsel %vm377, %v1273, 0.0
      %v1277 = vsel %vm377, %v1274, 0.0
      %v1278 = vadd.f32 %v1276, %v1277
      %v1279 = vsel %vm377, %v1275, 0.0
      %v1280 = vadd.f32 %v1278, %v1279
      %1281 = vadd.xlane.f32.xlu0 %v1280
      %v1282 = vpop.xlane.xlu0 %1281
      %v1283 = vadd.f32 %v1020, %v1282
      %v1284 = vmul.f32 %v1273, %v1236
      %v1285 = vmul.f32 %v1274, %v1249
      %v1286 = vmul.f32 %v1275, %v1262
      %v1287 = vsel %vm377, %v1284, 0.0
      %v1288 = vsel %vm377, %v1285, 0.0
      %v1289 = vadd.f32 %v1287, %v1288
      %v1290 = vsel %vm377, %v1286, 0.0
      %v1291 = vadd.f32 %v1289, %v1290
      %1292 = vadd.xlane.f32.xlu0 %v1291
      %v1293 = vpop.xlane.xlu0 %1292
      %v1294 = vadd.f32 %v1031, %v1293
      %vm1295 = vcmask 7168
      %v1296 = vsel %vm1295, %v1283, %v1294
      %vm1297 = vcmask 11264
      %1298 = vst.msk [vmem:[%s216] sm:$0xf] %vm1297, %v1296
      %s1299 = smul.u32 4, %s16
      %p1300 = scmp.lt.s32.totalorder %s1299, 7
      %s1301 = scalar_select %p1300, %s1299, 7
      %s1302 = smul.addr %s1301, 3
      %s1303 = smul.addr %s1302, 4
      %s1304 = scalar_lea.vmem %s3, %s1303
      %p1305 = scmp.lt.s32.totalorder %s16, 1
      %s1306 = scalar_select %p1305, %s16, 1
      %s1307 = smul.addr %s1306, 4
      %s1308 = scalar_lea.vmem %s4, %s1307
      // Predicated region
      $region33: #{basic_block_forward.4} parent=31 // pred_check
        %p1309 = pneg %p102
      $region34: #{basic_block_forward.4} parent=31 // pred_check_branch
        %1311 = sbr.rel (%p1309) target = $region36
      $region35: #{basic_block_forward.4} parent=31 // pred_region
        %s1312 = smul.u32 4, %s16
      $region36: #{basic_block_forward.4} parent=31 // pred_fallthru
        _
      // Predicated region
      $region37: #{basic_block_forward.4} parent=31 // pred_check
        %p1313 = pneg %p128
      $region38: #{basic_block_forward.4} parent=31 // pred_check_branch
        %1315 = sbr.rel (%p1313) target = $region40
      $region39: #{basic_block_forward.4} parent=31 // pred_region
        _
      $region40: #{basic_block_forward.4} parent=31 // pred_fallthru
        _
    $region32: #{basic_block_forward.4} parent=5 // pred_fallthru
      _
    %p1316 = scmp.le.s32.totalorder 2, %s11
    // Predicated region
    $region41: #{basic_block_forward.4} parent=5 // pred_check
      %p1317 = pneg %p1316
    $region42: #{basic_block_forward.4} parent=5 // pred_check_branch
      %1319 = sbr.rel (%p1317) target = $region44
    $region43: #{basic_block_forward.4} parent=5 // pred_region
      %s1320 = ssub.s32 %s11, 2
      // Predicated region
      $region45: #{basic_block_forward.4} parent=43 // pred_check
        %p1321 = pneg %p108
      $region46: #{basic_block_forward.4} parent=43 // pred_check_branch
        %1323 = sbr.rel (%p1321) target = $region48
      $region47: #{basic_block_forward.4} parent=43 // pred_region
        %s1324 = smul.u32 4, %s17
        %p1325 = scmp.lt.s32.totalorder %s1324, 7
        %s1326 = scalar_select %p1325, %s1324, 7
        %s1327 = smul.addr %s1326, 3
        %s1328 = smul.addr %s1327, 4
        %s1329 = scalar_lea.vmem %s3, %s1328
      $region48: #{basic_block_forward.4} parent=43 // pred_fallthru
        _
      // Predicated region
      $region49: #{basic_block_forward.4} parent=43 // pred_check
        %p1330 = pneg %p134
      $region50: #{basic_block_forward.4} parent=43 // pred_check_branch
        %1332 = sbr.rel (%p1330) target = $region52
      $region51: #{basic_block_forward.4} parent=43 // pred_region
        %p1333 = scmp.lt.s32.totalorder %s17, 1
        %s1334 = scalar_select %p1333, %s17, 1
        %s1335 = smul.addr %s1334, 4
        %s1336 = scalar_lea.vmem %s4, %s1335
      $region52: #{basic_block_forward.4} parent=43 // pred_fallthru
        _
    $region44: #{basic_block_forward.4} parent=5 // pred_fallthru
      _
  $region6: #{basic_block_forward.4} parent=0 // loop_footer
    %s15 = sadd.s32 1, %s11
  $region7: #{basic_block_forward.4} parent=0 // loop_footer_branch
    %10 = sbr.rel target = $region3
  $region8: #{basic_block_forward.4} parent=0 // loop_exit
    _

</llo_original>
